<compile_context>
chip_gen: v5e
topology: v5e:2x2
jax: 0.10.0
libtpu: 0.0.40
codegen_flags: <defaults>
</compile_context>

<pallas_src>
import functools

import jax
import jax.numpy as jnp
from jax import lax
from jax.experimental import pallas as pl
from jax.experimental.pallas import tpu as pltpu


def _conv1d_tanh_kernel(x_ref, w_ref, b_ref, o_ref, cols_ref, *, K, Cin, NL):
    """One grid step, batches folded into lanes.

    x_ref:    (1, Cin, NL + 128)  zero-padded, lane-folded input block
    w_ref:    (Cout, K*Cin)       flattened weights (k-major, cin-minor)
    b_ref:    (Cout, 1)           bias
    o_ref:    (Cout, NL)          lane-folded output block
    cols_ref: (K*Cin, NL)         VMEM scratch holding the im2col slab
    """
    # In-kernel im2col: tap k is the input shifted left by k lanes.
    # Loads are static, contiguous, lane-offset loads; stores land at aligned
    # sublane offsets (k*Cin is a multiple of 8), so no masked stores.
    for k in range(K):
        cols_ref[pl.ds(k * Cin, Cin), :] = x_ref[0, :, pl.ds(k, NL)]

    # Single deep MXU contraction: (Cout, K*Cin) @ (K*Cin, NL), f32 accumulate.
    acc = jnp.dot(w_ref[...], cols_ref[...], preferred_element_type=jnp.float32)
    o_ref[...] = jnp.tanh(acc + b_ref[...]).astype(o_ref.dtype)


def conv1d_tanh(x, w, b, *, padding=3, lane_seg=256):
    """x: (B, Cin, L) f32; w: (Cout, Cin, K); b: (Cout,). Returns (B, Cout, L_out)."""
    B, Cin, L = x.shape
    Cout, _, K = w.shape
    L_out = L + 2 * padding - K + 1          # stride 1
    Lp = lane_seg                            # per-batch lane segment (multiple of 128)
    assert L + 2 * padding <= Lp

    n_steps = 2 if B % 2 == 0 else 1         # 2 "parallel" steps -> both TCs on v7x
    B_blk = B // n_steps
    NL = B_blk * Lp                          # lanes per grid step (multiple of 128)
    Lx = NL + 128                            # headroom so tap loads at offset k<=K-1 stay in bounds

    # Zero-pad (conv padding in front, zeros up to Lp behind) and fold batches
    # into lanes, one slab per grid step: (n_steps, Cin, NL + 128).
    x_pad = jnp.pad(x, ((0, 0), (0, 0), (padding, Lp - L - padding)))    # (B, Cin, Lp)
    x_blk = (x_pad.reshape(n_steps, B_blk, Cin, Lp)
                  .transpose(0, 2, 1, 3)
                  .reshape(n_steps, Cin, NL))
    x_blk = jnp.pad(x_blk, ((0, 0), (0, 0), (0, Lx - NL)))               # (n_steps, Cin, Lx)

    # Flattened weight (k-major, cin-minor) matches the cols row ordering.
    w2 = jnp.transpose(w, (0, 2, 1)).reshape(Cout, K * Cin)              # (Cout, K*Cin)
    b2 = b.reshape(Cout, 1)

    kernel = functools.partial(_conv1d_tanh_kernel, K=K, Cin=Cin, NL=NL)

    out_folded = pl.pallas_call(
        kernel,
        out_shape=jax.ShapeDtypeStruct((Cout, n_steps * NL), x.dtype),
        grid=(n_steps,),
        in_specs=[
            pl.BlockSpec((1, Cin, Lx), lambda i: (i, 0, 0)),
            pl.BlockSpec((Cout, K * Cin), lambda i: (0, 0)),
            pl.BlockSpec((Cout, 1), lambda i: (0, 0)),
        ],
        out_specs=pl.BlockSpec((Cout, NL), lambda i: (0, i)),
        scratch_shapes=[pltpu.VMEM((K * Cin, NL), jnp.float32)],
        compiler_params=pltpu.CompilerParams(
            dimension_semantics=("parallel",),
        ),
    )(x_blk, w2, b2)

    # Unfold lanes back to (B, Cout, L_out); junk lanes [L_out, Lp) are dropped.
    out = out_folded.reshape(Cout, B, Lp).transpose(1, 0, 2)[:, :, :L_out]
    return out


def _reference(x, w, b):
    # Pure-JAX reference (lax conv, NCL layout) for correctness check.
    out = lax.conv_general_dilated(
        x, w, window_strides=(1,), padding=((3, 3),),
        dimension_numbers=("NCH", "OIH", "NCH"),
        precision=lax.Precision.HIGHEST,
    )
    return jnp.tanh(out + b[None, :, None])


if __name__ == "__main__":
    key = jax.random.PRNGKey(0)
    kx, kw, kb = jax.random.split(key, 3)

    B, Cin, L = 10, 32, 230        # matches the PyTorch spec: torch.randn(10, 32, 230)
    Cout, K = 64, 7

    x = jax.random.normal(kx, (B, Cin, L), dtype=jnp.float32)
    # Deterministic params mimicking PyTorch Conv1d default init range.
    bound = 1.0 / (Cin * K) ** 0.5
    w = jax.random.uniform(kw, (Cout, Cin, K), jnp.float32, -bound, bound)
    b = jax.random.uniform(kb, (Cout,), jnp.float32, -bound, bound)

    out = jax.block_until_ready(jax.jit(conv1d_tanh)(x, w, b))
    assert out.shape == (B, Cout, L), out.shape

    ref = jax.block_until_ready(_reference(x, w, b))
    # Tolerance covers MXU f32-emulation / XLA conv precision differences across
    # TPU generations; any structural bug (tap shift, weight layout, bias) would
    # produce O(0.1..1) errors, far above this threshold.
    assert jnp.allclose(out, ref, atol=5e-3, rtol=5e-3), \
        float(jnp.max(jnp.abs(out - ref)))

    print("KERNEL_OK")
</pallas_src>

<mosaic_0001>
module attributes {stable_mosaic.version = 11 : i64} {
  func.func @_conv1d_tanh_kernel(%arg0: i32, %arg1: memref<1x32x1408xf32, #tpu.memory_space<vmem>>, %arg2: memref<64x224xf32, #tpu.memory_space<vmem>>, %arg3: memref<64x1xf32, #tpu.memory_space<vmem>>, %arg4: memref<64x1280xf32, #tpu.memory_space<vmem>>, %arg5: memref<224x1280xf32, #tpu.memory_space<vmem>>) attributes {dimension_semantics = [#tpu.dimension_semantics<parallel>], iteration_bounds = array<i64: 2>, scalar_prefetch = 0 : i64, scratch_operands = 1 : i64, tpu.core_type = #tpu.core_type<tc>, window_params = [{transform_indices = @transform_0, window_bounds = array<i64: 1, 32, 1408>}, {pipeline_mode = #tpu.pipeline_mode<synchronous>, transform_indices = @transform_1, window_bounds = array<i64: 64, 224>}, {pipeline_mode = #tpu.pipeline_mode<synchronous>, transform_indices = @transform_2, window_bounds = array<i64: 64, 1>}, {transform_indices = @transform_3, window_bounds = array<i64: 64, 1280>}]} {
    %c0 = arith.constant 0 : index
    %c0_0 = arith.constant 0 : index
    %c0_1 = arith.constant 0 : index
    %0 = vector.load %arg1[%c0, %c0_0, %c0_1] : memref<1x32x1408xf32, #tpu.memory_space<vmem>>, vector<1x32x1280xf32>
    %1 = vector.shape_cast %0 : vector<1x32x1280xf32> to vector<32x1280xf32>
    %c0_2 = arith.constant 0 : index
    %c0_3 = arith.constant 0 : index
    %2 = vector.load %arg5[%c0_2, %c0_3] : memref<224x1280xf32, #tpu.memory_space<vmem>>, vector<32x1280xf32>
    tpu.vector_store %arg5[%c0_2, %c0_3], %1 {strides = array<i32>} : memref<224x1280xf32, #tpu.memory_space<vmem>>, vector<32x1280xf32>,
    %c0_4 = arith.constant 0 : index
    %c0_5 = arith.constant 0 : index
    %c1 = arith.constant 1 : index
    %3 = vector.load %arg1[%c0_4, %c0_5, %c1] : memref<1x32x1408xf32, #tpu.memory_space<vmem>>, vector<1x32x1280xf32>
    %4 = vector.shape_cast %3 : vector<1x32x1280xf32> to vector<32x1280xf32>
    %c32 = arith.constant 32 : index
    %c0_6 = arith.constant 0 : index
    %5 = vector.load %arg5[%c32, %c0_6] : memref<224x1280xf32, #tpu.memory_space<vmem>>, vector<32x1280xf32>
    tpu.vector_store %arg5[%c32, %c0_6], %4 {strides = array<i32>} : memref<224x1280xf32, #tpu.memory_space<vmem>>, vector<32x1280xf32>,
    %c0_7 = arith.constant 0 : index
    %c0_8 = arith.constant 0 : index
    %c2 = arith.constant 2 : index
    %6 = vector.load %arg1[%c0_7, %c0_8, %c2] : memref<1x32x1408xf32, #tpu.memory_space<vmem>>, vector<1x32x1280xf32>
    %7 = vector.shape_cast %6 : vector<1x32x1280xf32> to vector<32x1280xf32>
    %c64 = arith.constant 64 : index
    %c0_9 = arith.constant 0 : index
    %8 = vector.load %arg5[%c64, %c0_9] : memref<224x1280xf32, #tpu.memory_space<vmem>>, vector<32x1280xf32>
    tpu.vector_store %arg5[%c64, %c0_9], %7 {strides = array<i32>} : memref<224x1280xf32, #tpu.memory_space<vmem>>, vector<32x1280xf32>,
    %c0_10 = arith.constant 0 : index
    %c0_11 = arith.constant 0 : index
    %c3 = arith.constant 3 : index
    %9 = vector.load %arg1[%c0_10, %c0_11, %c3] : memref<1x32x1408xf32, #tpu.memory_space<vmem>>, vector<1x32x1280xf32>
    %10 = vector.shape_cast %9 : vector<1x32x1280xf32> to vector<32x1280xf32>
    %c96 = arith.constant 96 : index
    %c0_12 = arith.constant 0 : index
    %11 = vector.load %arg5[%c96, %c0_12] : memref<224x1280xf32, #tpu.memory_space<vmem>>, vector<32x1280xf32>
    tpu.vector_store %arg5[%c96, %c0_12], %10 {strides = array<i32>} : memref<224x1280xf32, #tpu.memory_space<vmem>>, vector<32x1280xf32>,
    %c0_13 = arith.constant 0 : index
    %c0_14 = arith.constant 0 : index
    %c4 = arith.constant 4 : index
    %12 = vector.load %arg1[%c0_13, %c0_14, %c4] : memref<1x32x1408xf32, #tpu.memory_space<vmem>>, vector<1x32x1280xf32>
    %13 = vector.shape_cast %12 : vector<1x32x1280xf32> to vector<32x1280xf32>
    %c128 = arith.constant 128 : index
    %c0_15 = arith.constant 0 : index
    %14 = vector.load %arg5[%c128, %c0_15] : memref<224x1280xf32, #tpu.memory_space<vmem>>, vector<32x1280xf32>
    tpu.vector_store %arg5[%c128, %c0_15], %13 {strides = array<i32>} : memref<224x1280xf32, #tpu.memory_space<vmem>>, vector<32x1280xf32>,
    %c0_16 = arith.constant 0 : index
    %c0_17 = arith.constant 0 : index
    %c5 = arith.constant 5 : index
    %15 = vector.load %arg1[%c0_16, %c0_17, %c5] : memref<1x32x1408xf32, #tpu.memory_space<vmem>>, vector<1x32x1280xf32>
    %16 = vector.shape_cast %15 : vector<1x32x1280xf32> to vector<32x1280xf32>
    %c160 = arith.constant 160 : index
    %c0_18 = arith.constant 0 : index
    %17 = vector.load %arg5[%c160, %c0_18] : memref<224x1280xf32, #tpu.memory_space<vmem>>, vector<32x1280xf32>
    tpu.vector_store %arg5[%c160, %c0_18], %16 {strides = array<i32>} : memref<224x1280xf32, #tpu.memory_space<vmem>>, vector<32x1280xf32>,
    %c0_19 = arith.constant 0 : index
    %c0_20 = arith.constant 0 : index
    %c6 = arith.constant 6 : index
    %18 = vector.load %arg1[%c0_19, %c0_20, %c6] : memref<1x32x1408xf32, #tpu.memory_space<vmem>>, vector<1x32x1280xf32>
    %19 = vector.shape_cast %18 : vector<1x32x1280xf32> to vector<32x1280xf32>
    %c192 = arith.constant 192 : index
    %c0_21 = arith.constant 0 : index
    %20 = vector.load %arg5[%c192, %c0_21] : memref<224x1280xf32, #tpu.memory_space<vmem>>, vector<32x1280xf32>
    tpu.vector_store %arg5[%c192, %c0_21], %19 {strides = array<i32>} : memref<224x1280xf32, #tpu.memory_space<vmem>>, vector<32x1280xf32>,
    %c0_22 = arith.constant 0 : index
    %c0_23 = arith.constant 0 : index
    %21 = vector.load %arg2[%c0_22, %c0_23] : memref<64x224xf32, #tpu.memory_space<vmem>>, vector<64x224xf32>
    %c0_24 = arith.constant 0 : index
    %c0_25 = arith.constant 0 : index
    %22 = vector.load %arg5[%c0_24, %c0_25] : memref<224x1280xf32, #tpu.memory_space<vmem>>, vector<224x1280xf32>
    %cst = arith.constant dense<0.000000e+00> : vector<64x1280xf32>
    %23 = tpu.matmul %21, %22, %cst {dimension_numbers = #tpu.dot_dimension_numbers<[1], [0], [0], [1], [0, 0, 1, 1], [], []>} : vector<64x224xf32>, vector<224x1280xf32>, vector<64x1280xf32> -> vector<64x1280xf32>
    %c0_26 = arith.constant 0 : index
    %c0_27 = arith.constant 0 : index
    %24 = vector.load %arg3[%c0_26, %c0_27] : memref<64x1xf32, #tpu.memory_space<vmem>>, vector<64x1xf32>
    %25 = vector.broadcast %24 : vector<64x1xf32> to vector<64x1280xf32>
    %26 = arith.addf %23, %25 : vector<64x1280xf32>
    %27 = math.tanh %26 : vector<64x1280xf32>
    %c0_28 = arith.constant 0 : index
    %c0_29 = arith.constant 0 : index
    %28 = vector.load %arg4[%c0_28, %c0_29] : memref<64x1280xf32, #tpu.memory_space<vmem>>, vector<64x1280xf32>
    tpu.vector_store %arg4[%c0_28, %c0_29], %27 {strides = array<i32>} : memref<64x1280xf32, #tpu.memory_space<vmem>>, vector<64x1280xf32>,
    return
  }
  func.func @transform_0(%arg0: i32) -> (i32, i32, i32) {
    %c0_i32 = arith.constant 0 : i32
    %c0_i32_0 = arith.constant 0 : i32
    %c0_i32_1 = arith.constant 0 : i32
    return %arg0, %c0_i32, %c0_i32_0 : i32, i32, i32
  }
  func.func @transform_1(%arg0: i32) -> (i32, i32) {
    %c0_i32 = arith.constant 0 : i32
    %c0_i32_0 = arith.constant 0 : i32
    %c0_i32_1 = arith.constant 0 : i32
    return %c0_i32, %c0_i32_0 : i32, i32
  }
  func.func @transform_2(%arg0: i32) -> (i32, i32) {
    %c0_i32 = arith.constant 0 : i32
    %c0_i32_0 = arith.constant 0 : i32
    %c0_i32_1 = arith.constant 0 : i32
    return %c0_i32, %c0_i32_0 : i32, i32
  }
  func.func @transform_3(%arg0: i32) -> (i32, i32) {
    %c0_i32 = arith.constant 0 : i32
    %c0_i32_0 = arith.constant 0 : i32
    return %c0_i32, %arg0 : i32, i32
  }
}

</mosaic_0001>

<llo_original>
// kernel: conv1d_tanh.1
$region0: #{conv1d_tanh.1}
  #allocation0 [shape = 'u32[]', space=smem, size = 0x4, offset = 0x4, fixed_abs, tag = 'smem constant byte address 0x4 - core index']
  #allocation1 [shape = 'u32[72,128]{1,0:T(1,128)}', space=vmem, size = 0x9000, scoped, tag = 'internal scratch']
  #allocation2 [shape = 'f32[224,1280]{1,0:T(8,128)}', space=vmem, size = 0x118000, scoped, tag = 'scratch operand']
  %s0 = inlined_call_operand.vmem [shape: f32[2,32,1408], index: 0, kind: input, shape index: {}]
  %s1 = inlined_call_operand.vmem [shape: f32[64,224], index: 1, kind: input, shape index: {}]
  %s2 = inlined_call_operand.vmem [shape: f32[64,1], index: 2, kind: input, shape index: {}]
  %s3 = inlined_call_operand.vmem [shape: f32[64,2560], index: 3, kind: output, shape index: {}]
  %s4 = sld [smem:[#allocation0]]
  $region64: #{conv1d_tanh.1} parent=0
    _
  %s6 = ssub.s32 1, %s4
  %s7 = scalar_select 0, %s6, %s4
  $region1: #{conv1d_tanh.1} parent=0
    #allocation3 [shape = 'u8[655360]{0}', space=vmem, size = 0xa0000, scoped, tag = 'output window, operand 0']
    loop: start=0, step=1, limit=4
    $region2: #{conv1d_tanh.1} parent=1 // loop_pre_header
      _
    $region3: #{conv1d_tanh.1} parent=1 // loop_header
      %s9 = sphi 0, %s13
      %p10 = scmp.ge.s32.totalorder %s9, 4
      %s19 = sphi 0, %s21
      %s22 = sphi 0, %s19
      %s23 = sphi 0, %s22
      %s39 = sphi 0, %s23
      %s43 = sphi 0, %s43
      %s45 = sphi 0, %s43
      %s46 = sphi 0, %s45
      %s60 = sphi 0, %s46
      %s64 = sphi 0, %s64
      %s66 = sphi 0, %s64
      %s67 = sphi 0, %s66
      %s81 = sphi 0, %s67
      %s87 = sphi 0, %s89
      %s90 = sphi 0, %s87
      %s91 = sphi 0, %s90
      %s107 = sphi 0, %s91
    $region4: #{conv1d_tanh.1} parent=1 // loop_header_branch
      %12 = sbr.rel (%p10) target = $region8
    $region5: #{conv1d_tanh.1} parent=1 // loop_body
      %s14 = ssub.s32 %s9, 1
      %s15 = ssub.s32 %s9, 2
      %s16 = sadd.s32 %s9, 1
      %s17 = ssub.s32 %s9, %s16
      %p18 = scmp.eq.s32.totalorder %s17, 0
      %s20 = sadd.s32 %s19, 1
      %s21 = scalar_select %p18, %s19, %s20
      %p24 = pneg %p18
      %p25 = scmp.eq.s32.totalorder %s9, 1
      %p26 = por %p24, %p25
      %p27 = scmp.ne.s32.totalorder %s19, %s22
      %p28 = scmp.eq.s32.totalorder %s9, 0
      %p29 = por %p27, %p28
      %p30 = scmp.ne.s32.totalorder %s19, %s22
      %p31 = scmp.eq.s32.totalorder %s14, 1
      %p32 = por %p30, %p31
      %p33 = scmp.ne.s32.totalorder %s22, %s23
      %p34 = scmp.eq.s32.totalorder %s14, 0
      %p35 = por %p33, %p34
      %p36 = scmp.ne.s32.totalorder %s22, %s23
      %p37 = scmp.eq.s32.totalorder %s15, 1
      %p38 = por %p36, %p37
      %p40 = scmp.ne.s32.totalorder %s23, %s39
      %p41 = scmp.eq.s32.totalorder %s15, 0
      %p42 = por %p40, %p41
      %s44 = sadd.s32 %s43, 1
      %p47 = scmp.eq.s32.totalorder %s9, 1
      %p48 = scmp.ne.s32.totalorder %s43, %s45
      %p49 = scmp.eq.s32.totalorder %s9, 0
      %p50 = por %p48, %p49
      %p51 = scmp.ne.s32.totalorder %s43, %s45
      %p52 = scmp.eq.s32.totalorder %s14, 1
      %p53 = por %p51, %p52
      %p54 = scmp.ne.s32.totalorder %s45, %s46
      %p55 = scmp.eq.s32.totalorder %s14, 0
      %p56 = por %p54, %p55
      %p57 = scmp.ne.s32.totalorder %s45, %s46
      %p58 = scmp.eq.s32.totalorder %s15, 1
      %p59 = por %p57, %p58
      %p61 = scmp.ne.s32.totalorder %s46, %s60
      %p62 = scmp.eq.s32.totalorder %s15, 0
      %p63 = por %p61, %p62
      %s65 = sadd.s32 %s64, 1
      %p68 = scmp.eq.s32.totalorder %s9, 1
      %p69 = scmp.ne.s32.totalorder %s64, %s66
      %p70 = scmp.eq.s32.totalorder %s9, 0
      %p71 = por %p69, %p70
      %p72 = scmp.ne.s32.totalorder %s64, %s66
      %p73 = scmp.eq.s32.totalorder %s14, 1
      %p74 = por %p72, %p73
      %p75 = scmp.ne.s32.totalorder %s66, %s67
      %p76 = scmp.eq.s32.totalorder %s14, 0
      %p77 = por %p75, %p76
      %p78 = scmp.ne.s32.totalorder %s66, %s67
      %p79 = scmp.eq.s32.totalorder %s15, 1
      %p80 = por %p78, %p79
      %p82 = scmp.ne.s32.totalorder %s67, %s81
      %p83 = scmp.eq.s32.totalorder %s15, 0
      %p84 = por %p82, %p83
      %s85 = ssub.s32 %s9, %s16
      %p86 = scmp.eq.s32.totalorder %s85, 0
      %s88 = sadd.s32 %s87, 1
      %s89 = scalar_select %p86, %s87, %s88
      %p92 = pneg %p86
      %p93 = scmp.eq.s32.totalorder %s9, 1
      %p94 = por %p92, %p93
      %p95 = scmp.ne.s32.totalorder %s87, %s90
      %p96 = scmp.eq.s32.totalorder %s9, 0
      %p97 = por %p95, %p96
      %p98 = scmp.ne.s32.totalorder %s87, %s90
      %p99 = scmp.eq.s32.totalorder %s14, 1
      %p100 = por %p98, %p99
      %p101 = scmp.ne.s32.totalorder %s90, %s91
      %p102 = scmp.eq.s32.totalorder %s14, 0
      %p103 = por %p101, %p102
      %p104 = scmp.ne.s32.totalorder %s90, %s91
      %p105 = scmp.eq.s32.totalorder %s15, 1
      %p106 = por %p104, %p105
      %p108 = scmp.ne.s32.totalorder %s91, %s107
      %p109 = scmp.eq.s32.totalorder %s15, 0
      %p110 = por %p108, %p109
      %p111 = scmp.le.s32.totalorder 1, %s9
      %p112 = scmp.lt.s32.totalorder %s9, 3
      %p113 = pnand %p111, %p112
      %p114 = pneg %p113
      // Predicated region
      $region9: #{conv1d_tanh.1} parent=5 // pred_check
        _
      $region10: #{conv1d_tanh.1} parent=5 // pred_check_branch
        %116 = sbr.rel (%p113) target = $region12
      $region11: #{conv1d_tanh.1} parent=5 // pred_region
        %s117 = ssub.s32 %s9, 1
        // Predicated region
        $region13: #{conv1d_tanh.1} parent=11 // pred_check
          %p118 = pneg %p56
        $region14: #{conv1d_tanh.1} parent=11 // pred_check_branch
          %120 = sbr.rel (%p118) target = $region16
        $region15: #{conv1d_tanh.1} parent=11 // pred_region
          _
        $region16: #{conv1d_tanh.1} parent=11 // pred_fallthru
          _
        // Predicated region
        $region17: #{conv1d_tanh.1} parent=11 // pred_check
          %p121 = pneg %p77
        $region18: #{conv1d_tanh.1} parent=11 // pred_check_branch
          %123 = sbr.rel (%p121) target = $region20
        $region19: #{conv1d_tanh.1} parent=11 // pred_region
          _
        $region20: #{conv1d_tanh.1} parent=11 // pred_fallthru
          _
      $region12: #{conv1d_tanh.1} parent=5 // pred_fallthru
        _
      %p124 = scmp.lt.s32.totalorder %s9, 2
      // Predicated region
      $region21: #{conv1d_tanh.1} parent=5 // pred_check
        %p125 = pneg %p124
      $region22: #{conv1d_tanh.1} parent=5 // pred_check_branch
        %127 = sbr.rel (%p125) target = $region24
      $region23: #{conv1d_tanh.1} parent=5 // pred_region
        // Predicated region
        $region25: #{conv1d_tanh.1} parent=23 // pred_check
          %p128 = pneg %p29
        $region26: #{conv1d_tanh.1} parent=23 // pred_check_branch
          %130 = sbr.rel (%p128) target = $region28
        $region27: #{conv1d_tanh.1} parent=23 // pred_region
          %p131 = scmp.lt.s32.totalorder %s9, 1
          %s132 = scalar_select %p131, %s9, 1
          %s133 = smul.addr %s132, 44
          %s134 = smul.addr %s133, 8
          %s135 = scalar_lea.vmem %s0, %s134
        $region28: #{conv1d_tanh.1} parent=23 // pred_fallthru
          _
      $region24: #{conv1d_tanh.1} parent=5 // pred_fallthru
        _
      %p136 = scmp.le.s32.totalorder 1, %s9
      %p137 = scmp.lt.s32.totalorder %s9, 3
      %p138 = pnand %p136, %p137
      %p139 = pneg %p138
      // Predicated region
      $region29: #{conv1d_tanh.1} parent=5 // pred_check
        _
      $region30: #{conv1d_tanh.1} parent=5 // pred_check_branch
        %141 = sbr.rel (%p138) target = $region32
      $region31: #{conv1d_tanh.1} parent=5 // pred_region
        %s142 = ssub.s32 %s9, 1
        %p143 = scmp.lt.s32.totalorder %s14, 1
        %s144 = scalar_select %p143, %s14, 1
        %s145 = smul.addr %s144, 44
        %s146 = smul.addr %s145, 8
        %s147 = scalar_lea.vmem %s0, %s146
        %p148 = pneg %p35
        %p149 = pneg %p32
        %p150 = pneg %p56
        %p151 = pneg %p53
        %p152 = pneg %p77
        %p153 = pneg %p74
        %p154 = pneg %p103
        %p155 = pneg %p100
        %s156 = sand.u32 %s90, 1
        %s157 = sand.u32 %s90, 1
        %s158 = smul.addr %s157, 640
        %s159 = scalar_lea.vmem [#allocation3], %s158
        %p160 = scmp.lt.s32.totalorder %s14, 1
        %s161 = scalar_select %p160, %s14, 1
        %s162 = smul.addr %s161, 44
        %s163 = smul.addr %s162, 8
        %s164 = scalar_lea.vmem %s0, %s163
        %s165 = smul.u32 10, %s14
        %v166 = vld [vmem:[%s164] sm:$0xff]
        %v167 = vld [vmem:[%s164 + $0x8] sm:$0xff]
        %v168 = vld [vmem:[%s164 + $0x10] sm:$0xff]
        %v169 = vld [vmem:[%s164 + $0x18] sm:$0xff]
        %v170 = vld [vmem:[%s164 + $0x20] sm:$0xff]
        %v171 = vld [vmem:[%s164 + $0x28] sm:$0xff]
        %v172 = vld [vmem:[%s164 + $0x30] sm:$0xff]
        %v173 = vld [vmem:[%s164 + $0x38] sm:$0xff]
        %v174 = vld [vmem:[%s164 + $0x40] sm:$0xff]
        %v175 = vld [vmem:[%s164 + $0x48] sm:$0xff]
        %v176 = vld [vmem:[%s164 + $0x58] sm:$0xff]
        %v177 = vld [vmem:[%s164 + $0x60] sm:$0xff]
        %v178 = vld [vmem:[%s164 + $0x68] sm:$0xff]
        %v179 = vld [vmem:[%s164 + $0x70] sm:$0xff]
        %v180 = vld [vmem:[%s164 + $0x78] sm:$0xff]
        %v181 = vld [vmem:[%s164 + $0x80] sm:$0xff]
        %v182 = vld [vmem:[%s164 + $0x88] sm:$0xff]
        %v183 = vld [vmem:[%s164 + $0x90] sm:$0xff]
        %v184 = vld [vmem:[%s164 + $0x98] sm:$0xff]
        %v185 = vld [vmem:[%s164 + $0xa0] sm:$0xff]
        %v186 = vld [vmem:[%s164 + $0xb0] sm:$0xff]
        %v187 = vld [vmem:[%s164 + $0xb8] sm:$0xff]
        %v188 = vld [vmem:[%s164 + $0xc0] sm:$0xff]
        %v189 = vld [vmem:[%s164 + $0xc8] sm:$0xff]
        %v190 = vld [vmem:[%s164 + $0xd0] sm:$0xff]
        %v191 = vld [vmem:[%s164 + $0xd8] sm:$0xff]
        %v192 = vld [vmem:[%s164 + $0xe0] sm:$0xff]
        %v193 = vld [vmem:[%s164 + $0xe8] sm:$0xff]
        %v194 = vld [vmem:[%s164 + $0xf0] sm:$0xff]
        %v195 = vld [vmem:[%s164 + $0xf8] sm:$0xff]
        %v196 = vld [vmem:[%s164 + $0x108] sm:$0xff]
        %v197 = vld [vmem:[%s164 + $0x110] sm:$0xff]
        %v198 = vld [vmem:[%s164 + $0x118] sm:$0xff]
        %v199 = vld [vmem:[%s164 + $0x120] sm:$0xff]
        %v200 = vld [vmem:[%s164 + $0x128] sm:$0xff]
        %v201 = vld [vmem:[%s164 + $0x130] sm:$0xff]
        %v202 = vld [vmem:[%s164 + $0x138] sm:$0xff]
        %v203 = vld [vmem:[%s164 + $0x140] sm:$0xff]
        %v204 = vld [vmem:[%s164 + $0x148] sm:$0xff]
        %v205 = vld [vmem:[%s164 + $0x150] sm:$0xff]
        %206 = vst [vmem:[#allocation2] sm:$0xff] %v166
        %207 = vst [vmem:[#allocation2 + $0x8] sm:$0xff] %v167
        %208 = vst [vmem:[#allocation2 + $0x10] sm:$0xff] %v168
        %209 = vst [vmem:[#allocation2 + $0x18] sm:$0xff] %v169
        %210 = vst [vmem:[#allocation2 + $0x20] sm:$0xff] %v170
        %211 = vst [vmem:[#allocation2 + $0x28] sm:$0xff] %v171
        %212 = vst [vmem:[#allocation2 + $0x30] sm:$0xff] %v172
        %213 = vst [vmem:[#allocation2 + $0x38] sm:$0xff] %v173
        %214 = vst [vmem:[#allocation2 + $0x40] sm:$0xff] %v174
        %215 = vst [vmem:[#allocation2 + $0x48] sm:$0xff] %v175
        %216 = vst [vmem:[#allocation2 + $0x50] sm:$0xff] %v176
        %217 = vst [vmem:[#allocation2 + $0x58] sm:$0xff] %v177
        %218 = vst [vmem:[#allocation2 + $0x60] sm:$0xff] %v178
        %219 = vst [vmem:[#allocation2 + $0x68] sm:$0xff] %v179
        %220 = vst [vmem:[#allocation2 + $0x70] sm:$0xff] %v180
        %221 = vst [vmem:[#allocation2 + $0x78] sm:$0xff] %v181
        %222 = vst [vmem:[#allocation2 + $0x80] sm:$0xff] %v182
        %223 = vst [vmem:[#allocation2 + $0x88] sm:$0xff] %v183
        %224 = vst [vmem:[#allocation2 + $0x90] sm:$0xff] %v184
        %225 = vst [vmem:[#allocation2 + $0x98] sm:$0xff] %v185
        %226 = vst [vmem:[#allocation2 + $0xa0] sm:$0xff] %v186
        %227 = vst [vmem:[#allocation2 + $0xa8] sm:$0xff] %v187
        %228 = vst [vmem:[#allocation2 + $0xb0] sm:$0xff] %v188
        %229 = vst [vmem:[#allocation2 + $0xb8] sm:$0xff] %v189
        %230 = vst [vmem:[#allocation2 + $0xc0] sm:$0xff] %v190
        %231 = vst [vmem:[#allocation2 + $0xc8] sm:$0xff] %v191
        %232 = vst [vmem:[#allocation2 + $0xd0] sm:$0xff] %v192
        %233 = vst [vmem:[#allocation2 + $0xd8] sm:$0xff] %v193
        %234 = vst [vmem:[#allocation2 + $0xe0] sm:$0xff] %v194
        %235 = vst [vmem:[#allocation2 + $0xe8] sm:$0xff] %v195
        %236 = vst [vmem:[#allocation2 + $0xf0] sm:$0xff] %v196
        %237 = vst [vmem:[#allocation2 + $0xf8] sm:$0xff] %v197
        %238 = vst [vmem:[#allocation2 + $0x100] sm:$0xff] %v198
        %239 = vst [vmem:[#allocation2 + $0x108] sm:$0xff] %v199
        %240 = vst [vmem:[#allocation2 + $0x110] sm:$0xff] %v200
        %241 = vst [vmem:[#allocation2 + $0x118] sm:$0xff] %v201
        %242 = vst [vmem:[#allocation2 + $0x120] sm:$0xff] %v202
        %243 = vst [vmem:[#allocation2 + $0x128] sm:$0xff] %v203
        %244 = vst [vmem:[#allocation2 + $0x130] sm:$0xff] %v204
        %245 = vst [vmem:[#allocation2 + $0x138] sm:$0xff] %v205
        %v246 = vld [vmem:[%s164] sm:$0xff]
        %v247 = vld [vmem:[%s164 + $0x8] sm:$0xff]
        %v248 = vld [vmem:[%s164 + $0x10] sm:$0xff]
        %v249 = vld [vmem:[%s164 + $0x18] sm:$0xff]
        %v250 = vld [vmem:[%s164 + $0x20] sm:$0xff]
        %v251 = vld [vmem:[%s164 + $0x28] sm:$0xff]
        %v252 = vld [vmem:[%s164 + $0x30] sm:$0xff]
        %v253 = vld [vmem:[%s164 + $0x38] sm:$0xff]
        %v254 = vld [vmem:[%s164 + $0x40] sm:$0xff]
        %v255 = vld [vmem:[%s164 + $0x48] sm:$0xff]
        %v256 = vld [vmem:[%s164 + $0x50] sm:$0xff]
        %v257 = vld [vmem:[%s164 + $0x58] sm:$0xff]
        %v258 = vld [vmem:[%s164 + $0x60] sm:$0xff]
        %v259 = vld [vmem:[%s164 + $0x68] sm:$0xff]
        %v260 = vld [vmem:[%s164 + $0x70] sm:$0xff]
        %v261 = vld [vmem:[%s164 + $0x78] sm:$0xff]
        %v262 = vld [vmem:[%s164 + $0x80] sm:$0xff]
        %v263 = vld [vmem:[%s164 + $0x88] sm:$0xff]
        %v264 = vld [vmem:[%s164 + $0x90] sm:$0xff]
        %v265 = vld [vmem:[%s164 + $0x98] sm:$0xff]
        %v266 = vld [vmem:[%s164 + $0xa0] sm:$0xff]
        %v267 = vld [vmem:[%s164 + $0xa8] sm:$0xff]
        %v268 = vld [vmem:[%s164 + $0xb0] sm:$0xff]
        %v269 = vld [vmem:[%s164 + $0xb8] sm:$0xff]
        %v270 = vld [vmem:[%s164 + $0xc0] sm:$0xff]
        %v271 = vld [vmem:[%s164 + $0xc8] sm:$0xff]
        %v272 = vld [vmem:[%s164 + $0xd0] sm:$0xff]
        %v273 = vld [vmem:[%s164 + $0xd8] sm:$0xff]
        %v274 = vld [vmem:[%s164 + $0xe0] sm:$0xff]
        %v275 = vld [vmem:[%s164 + $0xe8] sm:$0xff]
        %v276 = vld [vmem:[%s164 + $0xf0] sm:$0xff]
        %v277 = vld [vmem:[%s164 + $0xf8] sm:$0xff]
        %v278 = vld [vmem:[%s164 + $0x100] sm:$0xff]
        %v279 = vld [vmem:[%s164 + $0x108] sm:$0xff]
        %v280 = vld [vmem:[%s164 + $0x110] sm:$0xff]
        %v281 = vld [vmem:[%s164 + $0x118] sm:$0xff]
        %v282 = vld [vmem:[%s164 + $0x120] sm:$0xff]
        %v283 = vld [vmem:[%s164 + $0x128] sm:$0xff]
        %v284 = vld [vmem:[%s164 + $0x130] sm:$0xff]
        %v285 = vld [vmem:[%s164 + $0x138] sm:$0xff]
        %v286 = vld [vmem:[%s164 + $0x140] sm:$0xff]
        %v287 = vld [vmem:[%s164 + $0x148] sm:$0xff]
        %v288 = vld [vmem:[%s164 + $0x150] sm:$0xff]
        %v289 = vld [vmem:[%s164 + $0x158] sm:$0xff]
        %334 = vrot.lane.b32.xlu0 %v246, 127
        %v335 = vpop.permute.xlu0 %334
        %336 = vrot.lane.b32.xlu0 %v247, 127
        %v337 = vpop.permute.xlu0 %336
        %338 = vrot.lane.b32.xlu0 %v248, 127
        %v339 = vpop.permute.xlu0 %338
        %340 = vrot.lane.b32.xlu0 %v249, 127
        %v341 = vpop.permute.xlu0 %340
        %342 = vrot.lane.b32.xlu0 %v250, 127
        %v343 = vpop.permute.xlu0 %342
        %344 = vrot.lane.b32.xlu0 %v251, 127
        %v345 = vpop.permute.xlu0 %344
        %346 = vrot.lane.b32.xlu0 %v252, 127
        %v347 = vpop.permute.xlu0 %346
        %348 = vrot.lane.b32.xlu0 %v253, 127
        %v349 = vpop.permute.xlu0 %348
        %350 = vrot.lane.b32.xlu0 %v254, 127
        %v351 = vpop.permute.xlu0 %350
        %352 = vrot.lane.b32.xlu0 %v255, 127
        %v353 = vpop.permute.xlu0 %352
        %354 = vrot.lane.b32.xlu0 %v256, 127
        %v355 = vpop.permute.xlu0 %354
        %356 = vrot.lane.b32.xlu0 %v257, 127
        %v357 = vpop.permute.xlu0 %356
        %358 = vrot.lane.b32.xlu0 %v258, 127
        %v359 = vpop.permute.xlu0 %358
        %360 = vrot.lane.b32.xlu0 %v259, 127
        %v361 = vpop.permute.xlu0 %360
        %362 = vrot.lane.b32.xlu0 %v260, 127
        %v363 = vpop.permute.xlu0 %362
        %364 = vrot.lane.b32.xlu0 %v261, 127
        %v365 = vpop.permute.xlu0 %364
        %366 = vrot.lane.b32.xlu0 %v262, 127
        %v367 = vpop.permute.xlu0 %366
        %368 = vrot.lane.b32.xlu0 %v263, 127
        %v369 = vpop.permute.xlu0 %368
        %370 = vrot.lane.b32.xlu0 %v264, 127
        %v371 = vpop.permute.xlu0 %370
        %372 = vrot.lane.b32.xlu0 %v265, 127
        %v373 = vpop.permute.xlu0 %372
        %374 = vrot.lane.b32.xlu0 %v266, 127
        %v375 = vpop.permute.xlu0 %374
        %376 = vrot.lane.b32.xlu0 %v267, 127
        %v377 = vpop.permute.xlu0 %376
        %378 = vrot.lane.b32.xlu0 %v268, 127
        %v379 = vpop.permute.xlu0 %378
        %380 = vrot.lane.b32.xlu0 %v269, 127
        %v381 = vpop.permute.xlu0 %380
        %382 = vrot.lane.b32.xlu0 %v270, 127
        %v383 = vpop.permute.xlu0 %382
        %384 = vrot.lane.b32.xlu0 %v271, 127
        %v385 = vpop.permute.xlu0 %384
        %386 = vrot.lane.b32.xlu0 %v272, 127
        %v387 = vpop.permute.xlu0 %386
        %388 = vrot.lane.b32.xlu0 %v273, 127
        %v389 = vpop.permute.xlu0 %388
        %390 = vrot.lane.b32.xlu0 %v274, 127
        %v391 = vpop.permute.xlu0 %390
        %392 = vrot.lane.b32.xlu0 %v275, 127
        %v393 = vpop.permute.xlu0 %392
        %394 = vrot.lane.b32.xlu0 %v276, 127
        %v395 = vpop.permute.xlu0 %394
        %396 = vrot.lane.b32.xlu0 %v277, 127
        %v397 = vpop.permute.xlu0 %396
        %398 = vrot.lane.b32.xlu0 %v278, 127
        %v399 = vpop.permute.xlu0 %398
        %400 = vrot.lane.b32.xlu0 %v279, 127
        %v401 = vpop.permute.xlu0 %400
        %402 = vrot.lane.b32.xlu0 %v280, 127
        %v403 = vpop.permute.xlu0 %402
        %404 = vrot.lane.b32.xlu0 %v281, 127
        %v405 = vpop.permute.xlu0 %404
        %406 = vrot.lane.b32.xlu0 %v282, 127
        %v407 = vpop.permute.xlu0 %406
        %408 = vrot.lane.b32.xlu0 %v283, 127
        %v409 = vpop.permute.xlu0 %408
        %410 = vrot.lane.b32.xlu0 %v284, 127
        %v411 = vpop.permute.xlu0 %410
        %412 = vrot.lane.b32.xlu0 %v285, 127
        %v413 = vpop.permute.xlu0 %412
        %414 = vrot.lane.b32.xlu0 %v286, 127
        %v415 = vpop.permute.xlu0 %414
        %416 = vrot.lane.b32.xlu0 %v287, 127
        %v417 = vpop.permute.xlu0 %416
        %418 = vrot.lane.b32.xlu0 %v288, 127
        %v419 = vpop.permute.xlu0 %418
        %420 = vrot.lane.b32.xlu0 %v289, 127
        %v421 = vpop.permute.xlu0 %420
        %vm422 = vcmask 1039360
        %v423 = vsel %vm422, %v335, %v337
        %v424 = vsel %vm422, %v337, %v339
        %v425 = vsel %vm422, %v339, %v341
        %v426 = vsel %vm422, %v341, %v343
        %v427 = vsel %vm422, %v343, %v345
        %v428 = vsel %vm422, %v345, %v347
        %v429 = vsel %vm422, %v347, %v349
        %v430 = vsel %vm422, %v349, %v351
        %v431 = vsel %vm422, %v351, %v353
        %v432 = vsel %vm422, %v353, %v355
        %v433 = vsel %vm422, %v357, %v359
        %v434 = vsel %vm422, %v359, %v361
        %v435 = vsel %vm422, %v361, %v363
        %v436 = vsel %vm422, %v363, %v365
        %v437 = vsel %vm422, %v365, %v367
        %v438 = vsel %vm422, %v367, %v369
        %v439 = vsel %vm422, %v369, %v371
        %v440 = vsel %vm422, %v371, %v373
        %v441 = vsel %vm422, %v373, %v375
        %v442 = vsel %vm422, %v375, %v377
        %v443 = vsel %vm422, %v379, %v381
        %v444 = vsel %vm422, %v381, %v383
        %v445 = vsel %vm422, %v383, %v385
        %v446 = vsel %vm422, %v385, %v387
        %v447 = vsel %vm422, %v387, %v389
        %v448 = vsel %vm422, %v389, %v391
        %v449 = vsel %vm422, %v391, %v393
        %v450 = vsel %vm422, %v393, %v395
        %v451 = vsel %vm422, %v395, %v397
        %v452 = vsel %vm422, %v397, %v399
        %v453 = vsel %vm422, %v401, %v403
        %v454 = vsel %vm422, %v403, %v405
        %v455 = vsel %vm422, %v405, %v407
        %v456 = vsel %vm422, %v407, %v409
        %v457 = vsel %vm422, %v409, %v411
        %v458 = vsel %vm422, %v411, %v413
        %v459 = vsel %vm422, %v413, %v415
        %v460 = vsel %vm422, %v415, %v417
        %v461 = vsel %vm422, %v417, %v419
        %v462 = vsel %vm422, %v419, %v421
        %503 = vst [vmem:[#allocation2 + $0x140] sm:$0xff] %v423
        %504 = vst [vmem:[#allocation2 + $0x148] sm:$0xff] %v424
        %505 = vst [vmem:[#allocation2 + $0x150] sm:$0xff] %v425
        %506 = vst [vmem:[#allocation2 + $0x158] sm:$0xff] %v426
        %507 = vst [vmem:[#allocation2 + $0x160] sm:$0xff] %v427
        %508 = vst [vmem:[#allocation2 + $0x168] sm:$0xff] %v428
        %509 = vst [vmem:[#allocation2 + $0x170] sm:$0xff] %v429
        %510 = vst [vmem:[#allocation2 + $0x178] sm:$0xff] %v430
        %511 = vst [vmem:[#allocation2 + $0x180] sm:$0xff] %v431
        %512 = vst [vmem:[#allocation2 + $0x188] sm:$0xff] %v432
        %513 = vst [vmem:[#allocation2 + $0x190] sm:$0xff] %v433
        %514 = vst [vmem:[#allocation2 + $0x198] sm:$0xff] %v434
        %515 = vst [vmem:[#allocation2 + $0x1a0] sm:$0xff] %v435
        %516 = vst [vmem:[#allocation2 + $0x1a8] sm:$0xff] %v436
        %517 = vst [vmem:[#allocation2 + $0x1b0] sm:$0xff] %v437
        %518 = vst [vmem:[#allocation2 + $0x1b8] sm:$0xff] %v438
        %519 = vst [vmem:[#allocation2 + $0x1c0] sm:$0xff] %v439
        %520 = vst [vmem:[#allocation2 + $0x1c8] sm:$0xff] %v440
        %521 = vst [vmem:[#allocation2 + $0x1d0] sm:$0xff] %v441
        %522 = vst [vmem:[#allocation2 + $0x1d8] sm:$0xff] %v442
        %523 = vst [vmem:[#allocation2 + $0x1e0] sm:$0xff] %v443
        %524 = vst [vmem:[#allocation2 + $0x1e8] sm:$0xff] %v444
        %525 = vst [vmem:[#allocation2 + $0x1f0] sm:$0xff] %v445
        %526 = vst [vmem:[#allocation2 + $0x1f8] sm:$0xff] %v446
        %527 = vst [vmem:[#allocation2 + $0x200] sm:$0xff] %v447
        %528 = vst [vmem:[#allocation2 + $0x208] sm:$0xff] %v448
        %529 = vst [vmem:[#allocation2 + $0x210] sm:$0xff] %v449
        %530 = vst [vmem:[#allocation2 + $0x218] sm:$0xff] %v450
        %531 = vst [vmem:[#allocation2 + $0x220] sm:$0xff] %v451
        %532 = vst [vmem:[#allocation2 + $0x228] sm:$0xff] %v452
        %533 = vst [vmem:[#allocation2 + $0x230] sm:$0xff] %v453
        %534 = vst [vmem:[#allocation2 + $0x238] sm:$0xff] %v454
        %535 = vst [vmem:[#allocation2 + $0x240] sm:$0xff] %v455
        %536 = vst [vmem:[#allocation2 + $0x248] sm:$0xff] %v456
        %537 = vst [vmem:[#allocation2 + $0x250] sm:$0xff] %v457
        %538 = vst [vmem:[#allocation2 + $0x258] sm:$0xff] %v458
        %539 = vst [vmem:[#allocation2 + $0x260] sm:$0xff] %v459
        %540 = vst [vmem:[#allocation2 + $0x268] sm:$0xff] %v460
        %541 = vst [vmem:[#allocation2 + $0x270] sm:$0xff] %v461
        %542 = vst [vmem:[#allocation2 + $0x278] sm:$0xff] %v462
        %v543 = vld [vmem:[%s164] sm:$0xff]
        %v544 = vld [vmem:[%s164 + $0x8] sm:$0xff]
        %v545 = vld [vmem:[%s164 + $0x10] sm:$0xff]
        %v546 = vld [vmem:[%s164 + $0x18] sm:$0xff]
        %v547 = vld [vmem:[%s164 + $0x20] sm:$0xff]
        %v548 = vld [vmem:[%s164 + $0x28] sm:$0xff]
        %v549 = vld [vmem:[%s164 + $0x30] sm:$0xff]
        %v550 = vld [vmem:[%s164 + $0x38] sm:$0xff]
        %v551 = vld [vmem:[%s164 + $0x40] sm:$0xff]
        %v552 = vld [vmem:[%s164 + $0x48] sm:$0xff]
        %v553 = vld [vmem:[%s164 + $0x50] sm:$0xff]
        %v554 = vld [vmem:[%s164 + $0x58] sm:$0xff]
        %v555 = vld [vmem:[%s164 + $0x60] sm:$0xff]
        %v556 = vld [vmem:[%s164 + $0x68] sm:$0xff]
        %v557 = vld [vmem:[%s164 + $0x70] sm:$0xff]
        %v558 = vld [vmem:[%s164 + $0x78] sm:$0xff]
        %v559 = vld [vmem:[%s164 + $0x80] sm:$0xff]
        %v560 = vld [vmem:[%s164 + $0x88] sm:$0xff]
        %v561 = vld [vmem:[%s164 + $0x90] sm:$0xff]
        %v562 = vld [vmem:[%s164 + $0x98] sm:$0xff]
        %v563 = vld [vmem:[%s164 + $0xa0] sm:$0xff]
        %v564 = vld [vmem:[%s164 + $0xa8] sm:$0xff]
        %v565 = vld [vmem:[%s164 + $0xb0] sm:$0xff]
        %v566 = vld [vmem:[%s164 + $0xb8] sm:$0xff]
        %v567 = vld [vmem:[%s164 + $0xc0] sm:$0xff]
        %v568 = vld [vmem:[%s164 + $0xc8] sm:$0xff]
        %v569 = vld [vmem:[%s164 + $0xd0] sm:$0xff]
        %v570 = vld [vmem:[%s164 + $0xd8] sm:$0xff]
        %v571 = vld [vmem:[%s164 + $0xe0] sm:$0xff]
        %v572 = vld [vmem:[%s164 + $0xe8] sm:$0xff]
        %v573 = vld [vmem:[%s164 + $0xf0] sm:$0xff]
        %v574 = vld [vmem:[%s164 + $0xf8] sm:$0xff]
        %v575 = vld [vmem:[%s164 + $0x100] sm:$0xff]
        %v576 = vld [vmem:[%s164 + $0x108] sm:$0xff]
        %v577 = vld [vmem:[%s164 + $0x110] sm:$0xff]
        %v578 = vld [vmem:[%s164 + $0x118] sm:$0xff]
        %v579 = vld [vmem:[%s164 + $0x120] sm:$0xff]
        %v580 = vld [vmem:[%s164 + $0x128] sm:$0xff]
        %v581 = vld [vmem:[%s164 + $0x130] sm:$0xff]
        %v582 = vld [vmem:[%s164 + $0x138] sm:$0xff]
        %v583 = vld [vmem:[%s164 + $0x140] sm:$0xff]
        %v584 = vld [vmem:[%s164 + $0x148] sm:$0xff]
        %v585 = vld [vmem:[%s164 + $0x150] sm:$0xff]
        %v586 = vld [vmem:[%s164 + $0x158] sm:$0xff]
        %631 = vrot.lane.b32.xlu0 %v543, 126
        %v632 = vpop.permute.xlu0 %631
        %633 = vrot.lane.b32.xlu0 %v544, 126
        %v634 = vpop.permute.xlu0 %633
        %635 = vrot.lane.b32.xlu0 %v545, 126
        %v636 = vpop.permute.xlu0 %635
        %637 = vrot.lane.b32.xlu0 %v546, 126
        %v638 = vpop.permute.xlu0 %637
        %639 = vrot.lane.b32.xlu0 %v547, 126
        %v640 = vpop.permute.xlu0 %639
        %641 = vrot.lane.b32.xlu0 %v548, 126
        %v642 = vpop.permute.xlu0 %641
        %643 = vrot.lane.b32.xlu0 %v549, 126
        %v644 = vpop.permute.xlu0 %643
        %645 = vrot.lane.b32.xlu0 %v550, 126
        %v646 = vpop.permute.xlu0 %645
        %647 = vrot.lane.b32.xlu0 %v551, 126
        %v648 = vpop.permute.xlu0 %647
        %649 = vrot.lane.b32.xlu0 %v552, 126
        %v650 = vpop.permute.xlu0 %649
        %651 = vrot.lane.b32.xlu0 %v553, 126
        %v652 = vpop.permute.xlu0 %651
        %653 = vrot.lane.b32.xlu0 %v554, 126
        %v654 = vpop.permute.xlu0 %653
        %655 = vrot.lane.b32.xlu0 %v555, 126
        %v656 = vpop.permute.xlu0 %655
        %657 = vrot.lane.b32.xlu0 %v556, 126
        %v658 = vpop.permute.xlu0 %657
        %659 = vrot.lane.b32.xlu0 %v557, 126
        %v660 = vpop.permute.xlu0 %659
        %661 = vrot.lane.b32.xlu0 %v558, 126
        %v662 = vpop.permute.xlu0 %661
        %663 = vrot.lane.b32.xlu0 %v559, 126
        %v664 = vpop.permute.xlu0 %663
        %665 = vrot.lane.b32.xlu0 %v560, 126
        %v666 = vpop.permute.xlu0 %665
        %667 = vrot.lane.b32.xlu0 %v561, 126
        %v668 = vpop.permute.xlu0 %667
        %669 = vrot.lane.b32.xlu0 %v562, 126
        %v670 = vpop.permute.xlu0 %669
        %671 = vrot.lane.b32.xlu0 %v563, 126
        %v672 = vpop.permute.xlu0 %671
        %673 = vrot.lane.b32.xlu0 %v564, 126
        %v674 = vpop.permute.xlu0 %673
        %675 = vrot.lane.b32.xlu0 %v565, 126
        %v676 = vpop.permute.xlu0 %675
        %677 = vrot.lane.b32.xlu0 %v566, 126
        %v678 = vpop.permute.xlu0 %677
        %679 = vrot.lane.b32.xlu0 %v567, 126
        %v680 = vpop.permute.xlu0 %679
        %681 = vrot.lane.b32.xlu0 %v568, 126
        %v682 = vpop.permute.xlu0 %681
        %683 = vrot.lane.b32.xlu0 %v569, 126
        %v684 = vpop.permute.xlu0 %683
        %685 = vrot.lane.b32.xlu0 %v570, 126
        %v686 = vpop.permute.xlu0 %685
        %687 = vrot.lane.b32.xlu0 %v571, 126
        %v688 = vpop.permute.xlu0 %687
        %689 = vrot.lane.b32.xlu0 %v572, 126
        %v690 = vpop.permute.xlu0 %689
        %691 = vrot.lane.b32.xlu0 %v573, 126
        %v692 = vpop.permute.xlu0 %691
        %693 = vrot.lane.b32.xlu0 %v574, 126
        %v694 = vpop.permute.xlu0 %693
        %695 = vrot.lane.b32.xlu0 %v575, 126
        %v696 = vpop.permute.xlu0 %695
        %697 = vrot.lane.b32.xlu0 %v576, 126
        %v698 = vpop.permute.xlu0 %697
        %699 = vrot.lane.b32.xlu0 %v577, 126
        %v700 = vpop.permute.xlu0 %699
        %701 = vrot.lane.b32.xlu0 %v578, 126
        %v702 = vpop.permute.xlu0 %701
        %703 = vrot.lane.b32.xlu0 %v579, 126
        %v704 = vpop.permute.xlu0 %703
        %705 = vrot.lane.b32.xlu0 %v580, 126
        %v706 = vpop.permute.xlu0 %705
        %707 = vrot.lane.b32.xlu0 %v581, 126
        %v708 = vpop.permute.xlu0 %707
        %709 = vrot.lane.b32.xlu0 %v582, 126
        %v710 = vpop.permute.xlu0 %709
        %711 = vrot.lane.b32.xlu0 %v583, 126
        %v712 = vpop.permute.xlu0 %711
        %713 = vrot.lane.b32.xlu0 %v584, 126
        %v714 = vpop.permute.xlu0 %713
        %715 = vrot.lane.b32.xlu0 %v585, 126
        %v716 = vpop.permute.xlu0 %715
        %717 = vrot.lane.b32.xlu0 %v586, 126
        %v718 = vpop.permute.xlu0 %717
        %vm719 = vcmask 1031168
        %v720 = vsel %vm719, %v632, %v634
        %v721 = vsel %vm719, %v634, %v636
        %v722 = vsel %vm719, %v636, %v638
        %v723 = vsel %vm719, %v638, %v640
        %v724 = vsel %vm719, %v640, %v642
        %v725 = vsel %vm719, %v642, %v644
        %v726 = vsel %vm719, %v644, %v646
        %v727 = vsel %vm719, %v646, %v648
        %v728 = vsel %vm719, %v648, %v650
        %v729 = vsel %vm719, %v650, %v652
        %v730 = vsel %vm719, %v654, %v656
        %v731 = vsel %vm719, %v656, %v658
        %v732 = vsel %vm719, %v658, %v660
        %v733 = vsel %vm719, %v660, %v662
        %v734 = vsel %vm719, %v662, %v664
        %v735 = vsel %vm719, %v664, %v666
        %v736 = vsel %vm719, %v666, %v668
        %v737 = vsel %vm719, %v668, %v670
        %v738 = vsel %vm719, %v670, %v672
        %v739 = vsel %vm719, %v672, %v674
        %v740 = vsel %vm719, %v676, %v678
        %v741 = vsel %vm719, %v678, %v680
        %v742 = vsel %vm719, %v680, %v682
        %v743 = vsel %vm719, %v682, %v684
        %v744 = vsel %vm719, %v684, %v686
        %v745 = vsel %vm719, %v686, %v688
        %v746 = vsel %vm719, %v688, %v690
        %v747 = vsel %vm719, %v690, %v692
        %v748 = vsel %vm719, %v692, %v694
        %v749 = vsel %vm719, %v694, %v696
        %v750 = vsel %vm719, %v698, %v700
        %v751 = vsel %vm719, %v700, %v702
        %v752 = vsel %vm719, %v702, %v704
        %v753 = vsel %vm719, %v704, %v706
        %v754 = vsel %vm719, %v706, %v708
        %v755 = vsel %vm719, %v708, %v710
        %v756 = vsel %vm719, %v710, %v712
        %v757 = vsel %vm719, %v712, %v714
        %v758 = vsel %vm719, %v714, %v716
        %v759 = vsel %vm719, %v716, %v718
        %800 = vst [vmem:[#allocation2 + $0x280] sm:$0xff] %v720
        %801 = vst [vmem:[#allocation2 + $0x288] sm:$0xff] %v721
        %802 = vst [vmem:[#allocation2 + $0x290] sm:$0xff] %v722
        %803 = vst [vmem:[#allocation2 + $0x298] sm:$0xff] %v723
        %804 = vst [vmem:[#allocation2 + $0x2a0] sm:$0xff] %v724
        %805 = vst [vmem:[#allocation2 + $0x2a8] sm:$0xff] %v725
        %806 = vst [vmem:[#allocation2 + $0x2b0] sm:$0xff] %v726
        %807 = vst [vmem:[#allocation2 + $0x2b8] sm:$0xff] %v727
        %808 = vst [vmem:[#allocation2 + $0x2c0] sm:$0xff] %v728
        %809 = vst [vmem:[#allocation2 + $0x2c8] sm:$0xff] %v729
        %810 = vst [vmem:[#allocation2 + $0x2d0] sm:$0xff] %v730
        %811 = vst [vmem:[#allocation2 + $0x2d8] sm:$0xff] %v731
        %812 = vst [vmem:[#allocation2 + $0x2e0] sm:$0xff] %v732
        %813 = vst [vmem:[#allocation2 + $0x2e8] sm:$0xff] %v733
        %814 = vst [vmem:[#allocation2 + $0x2f0] sm:$0xff] %v734
        %815 = vst [vmem:[#allocation2 + $0x2f8] sm:$0xff] %v735
        %816 = vst [vmem:[#allocation2 + $0x300] sm:$0xff] %v736
        %817 = vst [vmem:[#allocation2 + $0x308] sm:$0xff] %v737
        %818 = vst [vmem:[#allocation2 + $0x310] sm:$0xff] %v738
        %819 = vst [vmem:[#allocation2 + $0x318] sm:$0xff] %v739
        %820 = vst [vmem:[#allocation2 + $0x320] sm:$0xff] %v740
        %821 = vst [vmem:[#allocation2 + $0x328] sm:$0xff] %v741
        %822 = vst [vmem:[#allocation2 + $0x330] sm:$0xff] %v742
        %823 = vst [vmem:[#allocation2 + $0x338] sm:$0xff] %v743
        %824 = vst [vmem:[#allocation2 + $0x340] sm:$0xff] %v744
        %825 = vst [vmem:[#allocation2 + $0x348] sm:$0xff] %v745
        %826 = vst [vmem:[#allocation2 + $0x350] sm:$0xff] %v746
        %827 = vst [vmem:[#allocation2 + $0x358] sm:$0xff] %v747
        %828 = vst [vmem:[#allocation2 + $0x360] sm:$0xff] %v748
        %829 = vst [vmem:[#allocation2 + $0x368] sm:$0xff] %v749
        %830 = vst [vmem:[#allocation2 + $0x370] sm:$0xff] %v750
        %831 = vst [vmem:[#allocation2 + $0x378] sm:$0xff] %v751
        %832 = vst [vmem:[#allocation2 + $0x380] sm:$0xff] %v752
        %833 = vst [vmem:[#allocation2 + $0x388] sm:$0xff] %v753
        %834 = vst [vmem:[#allocation2 + $0x390] sm:$0xff] %v754
        %835 = vst [vmem:[#allocation2 + $0x398] sm:$0xff] %v755
        %836 = vst [vmem:[#allocation2 + $0x3a0] sm:$0xff] %v756
        %837 = vst [vmem:[#allocation2 + $0x3a8] sm:$0xff] %v757
        %838 = vst [vmem:[#allocation2 + $0x3b0] sm:$0xff] %v758
        %839 = vst [vmem:[#allocation2 + $0x3b8] sm:$0xff] %v759
        %v840 = vld [vmem:[%s164] sm:$0xff]
        %v841 = vld [vmem:[%s164 + $0x8] sm:$0xff]
        %v842 = vld [vmem:[%s164 + $0x10] sm:$0xff]
        %v843 = vld [vmem:[%s164 + $0x18] sm:$0xff]
        %v844 = vld [vmem:[%s164 + $0x20] sm:$0xff]
        %v845 = vld [vmem:[%s164 + $0x28] sm:$0xff]
        %v846 = vld [vmem:[%s164 + $0x30] sm:$0xff]
        %v847 = vld [vmem:[%s164 + $0x38] sm:$0xff]
        %v848 = vld [vmem:[%s164 + $0x40] sm:$0xff]
        %v849 = vld [vmem:[%s164 + $0x48] sm:$0xff]
        %v850 = vld [vmem:[%s164 + $0x50] sm:$0xff]
        %v851 = vld [vmem:[%s164 + $0x58] sm:$0xff]
        %v852 = vld [vmem:[%s164 + $0x60] sm:$0xff]
        %v853 = vld [vmem:[%s164 + $0x68] sm:$0xff]
        %v854 = vld [vmem:[%s164 + $0x70] sm:$0xff]
        %v855 = vld [vmem:[%s164 + $0x78] sm:$0xff]
        %v856 = vld [vmem:[%s164 + $0x80] sm:$0xff]
        %v857 = vld [vmem:[%s164 + $0x88] sm:$0xff]
        %v858 = vld [vmem:[%s164 + $0x90] sm:$0xff]
        %v859 = vld [vmem:[%s164 + $0x98] sm:$0xff]
        %v860 = vld [vmem:[%s164 + $0xa0] sm:$0xff]
        %v861 = vld [vmem:[%s164 + $0xa8] sm:$0xff]
        %v862 = vld [vmem:[%s164 + $0xb0] sm:$0xff]
        %v863 = vld [vmem:[%s164 + $0xb8] sm:$0xff]
        %v864 = vld [vmem:[%s164 + $0xc0] sm:$0xff]
        %v865 = vld [vmem:[%s164 + $0xc8] sm:$0xff]
        %v866 = vld [vmem:[%s164 + $0xd0] sm:$0xff]
        %v867 = vld [vmem:[%s164 + $0xd8] sm:$0xff]
        %v868 = vld [vmem:[%s164 + $0xe0] sm:$0xff]
        %v869 = vld [vmem:[%s164 + $0xe8] sm:$0xff]
        %v870 = vld [vmem:[%s164 + $0xf0] sm:$0xff]
        %v871 = vld [vmem:[%s164 + $0xf8] sm:$0xff]
        %v872 = vld [vmem:[%s164 + $0x100] sm:$0xff]
        %v873 = vld [vmem:[%s164 + $0x108] sm:$0xff]
        %v874 = vld [vmem:[%s164 + $0x110] sm:$0xff]
        %v875 = vld [vmem:[%s164 + $0x118] sm:$0xff]
        %v876 = vld [vmem:[%s164 + $0x120] sm:$0xff]
        %v877 = vld [vmem:[%s164 + $0x128] sm:$0xff]
        %v878 = vld [vmem:[%s164 + $0x130] sm:$0xff]
        %v879 = vld [vmem:[%s164 + $0x138] sm:$0xff]
        %v880 = vld [vmem:[%s164 + $0x140] sm:$0xff]
        %v881 = vld [vmem:[%s164 + $0x148] sm:$0xff]
        %v882 = vld [vmem:[%s164 + $0x150] sm:$0xff]
        %v883 = vld [vmem:[%s164 + $0x158] sm:$0xff]
        %928 = vrot.lane.b32.xlu0 %v840, 125
        %v929 = vpop.permute.xlu0 %928
        %930 = vrot.lane.b32.xlu0 %v841, 125
        %v931 = vpop.permute.xlu0 %930
        %932 = vrot.lane.b32.xlu0 %v842, 125
        %v933 = vpop.permute.xlu0 %932
        %934 = vrot.lane.b32.xlu0 %v843, 125
        %v935 = vpop.permute.xlu0 %934
        %936 = vrot.lane.b32.xlu0 %v844, 125
        %v937 = vpop.permute.xlu0 %936
        %938 = vrot.lane.b32.xlu0 %v845, 125
        %v939 = vpop.permute.xlu0 %938
        %940 = vrot.lane.b32.xlu0 %v846, 125
        %v941 = vpop.permute.xlu0 %940
        %942 = vrot.lane.b32.xlu0 %v847, 125
        %v943 = vpop.permute.xlu0 %942
        %944 = vrot.lane.b32.xlu0 %v848, 125
        %v945 = vpop.permute.xlu0 %944
        %946 = vrot.lane.b32.xlu0 %v849, 125
        %v947 = vpop.permute.xlu0 %946
        %948 = vrot.lane.b32.xlu0 %v850, 125
        %v949 = vpop.permute.xlu0 %948
        %950 = vrot.lane.b32.xlu0 %v851, 125
        %v951 = vpop.permute.xlu0 %950
        %952 = vrot.lane.b32.xlu0 %v852, 125
        %v953 = vpop.permute.xlu0 %952
        %954 = vrot.lane.b32.xlu0 %v853, 125
        %v955 = vpop.permute.xlu0 %954
        %956 = vrot.lane.b32.xlu0 %v854, 125
        %v957 = vpop.permute.xlu0 %956
        %958 = vrot.lane.b32.xlu0 %v855, 125
        %v959 = vpop.permute.xlu0 %958
        %960 = vrot.lane.b32.xlu0 %v856, 125
        %v961 = vpop.permute.xlu0 %960
        %962 = vrot.lane.b32.xlu0 %v857, 125
        %v963 = vpop.permute.xlu0 %962
        %964 = vrot.lane.b32.xlu0 %v858, 125
        %v965 = vpop.permute.xlu0 %964
        %966 = vrot.lane.b32.xlu0 %v859, 125
        %v967 = vpop.permute.xlu0 %966
        %968 = vrot.lane.b32.xlu0 %v860, 125
        %v969 = vpop.permute.xlu0 %968
        %970 = vrot.lane.b32.xlu0 %v861, 125
        %v971 = vpop.permute.xlu0 %970
        %972 = vrot.lane.b32.xlu0 %v862, 125
        %v973 = vpop.permute.xlu0 %972
        %974 = vrot.lane.b32.xlu0 %v863, 125
        %v975 = vpop.permute.xlu0 %974
        %976 = vrot.lane.b32.xlu0 %v864, 125
        %v977 = vpop.permute.xlu0 %976
        %978 = vrot.lane.b32.xlu0 %v865, 125
        %v979 = vpop.permute.xlu0 %978
        %980 = vrot.lane.b32.xlu0 %v866, 125
        %v981 = vpop.permute.xlu0 %980
        %982 = vrot.lane.b32.xlu0 %v867, 125
        %v983 = vpop.permute.xlu0 %982
        %984 = vrot.lane.b32.xlu0 %v868, 125
        %v985 = vpop.permute.xlu0 %984
        %986 = vrot.lane.b32.xlu0 %v869, 125
        %v987 = vpop.permute.xlu0 %986
        %988 = vrot.lane.b32.xlu0 %v870, 125
        %v989 = vpop.permute.xlu0 %988
        %990 = vrot.lane.b32.xlu0 %v871, 125
        %v991 = vpop.permute.xlu0 %990
        %992 = vrot.lane.b32.xlu0 %v872, 125
        %v993 = vpop.permute.xlu0 %992
        %994 = vrot.lane.b32.xlu0 %v873, 125
        %v995 = vpop.permute.xlu0 %994
        %996 = vrot.lane.b32.xlu0 %v874, 125
        %v997 = vpop.permute.xlu0 %996
        %998 = vrot.lane.b32.xlu0 %v875, 125
        %v999 = vpop.permute.xlu0 %998
        %1000 = vrot.lane.b32.xlu0 %v876, 125
        %v1001 = vpop.permute.xlu0 %1000
        %1002 = vrot.lane.b32.xlu0 %v877, 125
        %v1003 = vpop.permute.xlu0 %1002
        %1004 = vrot.lane.b32.xlu0 %v878, 125
        %v1005 = vpop.permute.xlu0 %1004
        %1006 = vrot.lane.b32.xlu0 %v879, 125
        %v1007 = vpop.permute.xlu0 %1006
        %1008 = vrot.lane.b32.xlu0 %v880, 125
        %v1009 = vpop.permute.xlu0 %1008
        %1010 = vrot.lane.b32.xlu0 %v881, 125
        %v1011 = vpop.permute.xlu0 %1010
        %1012 = vrot.lane.b32.xlu0 %v882, 125
        %v1013 = vpop.permute.xlu0 %1012
        %1014 = vrot.lane.b32.xlu0 %v883, 125
        %v1015 = vpop.permute.xlu0 %1014
        %vm1016 = vcmask 1022976
        %v1017 = vsel %vm1016, %v929, %v931
        %v1018 = vsel %vm1016, %v931, %v933
        %v1019 = vsel %vm1016, %v933, %v935
        %v1020 = vsel %vm1016, %v935, %v937
        %v1021 = vsel %vm1016, %v937, %v939
        %v1022 = vsel %vm1016, %v939, %v941
        %v1023 = vsel %vm1016, %v941, %v943
        %v1024 = vsel %vm1016, %v943, %v945
        %v1025 = vsel %vm1016, %v945, %v947
        %v1026 = vsel %vm1016, %v947, %v949
        %v1027 = vsel %vm1016, %v951, %v953
        %v1028 = vsel %vm1016, %v953, %v955
        %v1029 = vsel %vm1016, %v955, %v957
        %v1030 = vsel %vm1016, %v957, %v959
        %v1031 = vsel %vm1016, %v959, %v961
        %v1032 = vsel %vm1016, %v961, %v963
        %v1033 = vsel %vm1016, %v963, %v965
        %v1034 = vsel %vm1016, %v965, %v967
        %v1035 = vsel %vm1016, %v967, %v969
        %v1036 = vsel %vm1016, %v969, %v971
        %v1037 = vsel %vm1016, %v973, %v975
        %v1038 = vsel %vm1016, %v975, %v977
        %v1039 = vsel %vm1016, %v977, %v979
        %v1040 = vsel %vm1016, %v979, %v981
        %v1041 = vsel %vm1016, %v981, %v983
        %v1042 = vsel %vm1016, %v983, %v985
        %v1043 = vsel %vm1016, %v985, %v987
        %v1044 = vsel %vm1016, %v987, %v989
        %v1045 = vsel %vm1016, %v989, %v991
        %v1046 = vsel %vm1016, %v991, %v993
        %v1047 = vsel %vm1016, %v995, %v997
        %v1048 = vsel %vm1016, %v997, %v999
        %v1049 = vsel %vm1016, %v999, %v1001
        %v1050 = vsel %vm1016, %v1001, %v1003
        %v1051 = vsel %vm1016, %v1003, %v1005
        %v1052 = vsel %vm1016, %v1005, %v1007
        %v1053 = vsel %vm1016, %v1007, %v1009
        %v1054 = vsel %vm1016, %v1009, %v1011
        %v1055 = vsel %vm1016, %v1011, %v1013
        %v1056 = vsel %vm1016, %v1013, %v1015
        %1097 = vst [vmem:[#allocation2 + $0x3c0] sm:$0xff] %v1017
        %1098 = vst [vmem:[#allocation2 + $0x3c8] sm:$0xff] %v1018
        %1099 = vst [vmem:[#allocation2 + $0x3d0] sm:$0xff] %v1019
        %1100 = vst [vmem:[#allocation2 + $0x3d8] sm:$0xff] %v1020
        %1101 = vst [vmem:[#allocation2 + $0x3e0] sm:$0xff] %v1021
        %1102 = vst [vmem:[#allocation2 + $0x3e8] sm:$0xff] %v1022
        %1103 = vst [vmem:[#allocation2 + $0x3f0] sm:$0xff] %v1023
        %1104 = vst [vmem:[#allocation2 + $0x3f8] sm:$0xff] %v1024
        %1105 = vst [vmem:[#allocation2 + $0x400] sm:$0xff] %v1025
        %1106 = vst [vmem:[#allocation2 + $0x408] sm:$0xff] %v1026
        %1107 = vst [vmem:[#allocation2 + $0x410] sm:$0xff] %v1027
        %1108 = vst [vmem:[#allocation2 + $0x418] sm:$0xff] %v1028
        %1109 = vst [vmem:[#allocation2 + $0x420] sm:$0xff] %v1029
        %1110 = vst [vmem:[#allocation2 + $0x428] sm:$0xff] %v1030
        %1111 = vst [vmem:[#allocation2 + $0x430] sm:$0xff] %v1031
        %1112 = vst [vmem:[#allocation2 + $0x438] sm:$0xff] %v1032
        %1113 = vst [vmem:[#allocation2 + $0x440] sm:$0xff] %v1033
        %1114 = vst [vmem:[#allocation2 + $0x448] sm:$0xff] %v1034
        %1115 = vst [vmem:[#allocation2 + $0x450] sm:$0xff] %v1035
        %1116 = vst [vmem:[#allocation2 + $0x458] sm:$0xff] %v1036
        %1117 = vst [vmem:[#allocation2 + $0x460] sm:$0xff] %v1037
        %1118 = vst [vmem:[#allocation2 + $0x468] sm:$0xff] %v1038
        %1119 = vst [vmem:[#allocation2 + $0x470] sm:$0xff] %v1039
        %1120 = vst [vmem:[#allocation2 + $0x478] sm:$0xff] %v1040
        %1121 = vst [vmem:[#allocation2 + $0x480] sm:$0xff] %v1041
        %1122 = vst [vmem:[#allocation2 + $0x488] sm:$0xff] %v1042
        %1123 = vst [vmem:[#allocation2 + $0x490] sm:$0xff] %v1043
        %1124 = vst [vmem:[#allocation2 + $0x498] sm:$0xff] %v1044
        %1125 = vst [vmem:[#allocation2 + $0x4a0] sm:$0xff] %v1045
        %1126 = vst [vmem:[#allocation2 + $0x4a8] sm:$0xff] %v1046
        %1127 = vst [vmem:[#allocation2 + $0x4b0] sm:$0xff] %v1047
        %1128 = vst [vmem:[#allocation2 + $0x4b8] sm:$0xff] %v1048
        %1129 = vst [vmem:[#allocation2 + $0x4c0] sm:$0xff] %v1049
        %1130 = vst [vmem:[#allocation2 + $0x4c8] sm:$0xff] %v1050
        %1131 = vst [vmem:[#allocation2 + $0x4d0] sm:$0xff] %v1051
        %1132 = vst [vmem:[#allocation2 + $0x4d8] sm:$0xff] %v1052
        %1133 = vst [vmem:[#allocation2 + $0x4e0] sm:$0xff] %v1053
        %1134 = vst [vmem:[#allocation2 + $0x4e8] sm:$0xff] %v1054
        %1135 = vst [vmem:[#allocation2 + $0x4f0] sm:$0xff] %v1055
        %1136 = vst [vmem:[#allocation2 + $0x4f8] sm:$0xff] %v1056
        %v1137 = vld [vmem:[%s164] sm:$0xff]
        %v1138 = vld [vmem:[%s164 + $0x8] sm:$0xff]
        %v1139 = vld [vmem:[%s164 + $0x10] sm:$0xff]
        %v1140 = vld [vmem:[%s164 + $0x18] sm:$0xff]
        %v1141 = vld [vmem:[%s164 + $0x20] sm:$0xff]
        %v1142 = vld [vmem:[%s164 + $0x28] sm:$0xff]
        %v1143 = vld [vmem:[%s164 + $0x30] sm:$0xff]
        %v1144 = vld [vmem:[%s164 + $0x38] sm:$0xff]
        %v1145 = vld [vmem:[%s164 + $0x40] sm:$0xff]
        %v1146 = vld [vmem:[%s164 + $0x48] sm:$0xff]
        %v1147 = vld [vmem:[%s164 + $0x50] sm:$0xff]
        %v1148 = vld [vmem:[%s164 + $0x58] sm:$0xff]
        %v1149 = vld [vmem:[%s164 + $0x60] sm:$0xff]
        %v1150 = vld [vmem:[%s164 + $0x68] sm:$0xff]
        %v1151 = vld [vmem:[%s164 + $0x70] sm:$0xff]
        %v1152 = vld [vmem:[%s164 + $0x78] sm:$0xff]
        %v1153 = vld [vmem:[%s164 + $0x80] sm:$0xff]
        %v1154 = vld [vmem:[%s164 + $0x88] sm:$0xff]
        %v1155 = vld [vmem:[%s164 + $0x90] sm:$0xff]
        %v1156 = vld [vmem:[%s164 + $0x98] sm:$0xff]
        %v1157 = vld [vmem:[%s164 + $0xa0] sm:$0xff]
        %v1158 = vld [vmem:[%s164 + $0xa8] sm:$0xff]
        %v1159 = vld [vmem:[%s164 + $0xb0] sm:$0xff]
        %v1160 = vld [vmem:[%s164 + $0xb8] sm:$0xff]
        %v1161 = vld [vmem:[%s164 + $0xc0] sm:$0xff]
        %v1162 = vld [vmem:[%s164 + $0xc8] sm:$0xff]
        %v1163 = vld [vmem:[%s164 + $0xd0] sm:$0xff]
        %v1164 = vld [vmem:[%s164 + $0xd8] sm:$0xff]
        %v1165 = vld [vmem:[%s164 + $0xe0] sm:$0xff]
        %v1166 = vld [vmem:[%s164 + $0xe8] sm:$0xff]
        %v1167 = vld [vmem:[%s164 + $0xf0] sm:$0xff]
        %v1168 = vld [vmem:[%s164 + $0xf8] sm:$0xff]
        %v1169 = vld [vmem:[%s164 + $0x100] sm:$0xff]
        %v1170 = vld [vmem:[%s164 + $0x108] sm:$0xff]
        %v1171 = vld [vmem:[%s164 + $0x110] sm:$0xff]
        %v1172 = vld [vmem:[%s164 + $0x118] sm:$0xff]
        %v1173 = vld [vmem:[%s164 + $0x120] sm:$0xff]
        %v1174 = vld [vmem:[%s164 + $0x128] sm:$0xff]
        %v1175 = vld [vmem:[%s164 + $0x130] sm:$0xff]
        %v1176 = vld [vmem:[%s164 + $0x138] sm:$0xff]
        %v1177 = vld [vmem:[%s164 + $0x140] sm:$0xff]
        %v1178 = vld [vmem:[%s164 + $0x148] sm:$0xff]
        %v1179 = vld [vmem:[%s164 + $0x150] sm:$0xff]
        %v1180 = vld [vmem:[%s164 + $0x158] sm:$0xff]
        %1225 = vrot.lane.b32.xlu0 %v1137, 124
        %v1226 = vpop.permute.xlu0 %1225
        %1227 = vrot.lane.b32.xlu0 %v1138, 124
        %v1228 = vpop.permute.xlu0 %1227
        %1229 = vrot.lane.b32.xlu0 %v1139, 124
        %v1230 = vpop.permute.xlu0 %1229
        %1231 = vrot.lane.b32.xlu0 %v1140, 124
        %v1232 = vpop.permute.xlu0 %1231
        %1233 = vrot.lane.b32.xlu0 %v1141, 124
        %v1234 = vpop.permute.xlu0 %1233
        %1235 = vrot.lane.b32.xlu0 %v1142, 124
        %v1236 = vpop.permute.xlu0 %1235
        %1237 = vrot.lane.b32.xlu0 %v1143, 124
        %v1238 = vpop.permute.xlu0 %1237
        %1239 = vrot.lane.b32.xlu0 %v1144, 124
        %v1240 = vpop.permute.xlu0 %1239
        %1241 = vrot.lane.b32.xlu0 %v1145, 124
        %v1242 = vpop.permute.xlu0 %1241
        %1243 = vrot.lane.b32.xlu0 %v1146, 124
        %v1244 = vpop.permute.xlu0 %1243
        %1245 = vrot.lane.b32.xlu0 %v1147, 124
        %v1246 = vpop.permute.xlu0 %1245
        %1247 = vrot.lane.b32.xlu0 %v1148, 124
        %v1248 = vpop.permute.xlu0 %1247
        %1249 = vrot.lane.b32.xlu0 %v1149, 124
        %v1250 = vpop.permute.xlu0 %1249
        %1251 = vrot.lane.b32.xlu0 %v1150, 124
        %v1252 = vpop.permute.xlu0 %1251
        %1253 = vrot.lane.b32.xlu0 %v1151, 124
        %v1254 = vpop.permute.xlu0 %1253
        %1255 = vrot.lane.b32.xlu0 %v1152, 124
        %v1256 = vpop.permute.xlu0 %1255
        %1257 = vrot.lane.b32.xlu0 %v1153, 124
        %v1258 = vpop.permute.xlu0 %1257
        %1259 = vrot.lane.b32.xlu0 %v1154, 124
        %v1260 = vpop.permute.xlu0 %1259
        %1261 = vrot.lane.b32.xlu0 %v1155, 124
        %v1262 = vpop.permute.xlu0 %1261
        %1263 = vrot.lane.b32.xlu0 %v1156, 124
        %v1264 = vpop.permute.xlu0 %1263
        %1265 = vrot.lane.b32.xlu0 %v1157, 124
        %v1266 = vpop.permute.xlu0 %1265
        %1267 = vrot.lane.b32.xlu0 %v1158, 124
        %v1268 = vpop.permute.xlu0 %1267
        %1269 = vrot.lane.b32.xlu0 %v1159, 124
        %v1270 = vpop.permute.xlu0 %1269
        %1271 = vrot.lane.b32.xlu0 %v1160, 124
        %v1272 = vpop.permute.xlu0 %1271
        %1273 = vrot.lane.b32.xlu0 %v1161, 124
        %v1274 = vpop.permute.xlu0 %1273
        %1275 = vrot.lane.b32.xlu0 %v1162, 124
        %v1276 = vpop.permute.xlu0 %1275
        %1277 = vrot.lane.b32.xlu0 %v1163, 124
        %v1278 = vpop.permute.xlu0 %1277
        %1279 = vrot.lane.b32.xlu0 %v1164, 124
        %v1280 = vpop.permute.xlu0 %1279
        %1281 = vrot.lane.b32.xlu0 %v1165, 124
        %v1282 = vpop.permute.xlu0 %1281
        %1283 = vrot.lane.b32.xlu0 %v1166, 124
        %v1284 = vpop.permute.xlu0 %1283
        %1285 = vrot.lane.b32.xlu0 %v1167, 124
        %v1286 = vpop.permute.xlu0 %1285
        %1287 = vrot.lane.b32.xlu0 %v1168, 124
        %v1288 = vpop.permute.xlu0 %1287
        %1289 = vrot.lane.b32.xlu0 %v1169, 124
        %v1290 = vpop.permute.xlu0 %1289
        %1291 = vrot.lane.b32.xlu0 %v1170, 124
        %v1292 = vpop.permute.xlu0 %1291
        %1293 = vrot.lane.b32.xlu0 %v1171, 124
        %v1294 = vpop.permute.xlu0 %1293
        %1295 = vrot.lane.b32.xlu0 %v1172, 124
        %v1296 = vpop.permute.xlu0 %1295
        %1297 = vrot.lane.b32.xlu0 %v1173, 124
        %v1298 = vpop.permute.xlu0 %1297
        %1299 = vrot.lane.b32.xlu0 %v1174, 124
        %v1300 = vpop.permute.xlu0 %1299
        %1301 = vrot.lane.b32.xlu0 %v1175, 124
        %v1302 = vpop.permute.xlu0 %1301
        %1303 = vrot.lane.b32.xlu0 %v1176, 124
        %v1304 = vpop.permute.xlu0 %1303
        %1305 = vrot.lane.b32.xlu0 %v1177, 124
        %v1306 = vpop.permute.xlu0 %1305
        %1307 = vrot.lane.b32.xlu0 %v1178, 124
        %v1308 = vpop.permute.xlu0 %1307
        %1309 = vrot.lane.b32.xlu0 %v1179, 124
        %v1310 = vpop.permute.xlu0 %1309
        %1311 = vrot.lane.b32.xlu0 %v1180, 124
        %v1312 = vpop.permute.xlu0 %1311
        %vm1313 = vcmask 1014784
        %v1314 = vsel %vm1313, %v1226, %v1228
        %v1315 = vsel %vm1313, %v1228, %v1230
        %v1316 = vsel %vm1313, %v1230, %v1232
        %v1317 = vsel %vm1313, %v1232, %v1234
        %v1318 = vsel %vm1313, %v1234, %v1236
        %v1319 = vsel %vm1313, %v1236, %v1238
        %v1320 = vsel %vm1313, %v1238, %v1240
        %v1321 = vsel %vm1313, %v1240, %v1242
        %v1322 = vsel %vm1313, %v1242, %v1244
        %v1323 = vsel %vm1313, %v1244, %v1246
        %v1324 = vsel %vm1313, %v1248, %v1250
        %v1325 = vsel %vm1313, %v1250, %v1252
        %v1326 = vsel %vm1313, %v1252, %v1254
        %v1327 = vsel %vm1313, %v1254, %v1256
        %v1328 = vsel %vm1313, %v1256, %v1258
        %v1329 = vsel %vm1313, %v1258, %v1260
        %v1330 = vsel %vm1313, %v1260, %v1262
        %v1331 = vsel %vm1313, %v1262, %v1264
        %v1332 = vsel %vm1313, %v1264, %v1266
        %v1333 = vsel %vm1313, %v1266, %v1268
        %v1334 = vsel %vm1313, %v1270, %v1272
        %v1335 = vsel %vm1313, %v1272, %v1274
        %v1336 = vsel %vm1313, %v1274, %v1276
        %v1337 = vsel %vm1313, %v1276, %v1278
        %v1338 = vsel %vm1313, %v1278, %v1280
        %v1339 = vsel %vm1313, %v1280, %v1282
        %v1340 = vsel %vm1313, %v1282, %v1284
        %v1341 = vsel %vm1313, %v1284, %v1286
        %v1342 = vsel %vm1313, %v1286, %v1288
        %v1343 = vsel %vm1313, %v1288, %v1290
        %v1344 = vsel %vm1313, %v1292, %v1294
        %v1345 = vsel %vm1313, %v1294, %v1296
        %v1346 = vsel %vm1313, %v1296, %v1298
        %v1347 = vsel %vm1313, %v1298, %v1300
        %v1348 = vsel %vm1313, %v1300, %v1302
        %v1349 = vsel %vm1313, %v1302, %v1304
        %v1350 = vsel %vm1313, %v1304, %v1306
        %v1351 = vsel %vm1313, %v1306, %v1308
        %v1352 = vsel %vm1313, %v1308, %v1310
        %v1353 = vsel %vm1313, %v1310, %v1312
        %1394 = vst [vmem:[#allocation2 + $0x500] sm:$0xff] %v1314
        %1395 = vst [vmem:[#allocation2 + $0x508] sm:$0xff] %v1315
        %1396 = vst [vmem:[#allocation2 + $0x510] sm:$0xff] %v1316
        %1397 = vst [vmem:[#allocation2 + $0x518] sm:$0xff] %v1317
        %1398 = vst [vmem:[#allocation2 + $0x520] sm:$0xff] %v1318
        %1399 = vst [vmem:[#allocation2 + $0x528] sm:$0xff] %v1319
        %1400 = vst [vmem:[#allocation2 + $0x530] sm:$0xff] %v1320
        %1401 = vst [vmem:[#allocation2 + $0x538] sm:$0xff] %v1321
        %1402 = vst [vmem:[#allocation2 + $0x540] sm:$0xff] %v1322
        %1403 = vst [vmem:[#allocation2 + $0x548] sm:$0xff] %v1323
        %1404 = vst [vmem:[#allocation2 + $0x550] sm:$0xff] %v1324
        %1405 = vst [vmem:[#allocation2 + $0x558] sm:$0xff] %v1325
        %1406 = vst [vmem:[#allocation2 + $0x560] sm:$0xff] %v1326
        %1407 = vst [vmem:[#allocation2 + $0x568] sm:$0xff] %v1327
        %1408 = vst [vmem:[#allocation2 + $0x570] sm:$0xff] %v1328
        %1409 = vst [vmem:[#allocation2 + $0x578] sm:$0xff] %v1329
        %1410 = vst [vmem:[#allocation2 + $0x580] sm:$0xff] %v1330
        %1411 = vst [vmem:[#allocation2 + $0x588] sm:$0xff] %v1331
        %1412 = vst [vmem:[#allocation2 + $0x590] sm:$0xff] %v1332
        %1413 = vst [vmem:[#allocation2 + $0x598] sm:$0xff] %v1333
        %1414 = vst [vmem:[#allocation2 + $0x5a0] sm:$0xff] %v1334
        %1415 = vst [vmem:[#allocation2 + $0x5a8] sm:$0xff] %v1335
        %1416 = vst [vmem:[#allocation2 + $0x5b0] sm:$0xff] %v1336
        %1417 = vst [vmem:[#allocation2 + $0x5b8] sm:$0xff] %v1337
        %1418 = vst [vmem:[#allocation2 + $0x5c0] sm:$0xff] %v1338
        %1419 = vst [vmem:[#allocation2 + $0x5c8] sm:$0xff] %v1339
        %1420 = vst [vmem:[#allocation2 + $0x5d0] sm:$0xff] %v1340
        %1421 = vst [vmem:[#allocation2 + $0x5d8] sm:$0xff] %v1341
        %1422 = vst [vmem:[#allocation2 + $0x5e0] sm:$0xff] %v1342
        %1423 = vst [vmem:[#allocation2 + $0x5e8] sm:$0xff] %v1343
        %1424 = vst [vmem:[#allocation2 + $0x5f0] sm:$0xff] %v1344
        %1425 = vst [vmem:[#allocation2 + $0x5f8] sm:$0xff] %v1345
        %1426 = vst [vmem:[#allocation2 + $0x600] sm:$0xff] %v1346
        %1427 = vst [vmem:[#allocation2 + $0x608] sm:$0xff] %v1347
        %1428 = vst [vmem:[#allocation2 + $0x610] sm:$0xff] %v1348
        %1429 = vst [vmem:[#allocation2 + $0x618] sm:$0xff] %v1349
        %1430 = vst [vmem:[#allocation2 + $0x620] sm:$0xff] %v1350
        %1431 = vst [vmem:[#allocation2 + $0x628] sm:$0xff] %v1351
        %1432 = vst [vmem:[#allocation2 + $0x630] sm:$0xff] %v1352
        %1433 = vst [vmem:[#allocation2 + $0x638] sm:$0xff] %v1353
        %v1434 = vld [vmem:[%s164] sm:$0xff]
        %v1435 = vld [vmem:[%s164 + $0x8] sm:$0xff]
        %v1436 = vld [vmem:[%s164 + $0x10] sm:$0xff]
        %v1437 = vld [vmem:[%s164 + $0x18] sm:$0xff]
        %v1438 = vld [vmem:[%s164 + $0x20] sm:$0xff]
        %v1439 = vld [vmem:[%s164 + $0x28] sm:$0xff]
        %v1440 = vld [vmem:[%s164 + $0x30] sm:$0xff]
        %v1441 = vld [vmem:[%s164 + $0x38] sm:$0xff]
        %v1442 = vld [vmem:[%s164 + $0x40] sm:$0xff]
        %v1443 = vld [vmem:[%s164 + $0x48] sm:$0xff]
        %v1444 = vld [vmem:[%s164 + $0x50] sm:$0xff]
        %v1445 = vld [vmem:[%s164 + $0x58] sm:$0xff]
        %v1446 = vld [vmem:[%s164 + $0x60] sm:$0xff]
        %v1447 = vld [vmem:[%s164 + $0x68] sm:$0xff]
        %v1448 = vld [vmem:[%s164 + $0x70] sm:$0xff]
        %v1449 = vld [vmem:[%s164 + $0x78] sm:$0xff]
        %v1450 = vld [vmem:[%s164 + $0x80] sm:$0xff]
        %v1451 = vld [vmem:[%s164 + $0x88] sm:$0xff]
        %v1452 = vld [vmem:[%s164 + $0x90] sm:$0xff]
        %v1453 = vld [vmem:[%s164 + $0x98] sm:$0xff]
        %v1454 = vld [vmem:[%s164 + $0xa0] sm:$0xff]
        %v1455 = vld [vmem:[%s164 + $0xa8] sm:$0xff]
        %v1456 = vld [vmem:[%s164 + $0xb0] sm:$0xff]
        %v1457 = vld [vmem:[%s164 + $0xb8] sm:$0xff]
        %v1458 = vld [vmem:[%s164 + $0xc0] sm:$0xff]
        %v1459 = vld [vmem:[%s164 + $0xc8] sm:$0xff]
        %v1460 = vld [vmem:[%s164 + $0xd0] sm:$0xff]
        %v1461 = vld [vmem:[%s164 + $0xd8] sm:$0xff]
        %v1462 = vld [vmem:[%s164 + $0xe0] sm:$0xff]
        %v1463 = vld [vmem:[%s164 + $0xe8] sm:$0xff]
        %v1464 = vld [vmem:[%s164 + $0xf0] sm:$0xff]
        %v1465 = vld [vmem:[%s164 + $0xf8] sm:$0xff]
        %v1466 = vld [vmem:[%s164 + $0x100] sm:$0xff]
        %v1467 = vld [vmem:[%s164 + $0x108] sm:$0xff]
        %v1468 = vld [vmem:[%s164 + $0x110] sm:$0xff]
        %v1469 = vld [vmem:[%s164 + $0x118] sm:$0xff]
        %v1470 = vld [vmem:[%s164 + $0x120] sm:$0xff]
        %v1471 = vld [vmem:[%s164 + $0x128] sm:$0xff]
        %v1472 = vld [vmem:[%s164 + $0x130] sm:$0xff]
        %v1473 = vld [vmem:[%s164 + $0x138] sm:$0xff]
        %v1474 = vld [vmem:[%s164 + $0x140] sm:$0xff]
        %v1475 = vld [vmem:[%s164 + $0x148] sm:$0xff]
        %v1476 = vld [vmem:[%s164 + $0x150] sm:$0xff]
        %v1477 = vld [vmem:[%s164 + $0x158] sm:$0xff]
        %1522 = vrot.lane.b32.xlu0 %v1434, 123
        %v1523 = vpop.permute.xlu0 %1522
        %1524 = vrot.lane.b32.xlu0 %v1435, 123
        %v1525 = vpop.permute.xlu0 %1524
        %1526 = vrot.lane.b32.xlu0 %v1436, 123
        %v1527 = vpop.permute.xlu0 %1526
        %1528 = vrot.lane.b32.xlu0 %v1437, 123
        %v1529 = vpop.permute.xlu0 %1528
        %1530 = vrot.lane.b32.xlu0 %v1438, 123
        %v1531 = vpop.permute.xlu0 %1530
        %1532 = vrot.lane.b32.xlu0 %v1439, 123
        %v1533 = vpop.permute.xlu0 %1532
        %1534 = vrot.lane.b32.xlu0 %v1440, 123
        %v1535 = vpop.permute.xlu0 %1534
        %1536 = vrot.lane.b32.xlu0 %v1441, 123
        %v1537 = vpop.permute.xlu0 %1536
        %1538 = vrot.lane.b32.xlu0 %v1442, 123
        %v1539 = vpop.permute.xlu0 %1538
        %1540 = vrot.lane.b32.xlu0 %v1443, 123
        %v1541 = vpop.permute.xlu0 %1540
        %1542 = vrot.lane.b32.xlu0 %v1444, 123
        %v1543 = vpop.permute.xlu0 %1542
        %1544 = vrot.lane.b32.xlu0 %v1445, 123
        %v1545 = vpop.permute.xlu0 %1544
        %1546 = vrot.lane.b32.xlu0 %v1446, 123
        %v1547 = vpop.permute.xlu0 %1546
        %1548 = vrot.lane.b32.xlu0 %v1447, 123
        %v1549 = vpop.permute.xlu0 %1548
        %1550 = vrot.lane.b32.xlu0 %v1448, 123
        %v1551 = vpop.permute.xlu0 %1550
        %1552 = vrot.lane.b32.xlu0 %v1449, 123
        %v1553 = vpop.permute.xlu0 %1552
        %1554 = vrot.lane.b32.xlu0 %v1450, 123
        %v1555 = vpop.permute.xlu0 %1554
        %1556 = vrot.lane.b32.xlu0 %v1451, 123
        %v1557 = vpop.permute.xlu0 %1556
        %1558 = vrot.lane.b32.xlu0 %v1452, 123
        %v1559 = vpop.permute.xlu0 %1558
        %1560 = vrot.lane.b32.xlu0 %v1453, 123
        %v1561 = vpop.permute.xlu0 %1560
        %1562 = vrot.lane.b32.xlu0 %v1454, 123
        %v1563 = vpop.permute.xlu0 %1562
        %1564 = vrot.lane.b32.xlu0 %v1455, 123
        %v1565 = vpop.permute.xlu0 %1564
        %1566 = vrot.lane.b32.xlu0 %v1456, 123
        %v1567 = vpop.permute.xlu0 %1566
        %1568 = vrot.lane.b32.xlu0 %v1457, 123
        %v1569 = vpop.permute.xlu0 %1568
        %1570 = vrot.lane.b32.xlu0 %v1458, 123
        %v1571 = vpop.permute.xlu0 %1570
        %1572 = vrot.lane.b32.xlu0 %v1459, 123
        %v1573 = vpop.permute.xlu0 %1572
        %1574 = vrot.lane.b32.xlu0 %v1460, 123
        %v1575 = vpop.permute.xlu0 %1574
        %1576 = vrot.lane.b32.xlu0 %v1461, 123
        %v1577 = vpop.permute.xlu0 %1576
        %1578 = vrot.lane.b32.xlu0 %v1462, 123
        %v1579 = vpop.permute.xlu0 %1578
        %1580 = vrot.lane.b32.xlu0 %v1463, 123
        %v1581 = vpop.permute.xlu0 %1580
        %1582 = vrot.lane.b32.xlu0 %v1464, 123
        %v1583 = vpop.permute.xlu0 %1582
        %1584 = vrot.lane.b32.xlu0 %v1465, 123
        %v1585 = vpop.permute.xlu0 %1584
        %1586 = vrot.lane.b32.xlu0 %v1466, 123
        %v1587 = vpop.permute.xlu0 %1586
        %1588 = vrot.lane.b32.xlu0 %v1467, 123
        %v1589 = vpop.permute.xlu0 %1588
        %1590 = vrot.lane.b32.xlu0 %v1468, 123
        %v1591 = vpop.permute.xlu0 %1590
        %1592 = vrot.lane.b32.xlu0 %v1469, 123
        %v1593 = vpop.permute.xlu0 %1592
        %1594 = vrot.lane.b32.xlu0 %v1470, 123
        %v1595 = vpop.permute.xlu0 %1594
        %1596 = vrot.lane.b32.xlu0 %v1471, 123
        %v1597 = vpop.permute.xlu0 %1596
        %1598 = vrot.lane.b32.xlu0 %v1472, 123
        %v1599 = vpop.permute.xlu0 %1598
        %1600 = vrot.lane.b32.xlu0 %v1473, 123
        %v1601 = vpop.permute.xlu0 %1600
        %1602 = vrot.lane.b32.xlu0 %v1474, 123
        %v1603 = vpop.permute.xlu0 %1602
        %1604 = vrot.lane.b32.xlu0 %v1475, 123
        %v1605 = vpop.permute.xlu0 %1604
        %1606 = vrot.lane.b32.xlu0 %v1476, 123
        %v1607 = vpop.permute.xlu0 %1606
        %1608 = vrot.lane.b32.xlu0 %v1477, 123
        %v1609 = vpop.permute.xlu0 %1608
        %vm1610 = vcmask 1006592
        %v1611 = vsel %vm1610, %v1523, %v1525
        %v1612 = vsel %vm1610, %v1525, %v1527
        %v1613 = vsel %vm1610, %v1527, %v1529
        %v1614 = vsel %vm1610, %v1529, %v1531
        %v1615 = vsel %vm1610, %v1531, %v1533
        %v1616 = vsel %vm1610, %v1533, %v1535
        %v1617 = vsel %vm1610, %v1535, %v1537
        %v1618 = vsel %vm1610, %v1537, %v1539
        %v1619 = vsel %vm1610, %v1539, %v1541
        %v1620 = vsel %vm1610, %v1541, %v1543
        %v1621 = vsel %vm1610, %v1545, %v1547
        %v1622 = vsel %vm1610, %v1547, %v1549
        %v1623 = vsel %vm1610, %v1549, %v1551
        %v1624 = vsel %vm1610, %v1551, %v1553
        %v1625 = vsel %vm1610, %v1553, %v1555
        %v1626 = vsel %vm1610, %v1555, %v1557
        %v1627 = vsel %vm1610, %v1557, %v1559
        %v1628 = vsel %vm1610, %v1559, %v1561
        %v1629 = vsel %vm1610, %v1561, %v1563
        %v1630 = vsel %vm1610, %v1563, %v1565
        %v1631 = vsel %vm1610, %v1567, %v1569
        %v1632 = vsel %vm1610, %v1569, %v1571
        %v1633 = vsel %vm1610, %v1571, %v1573
        %v1634 = vsel %vm1610, %v1573, %v1575
        %v1635 = vsel %vm1610, %v1575, %v1577
        %v1636 = vsel %vm1610, %v1577, %v1579
        %v1637 = vsel %vm1610, %v1579, %v1581
        %v1638 = vsel %vm1610, %v1581, %v1583
        %v1639 = vsel %vm1610, %v1583, %v1585
        %v1640 = vsel %vm1610, %v1585, %v1587
        %v1641 = vsel %vm1610, %v1589, %v1591
        %v1642 = vsel %vm1610, %v1591, %v1593
        %v1643 = vsel %vm1610, %v1593, %v1595
        %v1644 = vsel %vm1610, %v1595, %v1597
        %v1645 = vsel %vm1610, %v1597, %v1599
        %v1646 = vsel %vm1610, %v1599, %v1601
        %v1647 = vsel %vm1610, %v1601, %v1603
        %v1648 = vsel %vm1610, %v1603, %v1605
        %v1649 = vsel %vm1610, %v1605, %v1607
        %v1650 = vsel %vm1610, %v1607, %v1609
        %1691 = vst [vmem:[#allocation2 + $0x640] sm:$0xff] %v1611
        %1692 = vst [vmem:[#allocation2 + $0x648] sm:$0xff] %v1612
        %1693 = vst [vmem:[#allocation2 + $0x650] sm:$0xff] %v1613
        %1694 = vst [vmem:[#allocation2 + $0x658] sm:$0xff] %v1614
        %1695 = vst [vmem:[#allocation2 + $0x660] sm:$0xff] %v1615
        %1696 = vst [vmem:[#allocation2 + $0x668] sm:$0xff] %v1616
        %1697 = vst [vmem:[#allocation2 + $0x670] sm:$0xff] %v1617
        %1698 = vst [vmem:[#allocation2 + $0x678] sm:$0xff] %v1618
        %1699 = vst [vmem:[#allocation2 + $0x680] sm:$0xff] %v1619
        %1700 = vst [vmem:[#allocation2 + $0x688] sm:$0xff] %v1620
        %1701 = vst [vmem:[#allocation2 + $0x690] sm:$0xff] %v1621
        %1702 = vst [vmem:[#allocation2 + $0x698] sm:$0xff] %v1622
        %1703 = vst [vmem:[#allocation2 + $0x6a0] sm:$0xff] %v1623
        %1704 = vst [vmem:[#allocation2 + $0x6a8] sm:$0xff] %v1624
        %1705 = vst [vmem:[#allocation2 + $0x6b0] sm:$0xff] %v1625
        %1706 = vst [vmem:[#allocation2 + $0x6b8] sm:$0xff] %v1626
        %1707 = vst [vmem:[#allocation2 + $0x6c0] sm:$0xff] %v1627
        %1708 = vst [vmem:[#allocation2 + $0x6c8] sm:$0xff] %v1628
        %1709 = vst [vmem:[#allocation2 + $0x6d0] sm:$0xff] %v1629
        %1710 = vst [vmem:[#allocation2 + $0x6d8] sm:$0xff] %v1630
        %1711 = vst [vmem:[#allocation2 + $0x6e0] sm:$0xff] %v1631
        %1712 = vst [vmem:[#allocation2 + $0x6e8] sm:$0xff] %v1632
        %1713 = vst [vmem:[#allocation2 + $0x6f0] sm:$0xff] %v1633
        %1714 = vst [vmem:[#allocation2 + $0x6f8] sm:$0xff] %v1634
        %1715 = vst [vmem:[#allocation2 + $0x700] sm:$0xff] %v1635
        %1716 = vst [vmem:[#allocation2 + $0x708] sm:$0xff] %v1636
        %1717 = vst [vmem:[#allocation2 + $0x710] sm:$0xff] %v1637
        %1718 = vst [vmem:[#allocation2 + $0x718] sm:$0xff] %v1638
        %1719 = vst [vmem:[#allocation2 + $0x720] sm:$0xff] %v1639
        %1720 = vst [vmem:[#allocation2 + $0x728] sm:$0xff] %v1640
        %1721 = vst [vmem:[#allocation2 + $0x730] sm:$0xff] %v1641
        %1722 = vst [vmem:[#allocation2 + $0x738] sm:$0xff] %v1642
        %1723 = vst [vmem:[#allocation2 + $0x740] sm:$0xff] %v1643
        %1724 = vst [vmem:[#allocation2 + $0x748] sm:$0xff] %v1644
        %1725 = vst [vmem:[#allocation2 + $0x750] sm:$0xff] %v1645
        %1726 = vst [vmem:[#allocation2 + $0x758] sm:$0xff] %v1646
        %1727 = vst [vmem:[#allocation2 + $0x760] sm:$0xff] %v1647
        %1728 = vst [vmem:[#allocation2 + $0x768] sm:$0xff] %v1648
        %1729 = vst [vmem:[#allocation2 + $0x770] sm:$0xff] %v1649
        %1730 = vst [vmem:[#allocation2 + $0x778] sm:$0xff] %v1650
        %v1731 = vld [vmem:[%s164] sm:$0xff]
        %v1732 = vld [vmem:[%s164 + $0x8] sm:$0xff]
        %v1733 = vld [vmem:[%s164 + $0x10] sm:$0xff]
        %v1734 = vld [vmem:[%s164 + $0x18] sm:$0xff]
        %v1735 = vld [vmem:[%s164 + $0x20] sm:$0xff]
        %v1736 = vld [vmem:[%s164 + $0x28] sm:$0xff]
        %v1737 = vld [vmem:[%s164 + $0x30] sm:$0xff]
        %v1738 = vld [vmem:[%s164 + $0x38] sm:$0xff]
        %v1739 = vld [vmem:[%s164 + $0x40] sm:$0xff]
        %v1740 = vld [vmem:[%s164 + $0x48] sm:$0xff]
        %v1741 = vld [vmem:[%s164 + $0x50] sm:$0xff]
        %v1742 = vld [vmem:[%s164 + $0x58] sm:$0xff]
        %v1743 = vld [vmem:[%s164 + $0x60] sm:$0xff]
        %v1744 = vld [vmem:[%s164 + $0x68] sm:$0xff]
        %v1745 = vld [vmem:[%s164 + $0x70] sm:$0xff]
        %v1746 = vld [vmem:[%s164 + $0x78] sm:$0xff]
        %v1747 = vld [vmem:[%s164 + $0x80] sm:$0xff]
        %v1748 = vld [vmem:[%s164 + $0x88] sm:$0xff]
        %v1749 = vld [vmem:[%s164 + $0x90] sm:$0xff]
        %v1750 = vld [vmem:[%s164 + $0x98] sm:$0xff]
        %v1751 = vld [vmem:[%s164 + $0xa0] sm:$0xff]
        %v1752 = vld [vmem:[%s164 + $0xa8] sm:$0xff]
        %v1753 = vld [vmem:[%s164 + $0xb0] sm:$0xff]
        %v1754 = vld [vmem:[%s164 + $0xb8] sm:$0xff]
        %v1755 = vld [vmem:[%s164 + $0xc0] sm:$0xff]
        %v1756 = vld [vmem:[%s164 + $0xc8] sm:$0xff]
        %v1757 = vld [vmem:[%s164 + $0xd0] sm:$0xff]
        %v1758 = vld [vmem:[%s164 + $0xd8] sm:$0xff]
        %v1759 = vld [vmem:[%s164 + $0xe0] sm:$0xff]
        %v1760 = vld [vmem:[%s164 + $0xe8] sm:$0xff]
        %v1761 = vld [vmem:[%s164 + $0xf0] sm:$0xff]
        %v1762 = vld [vmem:[%s164 + $0xf8] sm:$0xff]
        %v1763 = vld [vmem:[%s164 + $0x100] sm:$0xff]
        %v1764 = vld [vmem:[%s164 + $0x108] sm:$0xff]
        %v1765 = vld [vmem:[%s164 + $0x110] sm:$0xff]
        %v1766 = vld [vmem:[%s164 + $0x118] sm:$0xff]
        %v1767 = vld [vmem:[%s164 + $0x120] sm:$0xff]
        %v1768 = vld [vmem:[%s164 + $0x128] sm:$0xff]
        %v1769 = vld [vmem:[%s164 + $0x130] sm:$0xff]
        %v1770 = vld [vmem:[%s164 + $0x138] sm:$0xff]
        %v1771 = vld [vmem:[%s164 + $0x140] sm:$0xff]
        %v1772 = vld [vmem:[%s164 + $0x148] sm:$0xff]
        %v1773 = vld [vmem:[%s164 + $0x150] sm:$0xff]
        %v1774 = vld [vmem:[%s164 + $0x158] sm:$0xff]
        %1819 = vrot.lane.b32.xlu0 %v1731, 122
        %v1820 = vpop.permute.xlu0 %1819
        %1821 = vrot.lane.b32.xlu0 %v1732, 122
        %v1822 = vpop.permute.xlu0 %1821
        %1823 = vrot.lane.b32.xlu0 %v1733, 122
        %v1824 = vpop.permute.xlu0 %1823
        %1825 = vrot.lane.b32.xlu0 %v1734, 122
        %v1826 = vpop.permute.xlu0 %1825
        %1827 = vrot.lane.b32.xlu0 %v1735, 122
        %v1828 = vpop.permute.xlu0 %1827
        %1829 = vrot.lane.b32.xlu0 %v1736, 122
        %v1830 = vpop.permute.xlu0 %1829
        %1831 = vrot.lane.b32.xlu0 %v1737, 122
        %v1832 = vpop.permute.xlu0 %1831
        %1833 = vrot.lane.b32.xlu0 %v1738, 122
        %v1834 = vpop.permute.xlu0 %1833
        %1835 = vrot.lane.b32.xlu0 %v1739, 122
        %v1836 = vpop.permute.xlu0 %1835
        %1837 = vrot.lane.b32.xlu0 %v1740, 122
        %v1838 = vpop.permute.xlu0 %1837
        %1839 = vrot.lane.b32.xlu0 %v1741, 122
        %v1840 = vpop.permute.xlu0 %1839
        %1841 = vrot.lane.b32.xlu0 %v1742, 122
        %v1842 = vpop.permute.xlu0 %1841
        %1843 = vrot.lane.b32.xlu0 %v1743, 122
        %v1844 = vpop.permute.xlu0 %1843
        %1845 = vrot.lane.b32.xlu0 %v1744, 122
        %v1846 = vpop.permute.xlu0 %1845
        %1847 = vrot.lane.b32.xlu0 %v1745, 122
        %v1848 = vpop.permute.xlu0 %1847
        %1849 = vrot.lane.b32.xlu0 %v1746, 122
        %v1850 = vpop.permute.xlu0 %1849
        %1851 = vrot.lane.b32.xlu0 %v1747, 122
        %v1852 = vpop.permute.xlu0 %1851
        %1853 = vrot.lane.b32.xlu0 %v1748, 122
        %v1854 = vpop.permute.xlu0 %1853
        %1855 = vrot.lane.b32.xlu0 %v1749, 122
        %v1856 = vpop.permute.xlu0 %1855
        %1857 = vrot.lane.b32.xlu0 %v1750, 122
        %v1858 = vpop.permute.xlu0 %1857
        %1859 = vrot.lane.b32.xlu0 %v1751, 122
        %v1860 = vpop.permute.xlu0 %1859
        %1861 = vrot.lane.b32.xlu0 %v1752, 122
        %v1862 = vpop.permute.xlu0 %1861
        %1863 = vrot.lane.b32.xlu0 %v1753, 122
        %v1864 = vpop.permute.xlu0 %1863
        %1865 = vrot.lane.b32.xlu0 %v1754, 122
        %v1866 = vpop.permute.xlu0 %1865
        %1867 = vrot.lane.b32.xlu0 %v1755, 122
        %v1868 = vpop.permute.xlu0 %1867
        %1869 = vrot.lane.b32.xlu0 %v1756, 122
        %v1870 = vpop.permute.xlu0 %1869
        %1871 = vrot.lane.b32.xlu0 %v1757, 122
        %v1872 = vpop.permute.xlu0 %1871
        %1873 = vrot.lane.b32.xlu0 %v1758, 122
        %v1874 = vpop.permute.xlu0 %1873
        %1875 = vrot.lane.b32.xlu0 %v1759, 122
        %v1876 = vpop.permute.xlu0 %1875
        %1877 = vrot.lane.b32.xlu0 %v1760, 122
        %v1878 = vpop.permute.xlu0 %1877
        %1879 = vrot.lane.b32.xlu0 %v1761, 122
        %v1880 = vpop.permute.xlu0 %1879
        %1881 = vrot.lane.b32.xlu0 %v1762, 122
        %v1882 = vpop.permute.xlu0 %1881
        %1883 = vrot.lane.b32.xlu0 %v1763, 122
        %v1884 = vpop.permute.xlu0 %1883
        %1885 = vrot.lane.b32.xlu0 %v1764, 122
        %v1886 = vpop.permute.xlu0 %1885
        %1887 = vrot.lane.b32.xlu0 %v1765, 122
        %v1888 = vpop.permute.xlu0 %1887
        %1889 = vrot.lane.b32.xlu0 %v1766, 122
        %v1890 = vpop.permute.xlu0 %1889
        %1891 = vrot.lane.b32.xlu0 %v1767, 122
        %v1892 = vpop.permute.xlu0 %1891
        %1893 = vrot.lane.b32.xlu0 %v1768, 122
        %v1894 = vpop.permute.xlu0 %1893
        %1895 = vrot.lane.b32.xlu0 %v1769, 122
        %v1896 = vpop.permute.xlu0 %1895
        %1897 = vrot.lane.b32.xlu0 %v1770, 122
        %v1898 = vpop.permute.xlu0 %1897
        %1899 = vrot.lane.b32.xlu0 %v1771, 122
        %v1900 = vpop.permute.xlu0 %1899
        %1901 = vrot.lane.b32.xlu0 %v1772, 122
        %v1902 = vpop.permute.xlu0 %1901
        %1903 = vrot.lane.b32.xlu0 %v1773, 122
        %v1904 = vpop.permute.xlu0 %1903
        %1905 = vrot.lane.b32.xlu0 %v1774, 122
        %v1906 = vpop.permute.xlu0 %1905
        %vm1907 = vcmask 998400
        %v1908 = vsel %vm1907, %v1820, %v1822
        %v1909 = vsel %vm1907, %v1822, %v1824
        %v1910 = vsel %vm1907, %v1824, %v1826
        %v1911 = vsel %vm1907, %v1826, %v1828
        %v1912 = vsel %vm1907, %v1828, %v1830
        %v1913 = vsel %vm1907, %v1830, %v1832
        %v1914 = vsel %vm1907, %v1832, %v1834
        %v1915 = vsel %vm1907, %v1834, %v1836
        %v1916 = vsel %vm1907, %v1836, %v1838
        %v1917 = vsel %vm1907, %v1838, %v1840
        %v1918 = vsel %vm1907, %v1842, %v1844
        %v1919 = vsel %vm1907, %v1844, %v1846
        %v1920 = vsel %vm1907, %v1846, %v1848
        %v1921 = vsel %vm1907, %v1848, %v1850
        %v1922 = vsel %vm1907, %v1850, %v1852
        %v1923 = vsel %vm1907, %v1852, %v1854
        %v1924 = vsel %vm1907, %v1854, %v1856
        %v1925 = vsel %vm1907, %v1856, %v1858
        %v1926 = vsel %vm1907, %v1858, %v1860
        %v1927 = vsel %vm1907, %v1860, %v1862
        %v1928 = vsel %vm1907, %v1864, %v1866
        %v1929 = vsel %vm1907, %v1866, %v1868
        %v1930 = vsel %vm1907, %v1868, %v1870
        %v1931 = vsel %vm1907, %v1870, %v1872
        %v1932 = vsel %vm1907, %v1872, %v1874
        %v1933 = vsel %vm1907, %v1874, %v1876
        %v1934 = vsel %vm1907, %v1876, %v1878
        %v1935 = vsel %vm1907, %v1878, %v1880
        %v1936 = vsel %vm1907, %v1880, %v1882
        %v1937 = vsel %vm1907, %v1882, %v1884
        %v1938 = vsel %vm1907, %v1886, %v1888
        %v1939 = vsel %vm1907, %v1888, %v1890
        %v1940 = vsel %vm1907, %v1890, %v1892
        %v1941 = vsel %vm1907, %v1892, %v1894
        %v1942 = vsel %vm1907, %v1894, %v1896
        %v1943 = vsel %vm1907, %v1896, %v1898
        %v1944 = vsel %vm1907, %v1898, %v1900
        %v1945 = vsel %vm1907, %v1900, %v1902
        %v1946 = vsel %vm1907, %v1902, %v1904
        %v1947 = vsel %vm1907, %v1904, %v1906
        %1988 = vst [vmem:[#allocation2 + $0x780] sm:$0xff] %v1908
        %1989 = vst [vmem:[#allocation2 + $0x788] sm:$0xff] %v1909
        %1990 = vst [vmem:[#allocation2 + $0x790] sm:$0xff] %v1910
        %1991 = vst [vmem:[#allocation2 + $0x798] sm:$0xff] %v1911
        %1992 = vst [vmem:[#allocation2 + $0x7a0] sm:$0xff] %v1912
        %1993 = vst [vmem:[#allocation2 + $0x7a8] sm:$0xff] %v1913
        %1994 = vst [vmem:[#allocation2 + $0x7b0] sm:$0xff] %v1914
        %1995 = vst [vmem:[#allocation2 + $0x7b8] sm:$0xff] %v1915
        %1996 = vst [vmem:[#allocation2 + $0x7c0] sm:$0xff] %v1916
        %1997 = vst [vmem:[#allocation2 + $0x7c8] sm:$0xff] %v1917
        %1998 = vst [vmem:[#allocation2 + $0x7d0] sm:$0xff] %v1918
        %1999 = vst [vmem:[#allocation2 + $0x7d8] sm:$0xff] %v1919
        %2000 = vst [vmem:[#allocation2 + $0x7e0] sm:$0xff] %v1920
        %2001 = vst [vmem:[#allocation2 + $0x7e8] sm:$0xff] %v1921
        %2002 = vst [vmem:[#allocation2 + $0x7f0] sm:$0xff] %v1922
        %2003 = vst [vmem:[#allocation2 + $0x7f8] sm:$0xff] %v1923
        %2004 = vst [vmem:[#allocation2 + $0x800] sm:$0xff] %v1924
        %2005 = vst [vmem:[#allocation2 + $0x808] sm:$0xff] %v1925
        %2006 = vst [vmem:[#allocation2 + $0x810] sm:$0xff] %v1926
        %2007 = vst [vmem:[#allocation2 + $0x818] sm:$0xff] %v1927
        %2008 = vst [vmem:[#allocation2 + $0x820] sm:$0xff] %v1928
        %2009 = vst [vmem:[#allocation2 + $0x828] sm:$0xff] %v1929
        %2010 = vst [vmem:[#allocation2 + $0x830] sm:$0xff] %v1930
        %2011 = vst [vmem:[#allocation2 + $0x838] sm:$0xff] %v1931
        %2012 = vst [vmem:[#allocation2 + $0x840] sm:$0xff] %v1932
        %2013 = vst [vmem:[#allocation2 + $0x848] sm:$0xff] %v1933
        %2014 = vst [vmem:[#allocation2 + $0x850] sm:$0xff] %v1934
        %2015 = vst [vmem:[#allocation2 + $0x858] sm:$0xff] %v1935
        %2016 = vst [vmem:[#allocation2 + $0x860] sm:$0xff] %v1936
        %2017 = vst [vmem:[#allocation2 + $0x868] sm:$0xff] %v1937
        %2018 = vst [vmem:[#allocation2 + $0x870] sm:$0xff] %v1938
        %2019 = vst [vmem:[#allocation2 + $0x878] sm:$0xff] %v1939
        %2020 = vst [vmem:[#allocation2 + $0x880] sm:$0xff] %v1940
        %2021 = vst [vmem:[#allocation2 + $0x888] sm:$0xff] %v1941
        %2022 = vst [vmem:[#allocation2 + $0x890] sm:$0xff] %v1942
        %2023 = vst [vmem:[#allocation2 + $0x898] sm:$0xff] %v1943
        %2024 = vst [vmem:[#allocation2 + $0x8a0] sm:$0xff] %v1944
        %2025 = vst [vmem:[#allocation2 + $0x8a8] sm:$0xff] %v1945
        %2026 = vst [vmem:[#allocation2 + $0x8b0] sm:$0xff] %v1946
        %2027 = vst [vmem:[#allocation2 + $0x8b8] sm:$0xff] %v1947
        %v2028 = vld [vmem:[%s1] sm:$0xff]
        %v2029 = vld [vmem:[%s1 + $0x8] sm:$0xff]
        %v2030 = vld [vmem:[%s1 + $0x10] sm:$0xff]
        %v2031 = vld [vmem:[%s1 + $0x18] sm:$0xff]
        %v2032 = vld [vmem:[%s1 + $0x20] sm:$0xff]
        %v2033 = vld [vmem:[%s1 + $0x28] sm:$0xff]
        %v2034 = vld [vmem:[%s1 + $0x30] sm:$0xff]
        %v2035 = vld [vmem:[%s1 + $0x38] sm:$0xff]
        %v2036 = vld [vmem:[%s1 + $0x40] sm:$0xff]
        %v2037 = vld [vmem:[%s1 + $0x48] sm:$0xff]
        %v2038 = vld [vmem:[%s1 + $0x50] sm:$0xff]
        %v2039 = vld [vmem:[%s1 + $0x58] sm:$0xff]
        %v2040 = vld [vmem:[%s1 + $0x60] sm:$0xff]
        %v2041 = vld [vmem:[%s1 + $0x68] sm:$0xff]
        %v2042 = vld [vmem:[%s1 + $0x70] sm:$0xff]
        %v2043 = vld [vmem:[%s1 + $0x78] sm:$0xff]
        %v2044 = vld [vmem:[#allocation2] sm:$0xff]
        %v2045 = vld [vmem:[#allocation2 + $0x8] sm:$0xff]
        %v2046 = vld [vmem:[#allocation2 + $0x10] sm:$0xff]
        %v2047 = vld [vmem:[#allocation2 + $0x18] sm:$0xff]
        %v2048 = vld [vmem:[#allocation2 + $0x20] sm:$0xff]
        %v2049 = vld [vmem:[#allocation2 + $0x28] sm:$0xff]
        %v2050 = vld [vmem:[#allocation2 + $0x30] sm:$0xff]
        %v2051 = vld [vmem:[#allocation2 + $0x38] sm:$0xff]
        %v2052 = vld [vmem:[#allocation2 + $0x40] sm:$0xff]
        %v2053 = vld [vmem:[#allocation2 + $0x48] sm:$0xff]
        %v2054 = vld [vmem:[#allocation2 + $0x50] sm:$0xff]
        %v2055 = vld [vmem:[#allocation2 + $0x58] sm:$0xff]
        %v2056 = vld [vmem:[#allocation2 + $0x60] sm:$0xff]
        %v2057 = vld [vmem:[#allocation2 + $0x68] sm:$0xff]
        %v2058 = vld [vmem:[#allocation2 + $0x70] sm:$0xff]
        %v2059 = vld [vmem:[#allocation2 + $0x78] sm:$0xff]
        %v2060 = vld [vmem:[#allocation2 + $0x80] sm:$0xff]
        %v2061 = vld [vmem:[#allocation2 + $0x88] sm:$0xff]
        %v2062 = vld [vmem:[#allocation2 + $0x90] sm:$0xff]
        %v2063 = vld [vmem:[#allocation2 + $0x98] sm:$0xff]
        %v2064 = vld [vmem:[#allocation2 + $0xa0] sm:$0xff]
        %v2065 = vld [vmem:[#allocation2 + $0xa8] sm:$0xff]
        %v2066 = vld [vmem:[#allocation2 + $0xb0] sm:$0xff]
        %v2067 = vld [vmem:[#allocation2 + $0xb8] sm:$0xff]
        %v2068 = vld [vmem:[#allocation2 + $0xc0] sm:$0xff]
        %v2069 = vld [vmem:[#allocation2 + $0xc8] sm:$0xff]
        %v2070 = vld [vmem:[#allocation2 + $0xd0] sm:$0xff]
        %v2071 = vld [vmem:[#allocation2 + $0xd8] sm:$0xff]
        %v2072 = vld [vmem:[#allocation2 + $0xe0] sm:$0xff]
        %v2073 = vld [vmem:[#allocation2 + $0xe8] sm:$0xff]
        %v2074 = vld [vmem:[#allocation2 + $0xf0] sm:$0xff]
        %v2075 = vld [vmem:[#allocation2 + $0xf8] sm:$0xff]
        %v2076 = vld [vmem:[#allocation2 + $0x100] sm:$0xff]
        %v2077 = vld [vmem:[#allocation2 + $0x108] sm:$0xff]
        %v2078 = vld [vmem:[#allocation2 + $0x110] sm:$0xff]
        %v2079 = vld [vmem:[#allocation2 + $0x118] sm:$0xff]
        %v2080 = vld [vmem:[#allocation2 + $0x120] sm:$0xff]
        %v2081 = vld [vmem:[#allocation2 + $0x128] sm:$0xff]
        %v2082 = vld [vmem:[#allocation2 + $0x130] sm:$0xff]
        %v2083 = vld [vmem:[#allocation2 + $0x138] sm:$0xff]
        %v2084 = vld [vmem:[#allocation2 + $0x140] sm:$0xff]
        %v2085 = vld [vmem:[#allocation2 + $0x148] sm:$0xff]
        %v2086 = vld [vmem:[#allocation2 + $0x150] sm:$0xff]
        %v2087 = vld [vmem:[#allocation2 + $0x158] sm:$0xff]
        %v2088 = vld [vmem:[#allocation2 + $0x160] sm:$0xff]
        %v2089 = vld [vmem:[#allocation2 + $0x168] sm:$0xff]
        %v2090 = vld [vmem:[#allocation2 + $0x170] sm:$0xff]
        %v2091 = vld [vmem:[#allocation2 + $0x178] sm:$0xff]
        %v2092 = vld [vmem:[#allocation2 + $0x180] sm:$0xff]
        %v2093 = vld [vmem:[#allocation2 + $0x188] sm:$0xff]
        %v2094 = vld [vmem:[#allocation2 + $0x190] sm:$0xff]
        %v2095 = vld [vmem:[#allocation2 + $0x198] sm:$0xff]
        %v2096 = vld [vmem:[#allocation2 + $0x1a0] sm:$0xff]
        %v2097 = vld [vmem:[#allocation2 + $0x1a8] sm:$0xff]
        %v2098 = vld [vmem:[#allocation2 + $0x1b0] sm:$0xff]
        %v2099 = vld [vmem:[#allocation2 + $0x1b8] sm:$0xff]
        %v2100 = vld [vmem:[#allocation2 + $0x1c0] sm:$0xff]
        %v2101 = vld [vmem:[#allocation2 + $0x1c8] sm:$0xff]
        %v2102 = vld [vmem:[#allocation2 + $0x1d0] sm:$0xff]
        %v2103 = vld [vmem:[#allocation2 + $0x1d8] sm:$0xff]
        %v2104 = vld [vmem:[#allocation2 + $0x1e0] sm:$0xff]
        %v2105 = vld [vmem:[#allocation2 + $0x1e8] sm:$0xff]
        %v2106 = vld [vmem:[#allocation2 + $0x1f0] sm:$0xff]
        %v2107 = vld [vmem:[#allocation2 + $0x1f8] sm:$0xff]
        %v2108 = vld [vmem:[#allocation2 + $0x200] sm:$0xff]
        %v2109 = vld [vmem:[#allocation2 + $0x208] sm:$0xff]
        %v2110 = vld [vmem:[#allocation2 + $0x210] sm:$0xff]
        %v2111 = vld [vmem:[#allocation2 + $0x218] sm:$0xff]
        %v2112 = vld [vmem:[#allocation2 + $0x220] sm:$0xff]
        %v2113 = vld [vmem:[#allocation2 + $0x228] sm:$0xff]
        %v2114 = vld [vmem:[#allocation2 + $0x230] sm:$0xff]
        %v2115 = vld [vmem:[#allocation2 + $0x238] sm:$0xff]
        %v2116 = vld [vmem:[#allocation2 + $0x240] sm:$0xff]
        %v2117 = vld [vmem:[#allocation2 + $0x248] sm:$0xff]
        %v2118 = vld [vmem:[#allocation2 + $0x250] sm:$0xff]
        %v2119 = vld [vmem:[#allocation2 + $0x258] sm:$0xff]
        %v2120 = vld [vmem:[#allocation2 + $0x260] sm:$0xff]
        %v2121 = vld [vmem:[#allocation2 + $0x268] sm:$0xff]
        %v2122 = vld [vmem:[#allocation2 + $0x270] sm:$0xff]
        %v2123 = vld [vmem:[#allocation2 + $0x278] sm:$0xff]
        %v2124 = vld [vmem:[#allocation2 + $0x280] sm:$0xff]
        %v2125 = vld [vmem:[#allocation2 + $0x288] sm:$0xff]
        %v2126 = vld [vmem:[#allocation2 + $0x290] sm:$0xff]
        %v2127 = vld [vmem:[#allocation2 + $0x298] sm:$0xff]
        %v2128 = vld [vmem:[#allocation2 + $0x2a0] sm:$0xff]
        %v2129 = vld [vmem:[#allocation2 + $0x2a8] sm:$0xff]
        %v2130 = vld [vmem:[#allocation2 + $0x2b0] sm:$0xff]
        %v2131 = vld [vmem:[#allocation2 + $0x2b8] sm:$0xff]
        %v2132 = vld [vmem:[#allocation2 + $0x2c0] sm:$0xff]
        %v2133 = vld [vmem:[#allocation2 + $0x2c8] sm:$0xff]
        %v2134 = vld [vmem:[#allocation2 + $0x2d0] sm:$0xff]
        %v2135 = vld [vmem:[#allocation2 + $0x2d8] sm:$0xff]
        %v2136 = vld [vmem:[#allocation2 + $0x2e0] sm:$0xff]
        %v2137 = vld [vmem:[#allocation2 + $0x2e8] sm:$0xff]
        %v2138 = vld [vmem:[#allocation2 + $0x2f0] sm:$0xff]
        %v2139 = vld [vmem:[#allocation2 + $0x2f8] sm:$0xff]
        %v2140 = vld [vmem:[#allocation2 + $0x300] sm:$0xff]
        %v2141 = vld [vmem:[#allocation2 + $0x308] sm:$0xff]
        %v2142 = vld [vmem:[#allocation2 + $0x310] sm:$0xff]
        %v2143 = vld [vmem:[#allocation2 + $0x318] sm:$0xff]
        %v2144 = vld [vmem:[#allocation2 + $0x320] sm:$0xff]
        %v2145 = vld [vmem:[#allocation2 + $0x328] sm:$0xff]
        %v2146 = vld [vmem:[#allocation2 + $0x330] sm:$0xff]
        %v2147 = vld [vmem:[#allocation2 + $0x338] sm:$0xff]
        %v2148 = vld [vmem:[#allocation2 + $0x340] sm:$0xff]
        %v2149 = vld [vmem:[#allocation2 + $0x348] sm:$0xff]
        %v2150 = vld [vmem:[#allocation2 + $0x350] sm:$0xff]
        %v2151 = vld [vmem:[#allocation2 + $0x358] sm:$0xff]
        %v2152 = vld [vmem:[#allocation2 + $0x360] sm:$0xff]
        %v2153 = vld [vmem:[#allocation2 + $0x368] sm:$0xff]
        %v2154 = vld [vmem:[#allocation2 + $0x370] sm:$0xff]
        %v2155 = vld [vmem:[#allocation2 + $0x378] sm:$0xff]
        %v2156 = vld [vmem:[#allocation2 + $0x380] sm:$0xff]
        %v2157 = vld [vmem:[#allocation2 + $0x388] sm:$0xff]
        %v2158 = vld [vmem:[#allocation2 + $0x390] sm:$0xff]
        %v2159 = vld [vmem:[#allocation2 + $0x398] sm:$0xff]
        %v2160 = vld [vmem:[#allocation2 + $0x3a0] sm:$0xff]
        %v2161 = vld [vmem:[#allocation2 + $0x3a8] sm:$0xff]
        %v2162 = vld [vmem:[#allocation2 + $0x3b0] sm:$0xff]
        %v2163 = vld [vmem:[#allocation2 + $0x3b8] sm:$0xff]
        %v2164 = vld [vmem:[#allocation2 + $0x3c0] sm:$0xff]
        %v2165 = vld [vmem:[#allocation2 + $0x3c8] sm:$0xff]
        %v2166 = vld [vmem:[#allocation2 + $0x3d0] sm:$0xff]
        %v2167 = vld [vmem:[#allocation2 + $0x3d8] sm:$0xff]
        %v2168 = vld [vmem:[#allocation2 + $0x3e0] sm:$0xff]
        %v2169 = vld [vmem:[#allocation2 + $0x3e8] sm:$0xff]
        %v2170 = vld [vmem:[#allocation2 + $0x3f0] sm:$0xff]
        %v2171 = vld [vmem:[#allocation2 + $0x3f8] sm:$0xff]
        %v2172 = vld [vmem:[#allocation2 + $0x400] sm:$0xff]
        %v2173 = vld [vmem:[#allocation2 + $0x408] sm:$0xff]
        %v2174 = vld [vmem:[#allocation2 + $0x410] sm:$0xff]
        %v2175 = vld [vmem:[#allocation2 + $0x418] sm:$0xff]
        %v2176 = vld [vmem:[#allocation2 + $0x420] sm:$0xff]
        %v2177 = vld [vmem:[#allocation2 + $0x428] sm:$0xff]
        %v2178 = vld [vmem:[#allocation2 + $0x430] sm:$0xff]
        %v2179 = vld [vmem:[#allocation2 + $0x438] sm:$0xff]
        %v2180 = vld [vmem:[#allocation2 + $0x440] sm:$0xff]
        %v2181 = vld [vmem:[#allocation2 + $0x448] sm:$0xff]
        %v2182 = vld [vmem:[#allocation2 + $0x450] sm:$0xff]
        %v2183 = vld [vmem:[#allocation2 + $0x458] sm:$0xff]
        %v2184 = vld [vmem:[#allocation2 + $0x460] sm:$0xff]
        %v2185 = vld [vmem:[#allocation2 + $0x468] sm:$0xff]
        %v2186 = vld [vmem:[#allocation2 + $0x470] sm:$0xff]
        %v2187 = vld [vmem:[#allocation2 + $0x478] sm:$0xff]
        %v2188 = vld [vmem:[#allocation2 + $0x480] sm:$0xff]
        %v2189 = vld [vmem:[#allocation2 + $0x488] sm:$0xff]
        %v2190 = vld [vmem:[#allocation2 + $0x490] sm:$0xff]
        %v2191 = vld [vmem:[#allocation2 + $0x498] sm:$0xff]
        %v2192 = vld [vmem:[#allocation2 + $0x4a0] sm:$0xff]
        %v2193 = vld [vmem:[#allocation2 + $0x4a8] sm:$0xff]
        %v2194 = vld [vmem:[#allocation2 + $0x4b0] sm:$0xff]
        %v2195 = vld [vmem:[#allocation2 + $0x4b8] sm:$0xff]
        %v2196 = vld [vmem:[#allocation2 + $0x4c0] sm:$0xff]
        %v2197 = vld [vmem:[#allocation2 + $0x4c8] sm:$0xff]
        %v2198 = vld [vmem:[#allocation2 + $0x4d0] sm:$0xff]
        %v2199 = vld [vmem:[#allocation2 + $0x4d8] sm:$0xff]
        %v2200 = vld [vmem:[#allocation2 + $0x4e0] sm:$0xff]
        %v2201 = vld [vmem:[#allocation2 + $0x4e8] sm:$0xff]
        %v2202 = vld [vmem:[#allocation2 + $0x4f0] sm:$0xff]
        %v2203 = vld [vmem:[#allocation2 + $0x4f8] sm:$0xff]
        %v2204 = vld [vmem:[#allocation2 + $0x500] sm:$0xff]
        %v2205 = vld [vmem:[#allocation2 + $0x508] sm:$0xff]
        %v2206 = vld [vmem:[#allocation2 + $0x510] sm:$0xff]
        %v2207 = vld [vmem:[#allocation2 + $0x518] sm:$0xff]
        %v2208 = vld [vmem:[#allocation2 + $0x520] sm:$0xff]
        %v2209 = vld [vmem:[#allocation2 + $0x528] sm:$0xff]
        %v2210 = vld [vmem:[#allocation2 + $0x530] sm:$0xff]
        %v2211 = vld [vmem:[#allocation2 + $0x538] sm:$0xff]
        %v2212 = vld [vmem:[#allocation2 + $0x540] sm:$0xff]
        %v2213 = vld [vmem:[#allocation2 + $0x548] sm:$0xff]
        %v2214 = vld [vmem:[#allocation2 + $0x550] sm:$0xff]
        %v2215 = vld [vmem:[#allocation2 + $0x558] sm:$0xff]
        %v2216 = vld [vmem:[#allocation2 + $0x560] sm:$0xff]
        %v2217 = vld [vmem:[#allocation2 + $0x568] sm:$0xff]
        %v2218 = vld [vmem:[#allocation2 + $0x570] sm:$0xff]
        %v2219 = vld [vmem:[#allocation2 + $0x578] sm:$0xff]
        %v2220 = vld [vmem:[#allocation2 + $0x580] sm:$0xff]
        %v2221 = vld [vmem:[#allocation2 + $0x588] sm:$0xff]
        %v2222 = vld [vmem:[#allocation2 + $0x590] sm:$0xff]
        %v2223 = vld [vmem:[#allocation2 + $0x598] sm:$0xff]
        %v2224 = vld [vmem:[#allocation2 + $0x5a0] sm:$0xff]
        %v2225 = vld [vmem:[#allocation2 + $0x5a8] sm:$0xff]
        %v2226 = vld [vmem:[#allocation2 + $0x5b0] sm:$0xff]
        %v2227 = vld [vmem:[#allocation2 + $0x5b8] sm:$0xff]
        %v2228 = vld [vmem:[#allocation2 + $0x5c0] sm:$0xff]
        %v2229 = vld [vmem:[#allocation2 + $0x5c8] sm:$0xff]
        %v2230 = vld [vmem:[#allocation2 + $0x5d0] sm:$0xff]
        %v2231 = vld [vmem:[#allocation2 + $0x5d8] sm:$0xff]
        %v2232 = vld [vmem:[#allocation2 + $0x5e0] sm:$0xff]
        %v2233 = vld [vmem:[#allocation2 + $0x5e8] sm:$0xff]
        %v2234 = vld [vmem:[#allocation2 + $0x5f0] sm:$0xff]
        %v2235 = vld [vmem:[#allocation2 + $0x5f8] sm:$0xff]
        %v2236 = vld [vmem:[#allocation2 + $0x600] sm:$0xff]
        %v2237 = vld [vmem:[#allocation2 + $0x608] sm:$0xff]
        %v2238 = vld [vmem:[#allocation2 + $0x610] sm:$0xff]
        %v2239 = vld [vmem:[#allocation2 + $0x618] sm:$0xff]
        %v2240 = vld [vmem:[#allocation2 + $0x620] sm:$0xff]
        %v2241 = vld [vmem:[#allocation2 + $0x628] sm:$0xff]
        %v2242 = vld [vmem:[#allocation2 + $0x630] sm:$0xff]
        %v2243 = vld [vmem:[#allocation2 + $0x638] sm:$0xff]
        %v2244 = vld [vmem:[#allocation2 + $0x640] sm:$0xff]
        %v2245 = vld [vmem:[#allocation2 + $0x648] sm:$0xff]
        %v2246 = vld [vmem:[#allocation2 + $0x650] sm:$0xff]
        %v2247 = vld [vmem:[#allocation2 + $0x658] sm:$0xff]
        %v2248 = vld [vmem:[#allocation2 + $0x660] sm:$0xff]
        %v2249 = vld [vmem:[#allocation2 + $0x668] sm:$0xff]
        %v2250 = vld [vmem:[#allocation2 + $0x670] sm:$0xff]
        %v2251 = vld [vmem:[#allocation2 + $0x678] sm:$0xff]
        %v2252 = vld [vmem:[#allocation2 + $0x680] sm:$0xff]
        %v2253 = vld [vmem:[#allocation2 + $0x688] sm:$0xff]
        %v2254 = vld [vmem:[#allocation2 + $0x690] sm:$0xff]
        %v2255 = vld [vmem:[#allocation2 + $0x698] sm:$0xff]
        %v2256 = vld [vmem:[#allocation2 + $0x6a0] sm:$0xff]
        %v2257 = vld [vmem:[#allocation2 + $0x6a8] sm:$0xff]
        %v2258 = vld [vmem:[#allocation2 + $0x6b0] sm:$0xff]
        %v2259 = vld [vmem:[#allocation2 + $0x6b8] sm:$0xff]
        %v2260 = vld [vmem:[#allocation2 + $0x6c0] sm:$0xff]
        %v2261 = vld [vmem:[#allocation2 + $0x6c8] sm:$0xff]
        %v2262 = vld [vmem:[#allocation2 + $0x6d0] sm:$0xff]
        %v2263 = vld [vmem:[#allocation2 + $0x6d8] sm:$0xff]
        %v2264 = vld [vmem:[#allocation2 + $0x6e0] sm:$0xff]
        %v2265 = vld [vmem:[#allocation2 + $0x6e8] sm:$0xff]
        %v2266 = vld [vmem:[#allocation2 + $0x6f0] sm:$0xff]
        %v2267 = vld [vmem:[#allocation2 + $0x6f8] sm:$0xff]
        %v2268 = vld [vmem:[#allocation2 + $0x700] sm:$0xff]
        %v2269 = vld [vmem:[#allocation2 + $0x708] sm:$0xff]
        %v2270 = vld [vmem:[#allocation2 + $0x710] sm:$0xff]
        %v2271 = vld [vmem:[#allocation2 + $0x718] sm:$0xff]
        %v2272 = vld [vmem:[#allocation2 + $0x720] sm:$0xff]
        %v2273 = vld [vmem:[#allocation2 + $0x728] sm:$0xff]
        %v2274 = vld [vmem:[#allocation2 + $0x730] sm:$0xff]
        %v2275 = vld [vmem:[#allocation2 + $0x738] sm:$0xff]
        %v2276 = vld [vmem:[#allocation2 + $0x740] sm:$0xff]
        %v2277 = vld [vmem:[#allocation2 + $0x748] sm:$0xff]
        %v2278 = vld [vmem:[#allocation2 + $0x750] sm:$0xff]
        %v2279 = vld [vmem:[#allocation2 + $0x758] sm:$0xff]
        %v2280 = vld [vmem:[#allocation2 + $0x760] sm:$0xff]
        %v2281 = vld [vmem:[#allocation2 + $0x768] sm:$0xff]
        %v2282 = vld [vmem:[#allocation2 + $0x770] sm:$0xff]
        %v2283 = vld [vmem:[#allocation2 + $0x778] sm:$0xff]
        %v2284 = vld [vmem:[#allocation2 + $0x780] sm:$0xff]
        %v2285 = vld [vmem:[#allocation2 + $0x788] sm:$0xff]
        %v2286 = vld [vmem:[#allocation2 + $0x790] sm:$0xff]
        %v2287 = vld [vmem:[#allocation2 + $0x798] sm:$0xff]
        %v2288 = vld [vmem:[#allocation2 + $0x7a0] sm:$0xff]
        %v2289 = vld [vmem:[#allocation2 + $0x7a8] sm:$0xff]
        %v2290 = vld [vmem:[#allocation2 + $0x7b0] sm:$0xff]
        %v2291 = vld [vmem:[#allocation2 + $0x7b8] sm:$0xff]
        %v2292 = vld [vmem:[#allocation2 + $0x7c0] sm:$0xff]
        %v2293 = vld [vmem:[#allocation2 + $0x7c8] sm:$0xff]
        %v2294 = vld [vmem:[#allocation2 + $0x7d0] sm:$0xff]
        %v2295 = vld [vmem:[#allocation2 + $0x7d8] sm:$0xff]
        %v2296 = vld [vmem:[#allocation2 + $0x7e0] sm:$0xff]
        %v2297 = vld [vmem:[#allocation2 + $0x7e8] sm:$0xff]
        %v2298 = vld [vmem:[#allocation2 + $0x7f0] sm:$0xff]
        %v2299 = vld [vmem:[#allocation2 + $0x7f8] sm:$0xff]
        %v2300 = vld [vmem:[#allocation2 + $0x800] sm:$0xff]
        %v2301 = vld [vmem:[#allocation2 + $0x808] sm:$0xff]
        %v2302 = vld [vmem:[#allocation2 + $0x810] sm:$0xff]
        %v2303 = vld [vmem:[#allocation2 + $0x818] sm:$0xff]
        %v2304 = vld [vmem:[#allocation2 + $0x820] sm:$0xff]
        %v2305 = vld [vmem:[#allocation2 + $0x828] sm:$0xff]
        %v2306 = vld [vmem:[#allocation2 + $0x830] sm:$0xff]
        %v2307 = vld [vmem:[#allocation2 + $0x838] sm:$0xff]
        %v2308 = vld [vmem:[#allocation2 + $0x840] sm:$0xff]
        %v2309 = vld [vmem:[#allocation2 + $0x848] sm:$0xff]
        %v2310 = vld [vmem:[#allocation2 + $0x850] sm:$0xff]
        %v2311 = vld [vmem:[#allocation2 + $0x858] sm:$0xff]
        %v2312 = vld [vmem:[#allocation2 + $0x860] sm:$0xff]
        %v2313 = vld [vmem:[#allocation2 + $0x868] sm:$0xff]
        %v2314 = vld [vmem:[#allocation2 + $0x870] sm:$0xff]
        %v2315 = vld [vmem:[#allocation2 + $0x878] sm:$0xff]
        %v2316 = vld [vmem:[#allocation2 + $0x880] sm:$0xff]
        %v2317 = vld [vmem:[#allocation2 + $0x888] sm:$0xff]
        %v2318 = vld [vmem:[#allocation2 + $0x890] sm:$0xff]
        %v2319 = vld [vmem:[#allocation2 + $0x898] sm:$0xff]
        %v2320 = vld [vmem:[#allocation2 + $0x8a0] sm:$0xff]
        %v2321 = vld [vmem:[#allocation2 + $0x8a8] sm:$0xff]
        %v2322 = vld [vmem:[#allocation2 + $0x8b0] sm:$0xff]
        %v2323 = vld [vmem:[#allocation2 + $0x8b8] sm:$0xff]
        %v2324 = vld [vmem:[%s2] sm:$0xff]
        %v2325 = vld [vmem:[%s2 + $0x8] sm:$0xff]
        %v2326 = vld [vmem:[%s2 + $0x10] sm:$0xff]
        %v2327 = vld [vmem:[%s2 + $0x18] sm:$0xff]
        %v2328 = vld [vmem:[%s2 + $0x20] sm:$0xff]
        %v2329 = vld [vmem:[%s2 + $0x28] sm:$0xff]
        %v2330 = vld [vmem:[%s2 + $0x30] sm:$0xff]
        %v2331 = vld [vmem:[%s2 + $0x38] sm:$0xff]
        %2333 = vset.pattern.permute.xlu0 0
        %2334 = vperm.xlu0 %2333, %v2324
        %v2335 = vpop.permute.xlu0 %2334
        %2338 = vset.pattern.permute.xlu0 0
        %2339 = vperm.xlu0 %2338, %v2325
        %v2340 = vpop.permute.xlu0 %2339
        %2343 = vset.pattern.permute.xlu0 0
        %2344 = vperm.xlu0 %2343, %v2326
        %v2345 = vpop.permute.xlu0 %2344
        %2348 = vset.pattern.permute.xlu0 0
        %2349 = vperm.xlu0 %2348, %v2327
        %v2350 = vpop.permute.xlu0 %2349
        %2353 = vset.pattern.permute.xlu0 0
        %2354 = vperm.xlu0 %2353, %v2328
        %v2355 = vpop.permute.xlu0 %2354
        %2358 = vset.pattern.permute.xlu0 0
        %2359 = vperm.xlu0 %2358, %v2329
        %v2360 = vpop.permute.xlu0 %2359
        %2363 = vset.pattern.permute.xlu0 0
        %2364 = vperm.xlu0 %2363, %v2330
        %v2365 = vpop.permute.xlu0 %2364
        %2368 = vset.pattern.permute.xlu0 0
        %2369 = vperm.xlu0 %2368, %v2331
        %v2370 = vpop.permute.xlu0 %2369
        %vm2372 = vcmask 785408
        %v2374 = vsel %vm2372, %v2029, 0
        %v2377 = vsel %vm2372, %v2031, 0
        %v2380 = vsel %vm2372, %v2033, 0
        %v2383 = vsel %vm2372, %v2035, 0
        %v2386 = vsel %vm2372, %v2037, 0
        %v2389 = vsel %vm2372, %v2039, 0
        %v2392 = vsel %vm2372, %v2041, 0
        %v2395 = vsel %vm2372, %v2043, 0
        %2397 = vmatpush.msra.mxu0 %v2194
        %2398 = vmatpush.msra.mxu0 %v2184
        %2399 = vmatpush.msra.mxu0 %v2174
        %2400 = vmatpush.msra.mxu0 %v2164
        %2401 = vmatpush.msra.mxu0 %v2154
        %2402 = vmatpush.msra.mxu0 %v2144
        %2403 = vmatpush.msra.mxu0 %v2134
        %2404 = vmatpush.msra.mxu0 %v2124
        %2405 = vmatpush.msra.mxu0 %v2114
        %2406 = vmatpush.msra.mxu0 %v2104
        %2407 = vmatpush.msra.mxu0 %v2094
        %2408 = vmatpush.msra.mxu0 %v2084
        %2409 = vmatpush.msra.mxu0 %v2074
        %2410 = vmatpush.msra.mxu0 %v2064
        %2411 = vmatpush.msra.mxu0 %v2054
        %2412 = vmatpush.msra.mxu0 %v2044
        %2413 = vmatmul.f32.gmra.mxu0 %v2028
        %v2414 = vpop.f32.mrf.mxu0
        %v2415 = vadd.f32 %v2335, %v2414
        %2416 = vmatmul.f32.gmra.mxu0 %v2030
        %v2417 = vpop.f32.mrf.mxu0
        %v2418 = vadd.f32 %v2340, %v2417
        %2419 = vmatmul.f32.gmra.mxu0 %v2032
        %v2420 = vpop.f32.mrf.mxu0
        %v2421 = vadd.f32 %v2345, %v2420
        %2422 = vmatmul.f32.gmra.mxu0 %v2034
        %v2423 = vpop.f32.mrf.mxu0
        %v2424 = vadd.f32 %v2350, %v2423
        %2425 = vmatmul.f32.gmra.mxu0 %v2036
        %v2426 = vpop.f32.mrf.mxu0
        %v2427 = vadd.f32 %v2355, %v2426
        %2428 = vmatmul.f32.gmra.mxu0 %v2038
        %v2429 = vpop.f32.mrf.mxu0
        %v2430 = vadd.f32 %v2360, %v2429
        %2431 = vmatmul.f32.gmra.mxu0 %v2040
        %v2432 = vpop.f32.mrf.mxu0
        %v2433 = vadd.f32 %v2365, %v2432
        %2434 = vmatmul.f32.gmra.mxu0 %v2042
        %v2435 = vpop.f32.mrf.mxu0
        %v2436 = vadd.f32 %v2370, %v2435
        %2437 = vdwg.mxu0
        %2438 = vmatpush.msra.mxu0 0.0
        %2439 = vmatpush.msra.mxu0 0.0
        %2440 = vmatpush.msra.mxu0 0.0
        %2441 = vmatpush.msra.mxu0 0.0
        %2442 = vmatpush.msra.mxu0 %v2314
        %2443 = vmatpush.msra.mxu0 %v2304
        %2444 = vmatpush.msra.mxu0 %v2294
        %2445 = vmatpush.msra.mxu0 %v2284
        %2446 = vmatpush.msra.mxu0 %v2274
        %2447 = vmatpush.msra.mxu0 %v2264
        %2448 = vmatpush.msra.mxu0 %v2254
        %2449 = vmatpush.msra.mxu0 %v2244
        %2450 = vmatpush.msra.mxu0 %v2234
        %2451 = vmatpush.msra.mxu0 %v2224
        %2452 = vmatpush.msra.mxu0 %v2214
        %2453 = vmatpush.msra.mxu0 %v2204
        %2454 = vmatmul.f32.gmra.mxu0 %v2374
        %v2455 = vpop.f32.mrf.mxu0
        %v2456 = vadd.f32 %v2415, %v2455
        %2457 = vmatmul.f32.gmra.mxu0 %v2377
        %v2458 = vpop.f32.mrf.mxu0
        %v2459 = vadd.f32 %v2418, %v2458
        %2460 = vmatmul.f32.gmra.mxu0 %v2380
        %v2461 = vpop.f32.mrf.mxu0
        %v2462 = vadd.f32 %v2421, %v2461
        %2463 = vmatmul.f32.gmra.mxu0 %v2383
        %v2464 = vpop.f32.mrf.mxu0
        %v2465 = vadd.f32 %v2424, %v2464
        %2466 = vmatmul.f32.gmra.mxu0 %v2386
        %v2467 = vpop.f32.mrf.mxu0
        %v2468 = vadd.f32 %v2427, %v2467
        %2469 = vmatmul.f32.gmra.mxu0 %v2389
        %v2470 = vpop.f32.mrf.mxu0
        %v2471 = vadd.f32 %v2430, %v2470
        %2472 = vmatmul.f32.gmra.mxu0 %v2392
        %v2473 = vpop.f32.mrf.mxu0
        %v2474 = vadd.f32 %v2433, %v2473
        %2475 = vmatmul.f32.gmra.mxu0 %v2395
        %v2476 = vpop.f32.mrf.mxu0
        %v2477 = vadd.f32 %v2436, %v2476
        %2478 = vdwg.mxu0
        %2479 = vmatpush.msra.mxu0 %v2195
        %2480 = vmatpush.msra.mxu0 %v2185
        %2481 = vmatpush.msra.mxu0 %v2175
        %2482 = vmatpush.msra.mxu0 %v2165
        %2483 = vmatpush.msra.mxu0 %v2155
        %2484 = vmatpush.msra.mxu0 %v2145
        %2485 = vmatpush.msra.mxu0 %v2135
        %2486 = vmatpush.msra.mxu0 %v2125
        %2487 = vmatpush.msra.mxu0 %v2115
        %2488 = vmatpush.msra.mxu0 %v2105
        %2489 = vmatpush.msra.mxu0 %v2095
        %2490 = vmatpush.msra.mxu0 %v2085
        %2491 = vmatpush.msra.mxu0 %v2075
        %2492 = vmatpush.msra.mxu0 %v2065
        %2493 = vmatpush.msra.mxu0 %v2055
        %2494 = vmatpush.msra.mxu0 %v2045
        %2495 = vmatmul.f32.gmra.mxu0 %v2028
        %v2496 = vpop.f32.mrf.mxu0
        %v2497 = vadd.f32 %v2335, %v2496
        %2498 = vmatmul.f32.gmra.mxu0 %v2030
        %v2499 = vpop.f32.mrf.mxu0
        %v2500 = vadd.f32 %v2340, %v2499
        %2501 = vmatmul.f32.gmra.mxu0 %v2032
        %v2502 = vpop.f32.mrf.mxu0
        %v2503 = vadd.f32 %v2345, %v2502
        %2504 = vmatmul.f32.gmra.mxu0 %v2034
        %v2505 = vpop.f32.mrf.mxu0
        %v2506 = vadd.f32 %v2350, %v2505
        %2507 = vmatmul.f32.gmra.mxu0 %v2036
        %v2508 = vpop.f32.mrf.mxu0
        %v2509 = vadd.f32 %v2355, %v2508
        %2510 = vmatmul.f32.gmra.mxu0 %v2038
        %v2511 = vpop.f32.mrf.mxu0
        %v2512 = vadd.f32 %v2360, %v2511
        %2513 = vmatmul.f32.gmra.mxu0 %v2040
        %v2514 = vpop.f32.mrf.mxu0
        %v2515 = vadd.f32 %v2365, %v2514
        %2516 = vmatmul.f32.gmra.mxu0 %v2042
        %v2517 = vpop.f32.mrf.mxu0
        %v2518 = vadd.f32 %v2370, %v2517
        %2519 = vdwg.mxu0
        %2520 = vmatpush.msra.mxu0 0.0
        %2521 = vmatpush.msra.mxu0 0.0
        %2522 = vmatpush.msra.mxu0 0.0
        %2523 = vmatpush.msra.mxu0 0.0
        %2524 = vmatpush.msra.mxu0 %v2315
        %2525 = vmatpush.msra.mxu0 %v2305
        %2526 = vmatpush.msra.mxu0 %v2295
        %2527 = vmatpush.msra.mxu0 %v2285
        %2528 = vmatpush.msra.mxu0 %v2275
        %2529 = vmatpush.msra.mxu0 %v2265
        %2530 = vmatpush.msra.mxu0 %v2255
        %2531 = vmatpush.msra.mxu0 %v2245
        %2532 = vmatpush.msra.mxu0 %v2235
        %2533 = vmatpush.msra.mxu0 %v2225
        %2534 = vmatpush.msra.mxu0 %v2215
        %2535 = vmatpush.msra.mxu0 %v2205
        %2536 = vmatmul.f32.gmra.mxu0 %v2374
        %v2537 = vpop.f32.mrf.mxu0
        %v2538 = vadd.f32 %v2497, %v2537
        %2539 = vmatmul.f32.gmra.mxu0 %v2377
        %v2540 = vpop.f32.mrf.mxu0
        %v2541 = vadd.f32 %v2500, %v2540
        %2542 = vmatmul.f32.gmra.mxu0 %v2380
        %v2543 = vpop.f32.mrf.mxu0
        %v2544 = vadd.f32 %v2503, %v2543
        %2545 = vmatmul.f32.gmra.mxu0 %v2383
        %v2546 = vpop.f32.mrf.mxu0
        %v2547 = vadd.f32 %v2506, %v2546
        %2548 = vmatmul.f32.gmra.mxu0 %v2386
        %v2549 = vpop.f32.mrf.mxu0
        %v2550 = vadd.f32 %v2509, %v2549
        %2551 = vmatmul.f32.gmra.mxu0 %v2389
        %v2552 = vpop.f32.mrf.mxu0
        %v2553 = vadd.f32 %v2512, %v2552
        %2554 = vmatmul.f32.gmra.mxu0 %v2392
        %v2555 = vpop.f32.mrf.mxu0
        %v2556 = vadd.f32 %v2515, %v2555
        %2557 = vmatmul.f32.gmra.mxu0 %v2395
        %v2558 = vpop.f32.mrf.mxu0
        %v2559 = vadd.f32 %v2518, %v2558
        %2560 = vdwg.mxu0
        %2561 = vmatpush.msra.mxu0 %v2196
        %2562 = vmatpush.msra.mxu0 %v2186
        %2563 = vmatpush.msra.mxu0 %v2176
        %2564 = vmatpush.msra.mxu0 %v2166
        %2565 = vmatpush.msra.mxu0 %v2156
        %2566 = vmatpush.msra.mxu0 %v2146
        %2567 = vmatpush.msra.mxu0 %v2136
        %2568 = vmatpush.msra.mxu0 %v2126
        %2569 = vmatpush.msra.mxu0 %v2116
        %2570 = vmatpush.msra.mxu0 %v2106
        %2571 = vmatpush.msra.mxu0 %v2096
        %2572 = vmatpush.msra.mxu0 %v2086
        %2573 = vmatpush.msra.mxu0 %v2076
        %2574 = vmatpush.msra.mxu0 %v2066
        %2575 = vmatpush.msra.mxu0 %v2056
        %2576 = vmatpush.msra.mxu0 %v2046
        %2577 = vmatmul.f32.gmra.mxu0 %v2028
        %v2578 = vpop.f32.mrf.mxu0
        %v2579 = vadd.f32 %v2335, %v2578
        %2580 = vmatmul.f32.gmra.mxu0 %v2030
        %v2581 = vpop.f32.mrf.mxu0
        %v2582 = vadd.f32 %v2340, %v2581
        %2583 = vmatmul.f32.gmra.mxu0 %v2032
        %v2584 = vpop.f32.mrf.mxu0
        %v2585 = vadd.f32 %v2345, %v2584
        %2586 = vmatmul.f32.gmra.mxu0 %v2034
        %v2587 = vpop.f32.mrf.mxu0
        %v2588 = vadd.f32 %v2350, %v2587
        %2589 = vmatmul.f32.gmra.mxu0 %v2036
        %v2590 = vpop.f32.mrf.mxu0
        %v2591 = vadd.f32 %v2355, %v2590
        %2592 = vmatmul.f32.gmra.mxu0 %v2038
        %v2593 = vpop.f32.mrf.mxu0
        %v2594 = vadd.f32 %v2360, %v2593
        %2595 = vmatmul.f32.gmra.mxu0 %v2040
        %v2596 = vpop.f32.mrf.mxu0
        %v2597 = vadd.f32 %v2365, %v2596
        %2598 = vmatmul.f32.gmra.mxu0 %v2042
        %v2599 = vpop.f32.mrf.mxu0
        %v2600 = vadd.f32 %v2370, %v2599
        %2601 = vdwg.mxu0
        %2602 = vmatpush.msra.mxu0 0.0
        %2603 = vmatpush.msra.mxu0 0.0
        %2604 = vmatpush.msra.mxu0 0.0
        %2605 = vmatpush.msra.mxu0 0.0
        %2606 = vmatpush.msra.mxu0 %v2316
        %2607 = vmatpush.msra.mxu0 %v2306
        %2608 = vmatpush.msra.mxu0 %v2296
        %2609 = vmatpush.msra.mxu0 %v2286
        %2610 = vmatpush.msra.mxu0 %v2276
        %2611 = vmatpush.msra.mxu0 %v2266
        %2612 = vmatpush.msra.mxu0 %v2256
        %2613 = vmatpush.msra.mxu0 %v2246
        %2614 = vmatpush.msra.mxu0 %v2236
        %2615 = vmatpush.msra.mxu0 %v2226
        %2616 = vmatpush.msra.mxu0 %v2216
        %2617 = vmatpush.msra.mxu0 %v2206
        %2618 = vmatmul.f32.gmra.mxu0 %v2374
        %v2619 = vpop.f32.mrf.mxu0
        %v2620 = vadd.f32 %v2579, %v2619
        %2621 = vmatmul.f32.gmra.mxu0 %v2377
        %v2622 = vpop.f32.mrf.mxu0
        %v2623 = vadd.f32 %v2582, %v2622
        %2624 = vmatmul.f32.gmra.mxu0 %v2380
        %v2625 = vpop.f32.mrf.mxu0
        %v2626 = vadd.f32 %v2585, %v2625
        %2627 = vmatmul.f32.gmra.mxu0 %v2383
        %v2628 = vpop.f32.mrf.mxu0
        %v2629 = vadd.f32 %v2588, %v2628
        %2630 = vmatmul.f32.gmra.mxu0 %v2386
        %v2631 = vpop.f32.mrf.mxu0
        %v2632 = vadd.f32 %v2591, %v2631
        %2633 = vmatmul.f32.gmra.mxu0 %v2389
        %v2634 = vpop.f32.mrf.mxu0
        %v2635 = vadd.f32 %v2594, %v2634
        %2636 = vmatmul.f32.gmra.mxu0 %v2392
        %v2637 = vpop.f32.mrf.mxu0
        %v2638 = vadd.f32 %v2597, %v2637
        %2639 = vmatmul.f32.gmra.mxu0 %v2395
        %v2640 = vpop.f32.mrf.mxu0
        %v2641 = vadd.f32 %v2600, %v2640
        %2642 = vdwg.mxu0
        %2643 = vmatpush.msra.mxu0 %v2197
        %2644 = vmatpush.msra.mxu0 %v2187
        %2645 = vmatpush.msra.mxu0 %v2177
        %2646 = vmatpush.msra.mxu0 %v2167
        %2647 = vmatpush.msra.mxu0 %v2157
        %2648 = vmatpush.msra.mxu0 %v2147
        %2649 = vmatpush.msra.mxu0 %v2137
        %2650 = vmatpush.msra.mxu0 %v2127
        %2651 = vmatpush.msra.mxu0 %v2117
        %2652 = vmatpush.msra.mxu0 %v2107
        %2653 = vmatpush.msra.mxu0 %v2097
        %2654 = vmatpush.msra.mxu0 %v2087
        %2655 = vmatpush.msra.mxu0 %v2077
        %2656 = vmatpush.msra.mxu0 %v2067
        %2657 = vmatpush.msra.mxu0 %v2057
        %2658 = vmatpush.msra.mxu0 %v2047
        %2659 = vmatmul.f32.gmra.mxu0 %v2028
        %v2660 = vpop.f32.mrf.mxu0
        %v2661 = vadd.f32 %v2335, %v2660
        %2662 = vmatmul.f32.gmra.mxu0 %v2030
        %v2663 = vpop.f32.mrf.mxu0
        %v2664 = vadd.f32 %v2340, %v2663
        %2665 = vmatmul.f32.gmra.mxu0 %v2032
        %v2666 = vpop.f32.mrf.mxu0
        %v2667 = vadd.f32 %v2345, %v2666
        %2668 = vmatmul.f32.gmra.mxu0 %v2034
        %v2669 = vpop.f32.mrf.mxu0
        %v2670 = vadd.f32 %v2350, %v2669
        %2671 = vmatmul.f32.gmra.mxu0 %v2036
        %v2672 = vpop.f32.mrf.mxu0
        %v2673 = vadd.f32 %v2355, %v2672
        %2674 = vmatmul.f32.gmra.mxu0 %v2038
        %v2675 = vpop.f32.mrf.mxu0
        %v2676 = vadd.f32 %v2360, %v2675
        %2677 = vmatmul.f32.gmra.mxu0 %v2040
        %v2678 = vpop.f32.mrf.mxu0
        %v2679 = vadd.f32 %v2365, %v2678
        %2680 = vmatmul.f32.gmra.mxu0 %v2042
        %v2681 = vpop.f32.mrf.mxu0
        %v2682 = vadd.f32 %v2370, %v2681
        %2683 = vdwg.mxu0
        %2684 = vmatpush.msra.mxu0 0.0
        %2685 = vmatpush.msra.mxu0 0.0
        %2686 = vmatpush.msra.mxu0 0.0
        %2687 = vmatpush.msra.mxu0 0.0
        %2688 = vmatpush.msra.mxu0 %v2317
        %2689 = vmatpush.msra.mxu0 %v2307
        %2690 = vmatpush.msra.mxu0 %v2297
        %2691 = vmatpush.msra.mxu0 %v2287
        %2692 = vmatpush.msra.mxu0 %v2277
        %2693 = vmatpush.msra.mxu0 %v2267
        %2694 = vmatpush.msra.mxu0 %v2257
        %2695 = vmatpush.msra.mxu0 %v2247
        %2696 = vmatpush.msra.mxu0 %v2237
        %2697 = vmatpush.msra.mxu0 %v2227
        %2698 = vmatpush.msra.mxu0 %v2217
        %2699 = vmatpush.msra.mxu0 %v2207
        %2700 = vmatmul.f32.gmra.mxu0 %v2374
        %v2701 = vpop.f32.mrf.mxu0
        %v2702 = vadd.f32 %v2661, %v2701
        %2703 = vmatmul.f32.gmra.mxu0 %v2377
        %v2704 = vpop.f32.mrf.mxu0
        %v2705 = vadd.f32 %v2664, %v2704
        %2706 = vmatmul.f32.gmra.mxu0 %v2380
        %v2707 = vpop.f32.mrf.mxu0
        %v2708 = vadd.f32 %v2667, %v2707
        %2709 = vmatmul.f32.gmra.mxu0 %v2383
        %v2710 = vpop.f32.mrf.mxu0
        %v2711 = vadd.f32 %v2670, %v2710
        %2712 = vmatmul.f32.gmra.mxu0 %v2386
        %v2713 = vpop.f32.mrf.mxu0
        %v2714 = vadd.f32 %v2673, %v2713
        %2715 = vmatmul.f32.gmra.mxu0 %v2389
        %v2716 = vpop.f32.mrf.mxu0
        %v2717 = vadd.f32 %v2676, %v2716
        %2718 = vmatmul.f32.gmra.mxu0 %v2392
        %v2719 = vpop.f32.mrf.mxu0
        %v2720 = vadd.f32 %v2679, %v2719
        %2721 = vmatmul.f32.gmra.mxu0 %v2395
        %v2722 = vpop.f32.mrf.mxu0
        %v2723 = vadd.f32 %v2682, %v2722
        %2724 = vdwg.mxu0
        %2725 = vmatpush.msra.mxu0 %v2198
        %2726 = vmatpush.msra.mxu0 %v2188
        %2727 = vmatpush.msra.mxu0 %v2178
        %2728 = vmatpush.msra.mxu0 %v2168
        %2729 = vmatpush.msra.mxu0 %v2158
        %2730 = vmatpush.msra.mxu0 %v2148
        %2731 = vmatpush.msra.mxu0 %v2138
        %2732 = vmatpush.msra.mxu0 %v2128
        %2733 = vmatpush.msra.mxu0 %v2118
        %2734 = vmatpush.msra.mxu0 %v2108
        %2735 = vmatpush.msra.mxu0 %v2098
        %2736 = vmatpush.msra.mxu0 %v2088
        %2737 = vmatpush.msra.mxu0 %v2078
        %2738 = vmatpush.msra.mxu0 %v2068
        %2739 = vmatpush.msra.mxu0 %v2058
        %2740 = vmatpush.msra.mxu0 %v2048
        %2741 = vmatmul.f32.gmra.mxu0 %v2028
        %v2742 = vpop.f32.mrf.mxu0
        %v2743 = vadd.f32 %v2335, %v2742
        %2744 = vmatmul.f32.gmra.mxu0 %v2030
        %v2745 = vpop.f32.mrf.mxu0
        %v2746 = vadd.f32 %v2340, %v2745
        %2747 = vmatmul.f32.gmra.mxu0 %v2032
        %v2748 = vpop.f32.mrf.mxu0
        %v2749 = vadd.f32 %v2345, %v2748
        %2750 = vmatmul.f32.gmra.mxu0 %v2034
        %v2751 = vpop.f32.mrf.mxu0
        %v2752 = vadd.f32 %v2350, %v2751
        %2753 = vmatmul.f32.gmra.mxu0 %v2036
        %v2754 = vpop.f32.mrf.mxu0
        %v2755 = vadd.f32 %v2355, %v2754
        %2756 = vmatmul.f32.gmra.mxu0 %v2038
        %v2757 = vpop.f32.mrf.mxu0
        %v2758 = vadd.f32 %v2360, %v2757
        %2759 = vmatmul.f32.gmra.mxu0 %v2040
        %v2760 = vpop.f32.mrf.mxu0
        %v2761 = vadd.f32 %v2365, %v2760
        %2762 = vmatmul.f32.gmra.mxu0 %v2042
        %v2763 = vpop.f32.mrf.mxu0
        %v2764 = vadd.f32 %v2370, %v2763
        %2765 = vdwg.mxu0
        %2766 = vmatpush.msra.mxu0 0.0
        %2767 = vmatpush.msra.mxu0 0.0
        %2768 = vmatpush.msra.mxu0 0.0
        %2769 = vmatpush.msra.mxu0 0.0
        %2770 = vmatpush.msra.mxu0 %v2318
        %2771 = vmatpush.msra.mxu0 %v2308
        %2772 = vmatpush.msra.mxu0 %v2298
        %2773 = vmatpush.msra.mxu0 %v2288
        %2774 = vmatpush.msra.mxu0 %v2278
        %2775 = vmatpush.msra.mxu0 %v2268
        %2776 = vmatpush.msra.mxu0 %v2258
        %2777 = vmatpush.msra.mxu0 %v2248
        %2778 = vmatpush.msra.mxu0 %v2238
        %2779 = vmatpush.msra.mxu0 %v2228
        %2780 = vmatpush.msra.mxu0 %v2218
        %2781 = vmatpush.msra.mxu0 %v2208
        %2782 = vmatmul.f32.gmra.mxu0 %v2374
        %v2783 = vpop.f32.mrf.mxu0
        %v2784 = vadd.f32 %v2743, %v2783
        %2785 = vmatmul.f32.gmra.mxu0 %v2377
        %v2786 = vpop.f32.mrf.mxu0
        %v2787 = vadd.f32 %v2746, %v2786
        %2788 = vmatmul.f32.gmra.mxu0 %v2380
        %v2789 = vpop.f32.mrf.mxu0
        %v2790 = vadd.f32 %v2749, %v2789
        %2791 = vmatmul.f32.gmra.mxu0 %v2383
        %v2792 = vpop.f32.mrf.mxu0
        %v2793 = vadd.f32 %v2752, %v2792
        %2794 = vmatmul.f32.gmra.mxu0 %v2386
        %v2795 = vpop.f32.mrf.mxu0
        %v2796 = vadd.f32 %v2755, %v2795
        %2797 = vmatmul.f32.gmra.mxu0 %v2389
        %v2798 = vpop.f32.mrf.mxu0
        %v2799 = vadd.f32 %v2758, %v2798
        %2800 = vmatmul.f32.gmra.mxu0 %v2392
        %v2801 = vpop.f32.mrf.mxu0
        %v2802 = vadd.f32 %v2761, %v2801
        %2803 = vmatmul.f32.gmra.mxu0 %v2395
        %v2804 = vpop.f32.mrf.mxu0
        %v2805 = vadd.f32 %v2764, %v2804
        %2806 = vdwg.mxu0
        %2807 = vmatpush.msra.mxu0 %v2199
        %2808 = vmatpush.msra.mxu0 %v2189
        %2809 = vmatpush.msra.mxu0 %v2179
        %2810 = vmatpush.msra.mxu0 %v2169
        %2811 = vmatpush.msra.mxu0 %v2159
        %2812 = vmatpush.msra.mxu0 %v2149
        %2813 = vmatpush.msra.mxu0 %v2139
        %2814 = vmatpush.msra.mxu0 %v2129
        %2815 = vmatpush.msra.mxu0 %v2119
        %2816 = vmatpush.msra.mxu0 %v2109
        %2817 = vmatpush.msra.mxu0 %v2099
        %2818 = vmatpush.msra.mxu0 %v2089
        %2819 = vmatpush.msra.mxu0 %v2079
        %2820 = vmatpush.msra.mxu0 %v2069
        %2821 = vmatpush.msra.mxu0 %v2059
        %2822 = vmatpush.msra.mxu0 %v2049
        %2823 = vmatmul.f32.gmra.mxu0 %v2028
        %v2824 = vpop.f32.mrf.mxu0
        %v2825 = vadd.f32 %v2335, %v2824
        %2826 = vmatmul.f32.gmra.mxu0 %v2030
        %v2827 = vpop.f32.mrf.mxu0
        %v2828 = vadd.f32 %v2340, %v2827
        %2829 = vmatmul.f32.gmra.mxu0 %v2032
        %v2830 = vpop.f32.mrf.mxu0
        %v2831 = vadd.f32 %v2345, %v2830
        %2832 = vmatmul.f32.gmra.mxu0 %v2034
        %v2833 = vpop.f32.mrf.mxu0
        %v2834 = vadd.f32 %v2350, %v2833
        %2835 = vmatmul.f32.gmra.mxu0 %v2036
        %v2836 = vpop.f32.mrf.mxu0
        %v2837 = vadd.f32 %v2355, %v2836
        %2838 = vmatmul.f32.gmra.mxu0 %v2038
        %v2839 = vpop.f32.mrf.mxu0
        %v2840 = vadd.f32 %v2360, %v2839
        %2841 = vmatmul.f32.gmra.mxu0 %v2040
        %v2842 = vpop.f32.mrf.mxu0
        %v2843 = vadd.f32 %v2365, %v2842
        %2844 = vmatmul.f32.gmra.mxu0 %v2042
        %v2845 = vpop.f32.mrf.mxu0
        %v2846 = vadd.f32 %v2370, %v2845
        %2847 = vdwg.mxu0
        %2848 = vmatpush.msra.mxu0 0.0
        %2849 = vmatpush.msra.mxu0 0.0
        %2850 = vmatpush.msra.mxu0 0.0
        %2851 = vmatpush.msra.mxu0 0.0
        %2852 = vmatpush.msra.mxu0 %v2319
        %2853 = vmatpush.msra.mxu0 %v2309
        %2854 = vmatpush.msra.mxu0 %v2299
        %2855 = vmatpush.msra.mxu0 %v2289
        %2856 = vmatpush.msra.mxu0 %v2279
        %2857 = vmatpush.msra.mxu0 %v2269
        %2858 = vmatpush.msra.mxu0 %v2259
        %2859 = vmatpush.msra.mxu0 %v2249
        %2860 = vmatpush.msra.mxu0 %v2239
        %2861 = vmatpush.msra.mxu0 %v2229
        %2862 = vmatpush.msra.mxu0 %v2219
        %2863 = vmatpush.msra.mxu0 %v2209
        %2864 = vmatmul.f32.gmra.mxu0 %v2374
        %v2865 = vpop.f32.mrf.mxu0
        %v2866 = vadd.f32 %v2825, %v2865
        %2867 = vmatmul.f32.gmra.mxu0 %v2377
        %v2868 = vpop.f32.mrf.mxu0
        %v2869 = vadd.f32 %v2828, %v2868
        %2870 = vmatmul.f32.gmra.mxu0 %v2380
        %v2871 = vpop.f32.mrf.mxu0
        %v2872 = vadd.f32 %v2831, %v2871
        %2873 = vmatmul.f32.gmra.mxu0 %v2383
        %v2874 = vpop.f32.mrf.mxu0
        %v2875 = vadd.f32 %v2834, %v2874
        %2876 = vmatmul.f32.gmra.mxu0 %v2386
        %v2877 = vpop.f32.mrf.mxu0
        %v2878 = vadd.f32 %v2837, %v2877
        %2879 = vmatmul.f32.gmra.mxu0 %v2389
        %v2880 = vpop.f32.mrf.mxu0
        %v2881 = vadd.f32 %v2840, %v2880
        %2882 = vmatmul.f32.gmra.mxu0 %v2392
        %v2883 = vpop.f32.mrf.mxu0
        %v2884 = vadd.f32 %v2843, %v2883
        %2885 = vmatmul.f32.gmra.mxu0 %v2395
        %v2886 = vpop.f32.mrf.mxu0
        %v2887 = vadd.f32 %v2846, %v2886
        %2888 = vdwg.mxu0
        %2889 = vmatpush.msra.mxu0 %v2200
        %2890 = vmatpush.msra.mxu0 %v2190
        %2891 = vmatpush.msra.mxu0 %v2180
        %2892 = vmatpush.msra.mxu0 %v2170
        %2893 = vmatpush.msra.mxu0 %v2160
        %2894 = vmatpush.msra.mxu0 %v2150
        %2895 = vmatpush.msra.mxu0 %v2140
        %2896 = vmatpush.msra.mxu0 %v2130
        %2897 = vmatpush.msra.mxu0 %v2120
        %2898 = vmatpush.msra.mxu0 %v2110
        %2899 = vmatpush.msra.mxu0 %v2100
        %2900 = vmatpush.msra.mxu0 %v2090
        %2901 = vmatpush.msra.mxu0 %v2080
        %2902 = vmatpush.msra.mxu0 %v2070
        %2903 = vmatpush.msra.mxu0 %v2060
        %2904 = vmatpush.msra.mxu0 %v2050
        %2905 = vmatmul.f32.gmra.mxu0 %v2028
        %v2906 = vpop.f32.mrf.mxu0
        %v2907 = vadd.f32 %v2335, %v2906
        %2908 = vmatmul.f32.gmra.mxu0 %v2030
        %v2909 = vpop.f32.mrf.mxu0
        %v2910 = vadd.f32 %v2340, %v2909
        %2911 = vmatmul.f32.gmra.mxu0 %v2032
        %v2912 = vpop.f32.mrf.mxu0
        %v2913 = vadd.f32 %v2345, %v2912
        %2914 = vmatmul.f32.gmra.mxu0 %v2034
        %v2915 = vpop.f32.mrf.mxu0
        %v2916 = vadd.f32 %v2350, %v2915
        %2917 = vmatmul.f32.gmra.mxu0 %v2036
        %v2918 = vpop.f32.mrf.mxu0
        %v2919 = vadd.f32 %v2355, %v2918
        %2920 = vmatmul.f32.gmra.mxu0 %v2038
        %v2921 = vpop.f32.mrf.mxu0
        %v2922 = vadd.f32 %v2360, %v2921
        %2923 = vmatmul.f32.gmra.mxu0 %v2040
        %v2924 = vpop.f32.mrf.mxu0
        %v2925 = vadd.f32 %v2365, %v2924
        %2926 = vmatmul.f32.gmra.mxu0 %v2042
        %v2927 = vpop.f32.mrf.mxu0
        %v2928 = vadd.f32 %v2370, %v2927
        %2929 = vdwg.mxu0
        %2930 = vmatpush.msra.mxu0 0.0
        %2931 = vmatpush.msra.mxu0 0.0
        %2932 = vmatpush.msra.mxu0 0.0
        %2933 = vmatpush.msra.mxu0 0.0
        %2934 = vmatpush.msra.mxu0 %v2320
        %2935 = vmatpush.msra.mxu0 %v2310
        %2936 = vmatpush.msra.mxu0 %v2300
        %2937 = vmatpush.msra.mxu0 %v2290
        %2938 = vmatpush.msra.mxu0 %v2280
        %2939 = vmatpush.msra.mxu0 %v2270
        %2940 = vmatpush.msra.mxu0 %v2260
        %2941 = vmatpush.msra.mxu0 %v2250
        %2942 = vmatpush.msra.mxu0 %v2240
        %2943 = vmatpush.msra.mxu0 %v2230
        %2944 = vmatpush.msra.mxu0 %v2220
        %2945 = vmatpush.msra.mxu0 %v2210
        %2946 = vmatmul.f32.gmra.mxu0 %v2374
        %v2947 = vpop.f32.mrf.mxu0
        %v2948 = vadd.f32 %v2907, %v2947
        %2949 = vmatmul.f32.gmra.mxu0 %v2377
        %v2950 = vpop.f32.mrf.mxu0
        %v2951 = vadd.f32 %v2910, %v2950
        %2952 = vmatmul.f32.gmra.mxu0 %v2380
        %v2953 = vpop.f32.mrf.mxu0
        %v2954 = vadd.f32 %v2913, %v2953
        %2955 = vmatmul.f32.gmra.mxu0 %v2383
        %v2956 = vpop.f32.mrf.mxu0
        %v2957 = vadd.f32 %v2916, %v2956
        %2958 = vmatmul.f32.gmra.mxu0 %v2386
        %v2959 = vpop.f32.mrf.mxu0
        %v2960 = vadd.f32 %v2919, %v2959
        %2961 = vmatmul.f32.gmra.mxu0 %v2389
        %v2962 = vpop.f32.mrf.mxu0
        %v2963 = vadd.f32 %v2922, %v2962
        %2964 = vmatmul.f32.gmra.mxu0 %v2392
        %v2965 = vpop.f32.mrf.mxu0
        %v2966 = vadd.f32 %v2925, %v2965
        %2967 = vmatmul.f32.gmra.mxu0 %v2395
        %v2968 = vpop.f32.mrf.mxu0
        %v2969 = vadd.f32 %v2928, %v2968
        %2970 = vdwg.mxu0
        %2971 = vmatpush.msra.mxu0 %v2201
        %2972 = vmatpush.msra.mxu0 %v2191
        %2973 = vmatpush.msra.mxu0 %v2181
        %2974 = vmatpush.msra.mxu0 %v2171
        %2975 = vmatpush.msra.mxu0 %v2161
        %2976 = vmatpush.msra.mxu0 %v2151
        %2977 = vmatpush.msra.mxu0 %v2141
        %2978 = vmatpush.msra.mxu0 %v2131
        %2979 = vmatpush.msra.mxu0 %v2121
        %2980 = vmatpush.msra.mxu0 %v2111
        %2981 = vmatpush.msra.mxu0 %v2101
        %2982 = vmatpush.msra.mxu0 %v2091
        %2983 = vmatpush.msra.mxu0 %v2081
        %2984 = vmatpush.msra.mxu0 %v2071
        %2985 = vmatpush.msra.mxu0 %v2061
        %2986 = vmatpush.msra.mxu0 %v2051
        %2987 = vmatmul.f32.gmra.mxu0 %v2028
        %v2988 = vpop.f32.mrf.mxu0
        %v2989 = vadd.f32 %v2335, %v2988
        %2990 = vmatmul.f32.gmra.mxu0 %v2030
        %v2991 = vpop.f32.mrf.mxu0
        %v2992 = vadd.f32 %v2340, %v2991
        %2993 = vmatmul.f32.gmra.mxu0 %v2032
        %v2994 = vpop.f32.mrf.mxu0
        %v2995 = vadd.f32 %v2345, %v2994
        %2996 = vmatmul.f32.gmra.mxu0 %v2034
        %v2997 = vpop.f32.mrf.mxu0
        %v2998 = vadd.f32 %v2350, %v2997
        %2999 = vmatmul.f32.gmra.mxu0 %v2036
        %v3000 = vpop.f32.mrf.mxu0
        %v3001 = vadd.f32 %v2355, %v3000
        %3002 = vmatmul.f32.gmra.mxu0 %v2038
        %v3003 = vpop.f32.mrf.mxu0
        %v3004 = vadd.f32 %v2360, %v3003
        %3005 = vmatmul.f32.gmra.mxu0 %v2040
        %v3006 = vpop.f32.mrf.mxu0
        %v3007 = vadd.f32 %v2365, %v3006
        %3008 = vmatmul.f32.gmra.mxu0 %v2042
        %v3009 = vpop.f32.mrf.mxu0
        %v3010 = vadd.f32 %v2370, %v3009
        %3011 = vdwg.mxu0
        %3012 = vmatpush.msra.mxu0 0.0
        %3013 = vmatpush.msra.mxu0 0.0
        %3014 = vmatpush.msra.mxu0 0.0
        %3015 = vmatpush.msra.mxu0 0.0
        %3016 = vmatpush.msra.mxu0 %v2321
        %3017 = vmatpush.msra.mxu0 %v2311
        %3018 = vmatpush.msra.mxu0 %v2301
        %3019 = vmatpush.msra.mxu0 %v2291
        %3020 = vmatpush.msra.mxu0 %v2281
        %3021 = vmatpush.msra.mxu0 %v2271
        %3022 = vmatpush.msra.mxu0 %v2261
        %3023 = vmatpush.msra.mxu0 %v2251
        %3024 = vmatpush.msra.mxu0 %v2241
        %3025 = vmatpush.msra.mxu0 %v2231
        %3026 = vmatpush.msra.mxu0 %v2221
        %3027 = vmatpush.msra.mxu0 %v2211
        %3028 = vmatmul.f32.gmra.mxu0 %v2374
        %v3029 = vpop.f32.mrf.mxu0
        %v3030 = vadd.f32 %v2989, %v3029
        %3031 = vmatmul.f32.gmra.mxu0 %v2377
        %v3032 = vpop.f32.mrf.mxu0
        %v3033 = vadd.f32 %v2992, %v3032
        %3034 = vmatmul.f32.gmra.mxu0 %v2380
        %v3035 = vpop.f32.mrf.mxu0
        %v3036 = vadd.f32 %v2995, %v3035
        %3037 = vmatmul.f32.gmra.mxu0 %v2383
        %v3038 = vpop.f32.mrf.mxu0
        %v3039 = vadd.f32 %v2998, %v3038
        %3040 = vmatmul.f32.gmra.mxu0 %v2386
        %v3041 = vpop.f32.mrf.mxu0
        %v3042 = vadd.f32 %v3001, %v3041
        %3043 = vmatmul.f32.gmra.mxu0 %v2389
        %v3044 = vpop.f32.mrf.mxu0
        %v3045 = vadd.f32 %v3004, %v3044
        %3046 = vmatmul.f32.gmra.mxu0 %v2392
        %v3047 = vpop.f32.mrf.mxu0
        %v3048 = vadd.f32 %v3007, %v3047
        %3049 = vmatmul.f32.gmra.mxu0 %v2395
        %v3050 = vpop.f32.mrf.mxu0
        %v3051 = vadd.f32 %v3010, %v3050
        %3052 = vdwg.mxu0
        %3053 = vmatpush.msra.mxu0 %v2202
        %3054 = vmatpush.msra.mxu0 %v2192
        %3055 = vmatpush.msra.mxu0 %v2182
        %3056 = vmatpush.msra.mxu0 %v2172
        %3057 = vmatpush.msra.mxu0 %v2162
        %3058 = vmatpush.msra.mxu0 %v2152
        %3059 = vmatpush.msra.mxu0 %v2142
        %3060 = vmatpush.msra.mxu0 %v2132
        %3061 = vmatpush.msra.mxu0 %v2122
        %3062 = vmatpush.msra.mxu0 %v2112
        %3063 = vmatpush.msra.mxu0 %v2102
        %3064 = vmatpush.msra.mxu0 %v2092
        %3065 = vmatpush.msra.mxu0 %v2082
        %3066 = vmatpush.msra.mxu0 %v2072
        %3067 = vmatpush.msra.mxu0 %v2062
        %3068 = vmatpush.msra.mxu0 %v2052
        %3069 = vmatmul.f32.gmra.mxu0 %v2028
        %v3070 = vpop.f32.mrf.mxu0
        %v3071 = vadd.f32 %v2335, %v3070
        %3072 = vmatmul.f32.gmra.mxu0 %v2030
        %v3073 = vpop.f32.mrf.mxu0
        %v3074 = vadd.f32 %v2340, %v3073
        %3075 = vmatmul.f32.gmra.mxu0 %v2032
        %v3076 = vpop.f32.mrf.mxu0
        %v3077 = vadd.f32 %v2345, %v3076
        %3078 = vmatmul.f32.gmra.mxu0 %v2034
        %v3079 = vpop.f32.mrf.mxu0
        %v3080 = vadd.f32 %v2350, %v3079
        %3081 = vmatmul.f32.gmra.mxu0 %v2036
        %v3082 = vpop.f32.mrf.mxu0
        %v3083 = vadd.f32 %v2355, %v3082
        %3084 = vmatmul.f32.gmra.mxu0 %v2038
        %v3085 = vpop.f32.mrf.mxu0
        %v3086 = vadd.f32 %v2360, %v3085
        %3087 = vmatmul.f32.gmra.mxu0 %v2040
        %v3088 = vpop.f32.mrf.mxu0
        %v3089 = vadd.f32 %v2365, %v3088
        %3090 = vmatmul.f32.gmra.mxu0 %v2042
        %v3091 = vpop.f32.mrf.mxu0
        %v3092 = vadd.f32 %v2370, %v3091
        %3093 = vdwg.mxu0
        %3094 = vmatpush.msra.mxu0 0.0
        %3095 = vmatpush.msra.mxu0 0.0
        %3096 = vmatpush.msra.mxu0 0.0
        %3097 = vmatpush.msra.mxu0 0.0
        %3098 = vmatpush.msra.mxu0 %v2322
        %3099 = vmatpush.msra.mxu0 %v2312
        %3100 = vmatpush.msra.mxu0 %v2302
        %3101 = vmatpush.msra.mxu0 %v2292
        %3102 = vmatpush.msra.mxu0 %v2282
        %3103 = vmatpush.msra.mxu0 %v2272
        %3104 = vmatpush.msra.mxu0 %v2262
        %3105 = vmatpush.msra.mxu0 %v2252
        %3106 = vmatpush.msra.mxu0 %v2242
        %3107 = vmatpush.msra.mxu0 %v2232
        %3108 = vmatpush.msra.mxu0 %v2222
        %3109 = vmatpush.msra.mxu0 %v2212
        %3110 = vmatmul.f32.gmra.mxu0 %v2374
        %v3111 = vpop.f32.mrf.mxu0
        %v3112 = vadd.f32 %v3071, %v3111
        %3113 = vmatmul.f32.gmra.mxu0 %v2377
        %v3114 = vpop.f32.mrf.mxu0
        %v3115 = vadd.f32 %v3074, %v3114
        %3116 = vmatmul.f32.gmra.mxu0 %v2380
        %v3117 = vpop.f32.mrf.mxu0
        %v3118 = vadd.f32 %v3077, %v3117
        %3119 = vmatmul.f32.gmra.mxu0 %v2383
        %v3120 = vpop.f32.mrf.mxu0
        %v3121 = vadd.f32 %v3080, %v3120
        %3122 = vmatmul.f32.gmra.mxu0 %v2386
        %v3123 = vpop.f32.mrf.mxu0
        %v3124 = vadd.f32 %v3083, %v3123
        %3125 = vmatmul.f32.gmra.mxu0 %v2389
        %v3126 = vpop.f32.mrf.mxu0
        %v3127 = vadd.f32 %v3086, %v3126
        %3128 = vmatmul.f32.gmra.mxu0 %v2392
        %v3129 = vpop.f32.mrf.mxu0
        %v3130 = vadd.f32 %v3089, %v3129
        %3131 = vmatmul.f32.gmra.mxu0 %v2395
        %v3132 = vpop.f32.mrf.mxu0
        %v3133 = vadd.f32 %v3092, %v3132
        %3134 = vdwg.mxu0
        %3135 = vmatpush.msra.mxu0 %v2203
        %3136 = vmatpush.msra.mxu0 %v2193
        %3137 = vmatpush.msra.mxu0 %v2183
        %3138 = vmatpush.msra.mxu0 %v2173
        %3139 = vmatpush.msra.mxu0 %v2163
        %3140 = vmatpush.msra.mxu0 %v2153
        %3141 = vmatpush.msra.mxu0 %v2143
        %3142 = vmatpush.msra.mxu0 %v2133
        %3143 = vmatpush.msra.mxu0 %v2123
        %3144 = vmatpush.msra.mxu0 %v2113
        %3145 = vmatpush.msra.mxu0 %v2103
        %3146 = vmatpush.msra.mxu0 %v2093
        %3147 = vmatpush.msra.mxu0 %v2083
        %3148 = vmatpush.msra.mxu0 %v2073
        %3149 = vmatpush.msra.mxu0 %v2063
        %3150 = vmatpush.msra.mxu0 %v2053
        %3151 = vmatmul.f32.gmra.mxu0 %v2028
        %v3152 = vpop.f32.mrf.mxu0
        %v3153 = vadd.f32 %v2335, %v3152
        %3154 = vmatmul.f32.gmra.mxu0 %v2030
        %v3155 = vpop.f32.mrf.mxu0
        %v3156 = vadd.f32 %v2340, %v3155
        %3157 = vmatmul.f32.gmra.mxu0 %v2032
        %v3158 = vpop.f32.mrf.mxu0
        %v3159 = vadd.f32 %v2345, %v3158
        %3160 = vmatmul.f32.gmra.mxu0 %v2034
        %v3161 = vpop.f32.mrf.mxu0
        %v3162 = vadd.f32 %v2350, %v3161
        %3163 = vmatmul.f32.gmra.mxu0 %v2036
        %v3164 = vpop.f32.mrf.mxu0
        %v3165 = vadd.f32 %v2355, %v3164
        %3166 = vmatmul.f32.gmra.mxu0 %v2038
        %v3167 = vpop.f32.mrf.mxu0
        %v3168 = vadd.f32 %v2360, %v3167
        %3169 = vmatmul.f32.gmra.mxu0 %v2040
        %v3170 = vpop.f32.mrf.mxu0
        %v3171 = vadd.f32 %v2365, %v3170
        %3172 = vmatmul.f32.gmra.mxu0 %v2042
        %v3173 = vpop.f32.mrf.mxu0
        %v3174 = vadd.f32 %v2370, %v3173
        %3175 = vdwg.mxu0
        %3176 = vmatpush.msra.mxu0 0.0
        %3177 = vmatpush.msra.mxu0 0.0
        %3178 = vmatpush.msra.mxu0 0.0
        %3179 = vmatpush.msra.mxu0 0.0
        %3180 = vmatpush.msra.mxu0 %v2323
        %3181 = vmatpush.msra.mxu0 %v2313
        %3182 = vmatpush.msra.mxu0 %v2303
        %3183 = vmatpush.msra.mxu0 %v2293
        %3184 = vmatpush.msra.mxu0 %v2283
        %3185 = vmatpush.msra.mxu0 %v2273
        %3186 = vmatpush.msra.mxu0 %v2263
        %3187 = vmatpush.msra.mxu0 %v2253
        %3188 = vmatpush.msra.mxu0 %v2243
        %3189 = vmatpush.msra.mxu0 %v2233
        %3190 = vmatpush.msra.mxu0 %v2223
        %3191 = vmatpush.msra.mxu0 %v2213
        %3192 = vmatmul.f32.gmra.mxu0 %v2374
        %v3193 = vpop.f32.mrf.mxu0
        %v3194 = vadd.f32 %v3153, %v3193
        %3195 = vmatmul.f32.gmra.mxu0 %v2377
        %v3196 = vpop.f32.mrf.mxu0
        %v3197 = vadd.f32 %v3156, %v3196
        %3198 = vmatmul.f32.gmra.mxu0 %v2380
        %v3199 = vpop.f32.mrf.mxu0
        %v3200 = vadd.f32 %v3159, %v3199
        %3201 = vmatmul.f32.gmra.mxu0 %v2383
        %v3202 = vpop.f32.mrf.mxu0
        %v3203 = vadd.f32 %v3162, %v3202
        %3204 = vmatmul.f32.gmra.mxu0 %v2386
        %v3205 = vpop.f32.mrf.mxu0
        %v3206 = vadd.f32 %v3165, %v3205
        %3207 = vmatmul.f32.gmra.mxu0 %v2389
        %v3208 = vpop.f32.mrf.mxu0
        %v3209 = vadd.f32 %v3168, %v3208
        %3210 = vmatmul.f32.gmra.mxu0 %v2392
        %v3211 = vpop.f32.mrf.mxu0
        %v3212 = vadd.f32 %v3171, %v3211
        %3213 = vmatmul.f32.gmra.mxu0 %v2395
        %v3214 = vpop.f32.mrf.mxu0
        %v3215 = vadd.f32 %v3174, %v3214
        %3216 = vdwg.mxu0
        %v3217 = vtanh.pop %v2456
        %v3218 = vtanh.pop %v2538
        %v3219 = vtanh.pop %v2620
        %v3220 = vtanh.pop %v2702
        %v3221 = vtanh.pop %v2784
        %v3222 = vtanh.pop %v2866
        %v3223 = vtanh.pop %v2948
        %v3224 = vtanh.pop %v3030
        %v3225 = vtanh.pop %v3112
        %v3226 = vtanh.pop %v3194
        %v3227 = vtanh.pop %v2459
        %v3228 = vtanh.pop %v2541
        %v3229 = vtanh.pop %v2623
        %v3230 = vtanh.pop %v2705
        %v3231 = vtanh.pop %v2787
        %v3232 = vtanh.pop %v2869
        %v3233 = vtanh.pop %v2951
        %v3234 = vtanh.pop %v3033
        %v3235 = vtanh.pop %v3115
        %v3236 = vtanh.pop %v3197
        %v3237 = vtanh.pop %v2462
        %v3238 = vtanh.pop %v2544
        %v3239 = vtanh.pop %v2626
        %v3240 = vtanh.pop %v2708
        %v3241 = vtanh.pop %v2790
        %v3242 = vtanh.pop %v2872
        %v3243 = vtanh.pop %v2954
        %v3244 = vtanh.pop %v3036
        %v3245 = vtanh.pop %v3118
        %v3246 = vtanh.pop %v3200
        %v3247 = vtanh.pop %v2465
        %v3248 = vtanh.pop %v2547
        %v3249 = vtanh.pop %v2629
        %v3250 = vtanh.pop %v2711
        %v3251 = vtanh.pop %v2793
        %v3252 = vtanh.pop %v2875
        %v3253 = vtanh.pop %v2957
        %v3254 = vtanh.pop %v3039
        %v3255 = vtanh.pop %v3121
        %v3256 = vtanh.pop %v3203
        %v3257 = vtanh.pop %v2468
        %v3258 = vtanh.pop %v2550
        %v3259 = vtanh.pop %v2632
        %v3260 = vtanh.pop %v2714
        %v3261 = vtanh.pop %v2796
        %v3262 = vtanh.pop %v2878
        %v3263 = vtanh.pop %v2960
        %v3264 = vtanh.pop %v3042
        %v3265 = vtanh.pop %v3124
        %v3266 = vtanh.pop %v3206
        %v3267 = vtanh.pop %v2471
        %v3268 = vtanh.pop %v2553
        %v3269 = vtanh.pop %v2635
        %v3270 = vtanh.pop %v2717
        %v3271 = vtanh.pop %v2799
        %v3272 = vtanh.pop %v2881
        %v3273 = vtanh.pop %v2963
        %v3274 = vtanh.pop %v3045
        %v3275 = vtanh.pop %v3127
        %v3276 = vtanh.pop %v3209
        %v3277 = vtanh.pop %v2474
        %v3278 = vtanh.pop %v2556
        %v3279 = vtanh.pop %v2638
        %v3280 = vtanh.pop %v2720
        %v3281 = vtanh.pop %v2802
        %v3282 = vtanh.pop %v2884
        %v3283 = vtanh.pop %v2966
        %v3284 = vtanh.pop %v3048
        %v3285 = vtanh.pop %v3130
        %v3286 = vtanh.pop %v3212
        %v3287 = vtanh.pop %v2477
        %v3288 = vtanh.pop %v2559
        %v3289 = vtanh.pop %v2641
        %v3290 = vtanh.pop %v2723
        %v3291 = vtanh.pop %v2805
        %v3292 = vtanh.pop %v2887
        %v3293 = vtanh.pop %v2969
        %v3294 = vtanh.pop %v3051
        %v3295 = vtanh.pop %v3133
        %v3296 = vtanh.pop %v3215
        %3297 = vst [vmem:[%s159] sm:$0xff] %v3217
        %3298 = vst [vmem:[%s159 + $0x8] sm:$0xff] %v3218
        %3299 = vst [vmem:[%s159 + $0x10] sm:$0xff] %v3219
        %3300 = vst [vmem:[%s159 + $0x18] sm:$0xff] %v3220
        %3301 = vst [vmem:[%s159 + $0x20] sm:$0xff] %v3221
        %3302 = vst [vmem:[%s159 + $0x28] sm:$0xff] %v3222
        %3303 = vst [vmem:[%s159 + $0x30] sm:$0xff] %v3223
        %3304 = vst [vmem:[%s159 + $0x38] sm:$0xff] %v3224
        %3305 = vst [vmem:[%s159 + $0x40] sm:$0xff] %v3225
        %3306 = vst [vmem:[%s159 + $0x48] sm:$0xff] %v3226
        %3307 = vst [vmem:[%s159 + $0x50] sm:$0xff] %v3227
        %3308 = vst [vmem:[%s159 + $0x58] sm:$0xff] %v3228
        %3309 = vst [vmem:[%s159 + $0x60] sm:$0xff] %v3229
        %3310 = vst [vmem:[%s159 + $0x68] sm:$0xff] %v3230
        %3311 = vst [vmem:[%s159 + $0x70] sm:$0xff] %v3231
        %3312 = vst [vmem:[%s159 + $0x78] sm:$0xff] %v3232
        %3313 = vst [vmem:[%s159 + $0x80] sm:$0xff] %v3233
        %3314 = vst [vmem:[%s159 + $0x88] sm:$0xff] %v3234
        %3315 = vst [vmem:[%s159 + $0x90] sm:$0xff] %v3235
        %3316 = vst [vmem:[%s159 + $0x98] sm:$0xff] %v3236
        %3317 = vst [vmem:[%s159 + $0xa0] sm:$0xff] %v3237
        %3318 = vst [vmem:[%s159 + $0xa8] sm:$0xff] %v3238
        %3319 = vst [vmem:[%s159 + $0xb0] sm:$0xff] %v3239
        %3320 = vst [vmem:[%s159 + $0xb8] sm:$0xff] %v3240
        %3321 = vst [vmem:[%s159 + $0xc0] sm:$0xff] %v3241
        %3322 = vst [vmem:[%s159 + $0xc8] sm:$0xff] %v3242
        %3323 = vst [vmem:[%s159 + $0xd0] sm:$0xff] %v3243
        %3324 = vst [vmem:[%s159 + $0xd8] sm:$0xff] %v3244
        %3325 = vst [vmem:[%s159 + $0xe0] sm:$0xff] %v3245
        %3326 = vst [vmem:[%s159 + $0xe8] sm:$0xff] %v3246
        %3327 = vst [vmem:[%s159 + $0xf0] sm:$0xff] %v3247
        %3328 = vst [vmem:[%s159 + $0xf8] sm:$0xff] %v3248
        %3329 = vst [vmem:[%s159 + $0x100] sm:$0xff] %v3249
        %3330 = vst [vmem:[%s159 + $0x108] sm:$0xff] %v3250
        %3331 = vst [vmem:[%s159 + $0x110] sm:$0xff] %v3251
        %3332 = vst [vmem:[%s159 + $0x118] sm:$0xff] %v3252
        %3333 = vst [vmem:[%s159 + $0x120] sm:$0xff] %v3253
        %3334 = vst [vmem:[%s159 + $0x128] sm:$0xff] %v3254
        %3335 = vst [vmem:[%s159 + $0x130] sm:$0xff] %v3255
        %3336 = vst [vmem:[%s159 + $0x138] sm:$0xff] %v3256
        %3337 = vst [vmem:[%s159 + $0x140] sm:$0xff] %v3257
        %3338 = vst [vmem:[%s159 + $0x148] sm:$0xff] %v3258
        %3339 = vst [vmem:[%s159 + $0x150] sm:$0xff] %v3259
        %3340 = vst [vmem:[%s159 + $0x158] sm:$0xff] %v3260
        %3341 = vst [vmem:[%s159 + $0x160] sm:$0xff] %v3261
        %3342 = vst [vmem:[%s159 + $0x168] sm:$0xff] %v3262
        %3343 = vst [vmem:[%s159 + $0x170] sm:$0xff] %v3263
        %3344 = vst [vmem:[%s159 + $0x178] sm:$0xff] %v3264
        %3345 = vst [vmem:[%s159 + $0x180] sm:$0xff] %v3265
        %3346 = vst [vmem:[%s159 + $0x188] sm:$0xff] %v3266
        %3347 = vst [vmem:[%s159 + $0x190] sm:$0xff] %v3267
        %3348 = vst [vmem:[%s159 + $0x198] sm:$0xff] %v3268
        %3349 = vst [vmem:[%s159 + $0x1a0] sm:$0xff] %v3269
        %3350 = vst [vmem:[%s159 + $0x1a8] sm:$0xff] %v3270
        %3351 = vst [vmem:[%s159 + $0x1b0] sm:$0xff] %v3271
        %3352 = vst [vmem:[%s159 + $0x1b8] sm:$0xff] %v3272
        %3353 = vst [vmem:[%s159 + $0x1c0] sm:$0xff] %v3273
        %3354 = vst [vmem:[%s159 + $0x1c8] sm:$0xff] %v3274
        %3355 = vst [vmem:[%s159 + $0x1d0] sm:$0xff] %v3275
        %3356 = vst [vmem:[%s159 + $0x1d8] sm:$0xff] %v3276
        %3357 = vst [vmem:[%s159 + $0x1e0] sm:$0xff] %v3277
        %3358 = vst [vmem:[%s159 + $0x1e8] sm:$0xff] %v3278
        %3359 = vst [vmem:[%s159 + $0x1f0] sm:$0xff] %v3279
        %3360 = vst [vmem:[%s159 + $0x1f8] sm:$0xff] %v3280
        %3361 = vst [vmem:[%s159 + $0x200] sm:$0xff] %v3281
        %3362 = vst [vmem:[%s159 + $0x208] sm:$0xff] %v3282
        %3363 = vst [vmem:[%s159 + $0x210] sm:$0xff] %v3283
        %3364 = vst [vmem:[%s159 + $0x218] sm:$0xff] %v3284
        %3365 = vst [vmem:[%s159 + $0x220] sm:$0xff] %v3285
        %3366 = vst [vmem:[%s159 + $0x228] sm:$0xff] %v3286
        %3367 = vst [vmem:[%s159 + $0x230] sm:$0xff] %v3287
        %3368 = vst [vmem:[%s159 + $0x238] sm:$0xff] %v3288
        %3369 = vst [vmem:[%s159 + $0x240] sm:$0xff] %v3289
        %3370 = vst [vmem:[%s159 + $0x248] sm:$0xff] %v3290
        %3371 = vst [vmem:[%s159 + $0x250] sm:$0xff] %v3291
        %3372 = vst [vmem:[%s159 + $0x258] sm:$0xff] %v3292
        %3373 = vst [vmem:[%s159 + $0x260] sm:$0xff] %v3293
        %3374 = vst [vmem:[%s159 + $0x268] sm:$0xff] %v3294
        %3375 = vst [vmem:[%s159 + $0x270] sm:$0xff] %v3295
        %3376 = vst [vmem:[%s159 + $0x278] sm:$0xff] %v3296
        %s3377 = sand.u32 %s90, 1
        %s3378 = sand.u32 %s90, 1
        %s3379 = smul.addr %s3378, 640
        %s3380 = scalar_lea.vmem [#allocation3], %s3379
        // Predicated region
        $region33: #{conv1d_tanh.1} parent=31 // pred_check
          %p3381 = pneg %p100
        $region34: #{conv1d_tanh.1} parent=31 // pred_check_branch
          %3383 = sbr.rel (%p3381) target = $region36
        $region35: #{conv1d_tanh.1} parent=31 // pred_region
          %s3384 = smul.u32 10, %s14
          %s3385 = smul.addr %s3384, 8
          %s3386 = scalar_lea.vmem %s3, %s3385
          // Predicated region
          $region37: #{conv1d_tanh.1} parent=35 // pred_check
            _
          $region38: #{conv1d_tanh.1} parent=35 // pred_check_branch
            %3388 = sbr.rel (0) target = $region40
          $region39: #{conv1d_tanh.1} parent=35 // pred_region
            // Predicated region
            $region41: #{conv1d_tanh.1} parent=39 // pred_check
              _
            $region42: #{conv1d_tanh.1} parent=39 // pred_check_branch
              %3390 = sbr.rel (0) target = $region44
            $region43: #{conv1d_tanh.1} parent=39 // pred_region
              loop: start=0, step=1, limit=1
              $region45: #{conv1d_tanh.1} parent=43 // loop_pre_header
                _
              $region46: #{conv1d_tanh.1} parent=43 // loop_header
                %s3392 = sphi 0, %s3396
                %p3393 = scmp.ge.s32.totalorder %s3392, 1
                %s3397 = sphi %s3380, %s3380
                %s3398 = sphi %s3386, %s3386
              $region47: #{conv1d_tanh.1} parent=43 // loop_header_branch
                %3395 = sbr.rel (%p3393) target = $region51
              $region48: #{conv1d_tanh.1} parent=43 // loop_body
                %v3399 = vld [vmem:[%s3397] sm:$0xff]
                %3400 = vst [vmem:[%s3398] sm:$0xff] %v3399
                %v3401 = vld [vmem:[%s3397 + $0x8] sm:$0xff]
                %3402 = vst [vmem:[%s3398 + $0x8] sm:$0xff] %v3401
                %v3403 = vld [vmem:[%s3397 + $0x10] sm:$0xff]
                %3404 = vst [vmem:[%s3398 + $0x10] sm:$0xff] %v3403
                %v3405 = vld [vmem:[%s3397 + $0x18] sm:$0xff]
                %3406 = vst [vmem:[%s3398 + $0x18] sm:$0xff] %v3405
                %v3407 = vld [vmem:[%s3397 + $0x20] sm:$0xff]
                %3408 = vst [vmem:[%s3398 + $0x20] sm:$0xff] %v3407
                %v3409 = vld [vmem:[%s3397 + $0x28] sm:$0xff]
                %3410 = vst [vmem:[%s3398 + $0x28] sm:$0xff] %v3409
                %v3411 = vld [vmem:[%s3397 + $0x30] sm:$0xff]
                %3412 = vst [vmem:[%s3398 + $0x30] sm:$0xff] %v3411
                %v3413 = vld [vmem:[%s3397 + $0x38] sm:$0xff]
                %3414 = vst [vmem:[%s3398 + $0x38] sm:$0xff] %v3413
                %v3415 = vld [vmem:[%s3397 + $0x40] sm:$0xff]
                %3416 = vst [vmem:[%s3398 + $0x40] sm:$0xff] %v3415
                %v3417 = vld [vmem:[%s3397 + $0x48] sm:$0xff]
                %3418 = vst [vmem:[%s3398 + $0x48] sm:$0xff] %v3417
                %v3419 = vld [vmem:[%s3397 + $0x50] sm:$0xff]
                %3420 = vst [vmem:[%s3398 + $0xa0] sm:$0xff] %v3419
                %v3421 = vld [vmem:[%s3397 + $0x58] sm:$0xff]
                %3422 = vst [vmem:[%s3398 + $0xa8] sm:$0xff] %v3421
                %v3423 = vld [vmem:[%s3397 + $0x60] sm:$0xff]
                %3424 = vst [vmem:[%s3398 + $0xb0] sm:$0xff] %v3423
                %v3425 = vld [vmem:[%s3397 + $0x68] sm:$0xff]
                %3426 = vst [vmem:[%s3398 + $0xb8] sm:$0xff] %v3425
                %v3427 = vld [vmem:[%s3397 + $0x70] sm:$0xff]
                %3428 = vst [vmem:[%s3398 + $0xc0] sm:$0xff] %v3427
                %v3429 = vld [vmem:[%s3397 + $0x78] sm:$0xff]
                %3430 = vst [vmem:[%s3398 + $0xc8] sm:$0xff] %v3429
                %v3431 = vld [vmem:[%s3397 + $0x80] sm:$0xff]
                %3432 = vst [vmem:[%s3398 + $0xd0] sm:$0xff] %v3431
                %v3433 = vld [vmem:[%s3397 + $0x88] sm:$0xff]
                %3434 = vst [vmem:[%s3398 + $0xd8] sm:$0xff] %v3433
                %v3435 = vld [vmem:[%s3397 + $0x90] sm:$0xff]
                %3436 = vst [vmem:[%s3398 + $0xe0] sm:$0xff] %v3435
                %v3437 = vld [vmem:[%s3397 + $0x98] sm:$0xff]
                %3438 = vst [vmem:[%s3398 + $0xe8] sm:$0xff] %v3437
                %v3439 = vld [vmem:[%s3397 + $0xa0] sm:$0xff]
                %3440 = vst [vmem:[%s3398 + $0x140] sm:$0xff] %v3439
                %v3441 = vld [vmem:[%s3397 + $0xa8] sm:$0xff]
                %3442 = vst [vmem:[%s3398 + $0x148] sm:$0xff] %v3441
                %v3443 = vld [vmem:[%s3397 + $0xb0] sm:$0xff]
                %3444 = vst [vmem:[%s3398 + $0x150] sm:$0xff] %v3443
                %v3445 = vld [vmem:[%s3397 + $0xb8] sm:$0xff]
                %3446 = vst [vmem:[%s3398 + $0x158] sm:$0xff] %v3445
                %v3447 = vld [vmem:[%s3397 + $0xc0] sm:$0xff]
                %3448 = vst [vmem:[%s3398 + $0x160] sm:$0xff] %v3447
                %v3449 = vld [vmem:[%s3397 + $0xc8] sm:$0xff]
                %3450 = vst [vmem:[%s3398 + $0x168] sm:$0xff] %v3449
                %v3451 = vld [vmem:[%s3397 + $0xd0] sm:$0xff]
                %3452 = vst [vmem:[%s3398 + $0x170] sm:$0xff] %v3451
                %v3453 = vld [vmem:[%s3397 + $0xd8] sm:$0xff]
                %3454 = vst [vmem:[%s3398 + $0x178] sm:$0xff] %v3453
                %v3455 = vld [vmem:[%s3397 + $0xe0] sm:$0xff]
                %3456 = vst [vmem:[%s3398 + $0x180] sm:$0xff] %v3455
                %v3457 = vld [vmem:[%s3397 + $0xe8] sm:$0xff]
                %3458 = vst [vmem:[%s3398 + $0x188] sm:$0xff] %v3457
                %v3459 = vld [vmem:[%s3397 + $0xf0] sm:$0xff]
                %3460 = vst [vmem:[%s3398 + $0x1e0] sm:$0xff] %v3459
                %v3461 = vld [vmem:[%s3397 + $0xf8] sm:$0xff]
                %3462 = vst [vmem:[%s3398 + $0x1e8] sm:$0xff] %v3461
                %v3463 = vld [vmem:[%s3397 + $0x100] sm:$0xff]
                %3464 = vst [vmem:[%s3398 + $0x1f0] sm:$0xff] %v3463
                %v3465 = vld [vmem:[%s3397 + $0x108] sm:$0xff]
                %3466 = vst [vmem:[%s3398 + $0x1f8] sm:$0xff] %v3465
                %v3467 = vld [vmem:[%s3397 + $0x110] sm:$0xff]
                %3468 = vst [vmem:[%s3398 + $0x200] sm:$0xff] %v3467
                %v3469 = vld [vmem:[%s3397 + $0x118] sm:$0xff]
                %3470 = vst [vmem:[%s3398 + $0x208] sm:$0xff] %v3469
                %v3471 = vld [vmem:[%s3397 + $0x120] sm:$0xff]
                %3472 = vst [vmem:[%s3398 + $0x210] sm:$0xff] %v3471
                %v3473 = vld [vmem:[%s3397 + $0x128] sm:$0xff]
                %3474 = vst [vmem:[%s3398 + $0x218] sm:$0xff] %v3473
                %v3475 = vld [vmem:[%s3397 + $0x130] sm:$0xff]
                %3476 = vst [vmem:[%s3398 + $0x220] sm:$0xff] %v3475
                %v3477 = vld [vmem:[%s3397 + $0x138] sm:$0xff]
                %3478 = vst [vmem:[%s3398 + $0x228] sm:$0xff] %v3477
                %v3479 = vld [vmem:[%s3397 + $0x140] sm:$0xff]
                %3480 = vst [vmem:[%s3398 + $0x280] sm:$0xff] %v3479
                %v3481 = vld [vmem:[%s3397 + $0x148] sm:$0xff]
                %3482 = vst [vmem:[%s3398 + $0x288] sm:$0xff] %v3481
                %v3483 = vld [vmem:[%s3397 + $0x150] sm:$0xff]
                %3484 = vst [vmem:[%s3398 + $0x290] sm:$0xff] %v3483
                %v3485 = vld [vmem:[%s3397 + $0x158] sm:$0xff]
                %3486 = vst [vmem:[%s3398 + $0x298] sm:$0xff] %v3485
                %v3487 = vld [vmem:[%s3397 + $0x160] sm:$0xff]
                %3488 = vst [vmem:[%s3398 + $0x2a0] sm:$0xff] %v3487
                %v3489 = vld [vmem:[%s3397 + $0x168] sm:$0xff]
                %3490 = vst [vmem:[%s3398 + $0x2a8] sm:$0xff] %v3489
                %v3491 = vld [vmem:[%s3397 + $0x170] sm:$0xff]
                %3492 = vst [vmem:[%s3398 + $0x2b0] sm:$0xff] %v3491
                %v3493 = vld [vmem:[%s3397 + $0x178] sm:$0xff]
                %3494 = vst [vmem:[%s3398 + $0x2b8] sm:$0xff] %v3493
                %v3495 = vld [vmem:[%s3397 + $0x180] sm:$0xff]
                %3496 = vst [vmem:[%s3398 + $0x2c0] sm:$0xff] %v3495
                %v3497 = vld [vmem:[%s3397 + $0x188] sm:$0xff]
                %3498 = vst [vmem:[%s3398 + $0x2c8] sm:$0xff] %v3497
                %v3499 = vld [vmem:[%s3397 + $0x190] sm:$0xff]
                %3500 = vst [vmem:[%s3398 + $0x320] sm:$0xff] %v3499
                %v3501 = vld [vmem:[%s3397 + $0x198] sm:$0xff]
                %3502 = vst [vmem:[%s3398 + $0x328] sm:$0xff] %v3501
                %v3503 = vld [vmem:[%s3397 + $0x1a0] sm:$0xff]
                %3504 = vst [vmem:[%s3398 + $0x330] sm:$0xff] %v3503
                %v3505 = vld [vmem:[%s3397 + $0x1a8] sm:$0xff]
                %3506 = vst [vmem:[%s3398 + $0x338] sm:$0xff] %v3505
                %v3507 = vld [vmem:[%s3397 + $0x1b0] sm:$0xff]
                %3508 = vst [vmem:[%s3398 + $0x340] sm:$0xff] %v3507
                %v3509 = vld [vmem:[%s3397 + $0x1b8] sm:$0xff]
                %3510 = vst [vmem:[%s3398 + $0x348] sm:$0xff] %v3509
                %v3511 = vld [vmem:[%s3397 + $0x1c0] sm:$0xff]
                %3512 = vst [vmem:[%s3398 + $0x350] sm:$0xff] %v3511
                %v3513 = vld [vmem:[%s3397 + $0x1c8] sm:$0xff]
                %3514 = vst [vmem:[%s3398 + $0x358] sm:$0xff] %v3513
                %v3515 = vld [vmem:[%s3397 + $0x1d0] sm:$0xff]
                %3516 = vst [vmem:[%s3398 + $0x360] sm:$0xff] %v3515
                %v3517 = vld [vmem:[%s3397 + $0x1d8] sm:$0xff]
                %3518 = vst [vmem:[%s3398 + $0x368] sm:$0xff] %v3517
                %v3519 = vld [vmem:[%s3397 + $0x1e0] sm:$0xff]
                %3520 = vst [vmem:[%s3398 + $0x3c0] sm:$0xff] %v3519
                %v3521 = vld [vmem:[%s3397 + $0x1e8] sm:$0xff]
                %3522 = vst [vmem:[%s3398 + $0x3c8] sm:$0xff] %v3521
                %v3523 = vld [vmem:[%s3397 + $0x1f0] sm:$0xff]
                %3524 = vst [vmem:[%s3398 + $0x3d0] sm:$0xff] %v3523
                %v3525 = vld [vmem:[%s3397 + $0x1f8] sm:$0xff]
                %3526 = vst [vmem:[%s3398 + $0x3d8] sm:$0xff] %v3525
                %v3527 = vld [vmem:[%s3397 + $0x200] sm:$0xff]
                %3528 = vst [vmem:[%s3398 + $0x3e0] sm:$0xff] %v3527
                %v3529 = vld [vmem:[%s3397 + $0x208] sm:$0xff]
                %3530 = vst [vmem:[%s3398 + $0x3e8] sm:$0xff] %v3529
                %v3531 = vld [vmem:[%s3397 + $0x210] sm:$0xff]
                %3532 = vst [vmem:[%s3398 + $0x3f0] sm:$0xff] %v3531
                %v3533 = vld [vmem:[%s3397 + $0x218] sm:$0xff]
                %3534 = vst [vmem:[%s3398 + $0x3f8] sm:$0xff] %v3533
                %v3535 = vld [vmem:[%s3397 + $0x220] sm:$0xff]
                %3536 = vst [vmem:[%s3398 + $0x400] sm:$0xff] %v3535
                %v3537 = vld [vmem:[%s3397 + $0x228] sm:$0xff]
                %3538 = vst [vmem:[%s3398 + $0x408] sm:$0xff] %v3537
                %v3539 = vld [vmem:[%s3397 + $0x230] sm:$0xff]
                %3540 = vst [vmem:[%s3398 + $0x460] sm:$0xff] %v3539
                %v3541 = vld [vmem:[%s3397 + $0x238] sm:$0xff]
                %3542 = vst [vmem:[%s3398 + $0x468] sm:$0xff] %v3541
                %v3543 = vld [vmem:[%s3397 + $0x240] sm:$0xff]
                %3544 = vst [vmem:[%s3398 + $0x470] sm:$0xff] %v3543
                %v3545 = vld [vmem:[%s3397 + $0x248] sm:$0xff]
                %3546 = vst [vmem:[%s3398 + $0x478] sm:$0xff] %v3545
                %v3547 = vld [vmem:[%s3397 + $0x250] sm:$0xff]
                %3548 = vst [vmem:[%s3398 + $0x480] sm:$0xff] %v3547
                %v3549 = vld [vmem:[%s3397 + $0x258] sm:$0xff]
                %3550 = vst [vmem:[%s3398 + $0x488] sm:$0xff] %v3549
                %v3551 = vld [vmem:[%s3397 + $0x260] sm:$0xff]
                %3552 = vst [vmem:[%s3398 + $0x490] sm:$0xff] %v3551
                %v3553 = vld [vmem:[%s3397 + $0x268] sm:$0xff]
                %3554 = vst [vmem:[%s3398 + $0x498] sm:$0xff] %v3553
                %v3555 = vld [vmem:[%s3397 + $0x270] sm:$0xff]
                %3556 = vst [vmem:[%s3398 + $0x4a0] sm:$0xff] %v3555
                %v3557 = vld [vmem:[%s3397 + $0x278] sm:$0xff]
                %3558 = vst [vmem:[%s3398 + $0x4a8] sm:$0xff] %v3557
              $region49: #{conv1d_tanh.1} parent=43 // loop_footer
                %s3396 = sadd.s32 1, %s3392
              $region50: #{conv1d_tanh.1} parent=43 // loop_footer_branch
                %3391 = sbr.rel target = $region46
              $region51: #{conv1d_tanh.1} parent=43 // loop_exit
                _
            $region44: #{conv1d_tanh.1} parent=39 // pred_fallthru
              _
            // Predicated region
            $region52: #{conv1d_tanh.1} parent=39 // pred_check
              _
            $region53: #{conv1d_tanh.1} parent=39 // pred_check_branch
              %3560 = sbr.rel target = $region55
            $region54: #{conv1d_tanh.1} parent=39 // pred_region
              _
            $region55: #{conv1d_tanh.1} parent=39 // pred_fallthru
              _
          $region40: #{conv1d_tanh.1} parent=35 // pred_fallthru
            _
          %3561 = vnop
        $region36: #{conv1d_tanh.1} parent=31 // pred_fallthru
          _
      $region32: #{conv1d_tanh.1} parent=5 // pred_fallthru
        _
      %p3562 = scmp.le.s32.totalorder 2, %s9
      // Predicated region
      $region56: #{conv1d_tanh.1} parent=5 // pred_check
        %p3563 = pneg %p3562
      $region57: #{conv1d_tanh.1} parent=5 // pred_check_branch
        %3565 = sbr.rel (%p3563) target = $region59
      $region58: #{conv1d_tanh.1} parent=5 // pred_region
        %s3566 = ssub.s32 %s9, 2
        // Predicated region
        $region60: #{conv1d_tanh.1} parent=58 // pred_check
          %p3567 = pneg %p106
        $region61: #{conv1d_tanh.1} parent=58 // pred_check_branch
          %3569 = sbr.rel (%p3567) target = $region63
        $region62: #{conv1d_tanh.1} parent=58 // pred_region
          %s3570 = sand.u32 %s91, 1
          %s3571 = sand.u32 %s91, 1
          %s3572 = smul.addr %s3571, 640
          %s3573 = scalar_lea.vmem [#allocation3], %s3572
        $region63: #{conv1d_tanh.1} parent=58 // pred_fallthru
          _
      $region59: #{conv1d_tanh.1} parent=5 // pred_fallthru
        _
    $region6: #{conv1d_tanh.1} parent=1 // loop_footer
      %s13 = sadd.s32 1, %s9
    $region7: #{conv1d_tanh.1} parent=1 // loop_footer_branch
      %8 = sbr.rel target = $region3
    $region8: #{conv1d_tanh.1} parent=1 // loop_exit
      _

</llo_original>
